<compile_context>
chip_gen: v7x
topology: tpu7x:2x2x1
jax: 0.10.0
libtpu: 0.0.40
codegen_flags: <defaults>
</compile_context>

<pallas_src>
import functools
import math

import jax
import jax.numpy as jnp
from jax.experimental import pallas as pl
from jax.experimental.pallas import tpu as pltpu


# -----------------------------------------------------------------------------
# Fused kernel: `batch_tile` batch elements per grid step.
# -----------------------------------------------------------------------------
def _hoi_block_kernel(image_ref, hoi_ref,
                      prompt_ref, pmask_ref,
                      ln1_g_ref, ln1_b_ref, ln2_g_ref, ln2_b_ref,
                      hln1_g_ref, hln1_b_ref,
                      c_wq_ref, c_bq_ref, c_wkv_ref, c_bkv_ref, c_wo_ref, c_bo_ref,
                      p_wq_ref, p_bq_ref, p_wkv_ref, p_bkv_ref, p_wo_ref, p_bo_ref,
                      wfc_ref, bfc_ref, wproj_ref, bproj_ref,
                      hoi_out_ref, attn_out_ref,
                      xcat_ref, *, n_head):
    f32 = jnp.float32
    bf16 = jnp.bfloat16
    eps = 1e-5

    bt, img_len, d = image_ref.shape
    hoi_len = hoi_ref.shape[1]
    cat_len = xcat_ref.shape[1]
    p_len = cat_len - hoi_len
    hd = d // n_head
    scale = 1.0 / math.sqrt(hd)

    def layer_norm(x, g_ref, b_ref):
        # f32 VPU math; params are (1, D) f32 and broadcast over leading dims.
        mu = jnp.mean(x, axis=-1, keepdims=True)
        var = jnp.mean(jnp.square(x - mu), axis=-1, keepdims=True)
        return (x - mu) * jax.lax.rsqrt(var + eps) * g_ref[...] + b_ref[...]

    def mha(q_in, kv_in, wq_ref, bq_ref, wkv_ref, bkv_ref, wo_ref, bo_ref,
            mask=None, need_weights=False):
        """Multi-head attention on (Bt, L, D) activations.

        Projections: fused lane-dense bf16 matmuls (M = Bt*L, K = D, N = D/2D)
        with f32 accumulation.  Heads are split via static lane slices only
        for the score/context einsums and merged back with a lane concat
        before one (Bt*Lq, D) @ (D, D) output projection.
        """
        lq = q_in.shape[1]
        lk = kv_in.shape[1]
        q2 = jnp.dot(q_in.reshape(bt * lq, d).astype(bf16), wq_ref[...],
                     preferred_element_type=f32) + bq_ref[...]
        kv2 = jnp.dot(kv_in.reshape(bt * lk, d).astype(bf16), wkv_ref[...],
                      preferred_element_type=f32) + bkv_ref[...]
        q3 = q2.reshape(bt, lq, d)
        k3 = kv2[:, :d].reshape(bt, lk, d)
        v3 = kv2[:, d:].reshape(bt, lk, d)

        ctxs = []
        attn_sum = None
        for h in range(n_head):                       # static unroll over heads
            sl = slice(h * hd, (h + 1) * hd)
            qh = q3[:, :, sl].astype(bf16)             # (Bt, Lq, hd)
            kh = k3[:, :, sl].astype(bf16)
            vh = v3[:, :, sl].astype(bf16)
            s = jnp.einsum('bqe,bke->bqk', qh, kh,
                           preferred_element_type=f32) * scale
            if mask is not None:
                s = s + mask                           # (Lq, Lk) bcast over Bt
            s = s - jnp.max(s, axis=-1, keepdims=True)
            e = jnp.exp(s)                             # f32 softmax
            p = e * pl.reciprocal(jnp.sum(e, axis=-1, keepdims=True),
                                  approx=True)
            ctxs.append(jnp.einsum('bqk,bke->bqe', p.astype(bf16), vh,
                                   preferred_element_type=f32))
            if need_weights:
                attn_sum = p if attn_sum is None else attn_sum + p
        ctx = jnp.concatenate(ctxs, axis=-1)           # (Bt, Lq, D) head-major
        y = jnp.dot(ctx.reshape(bt * lq, d).astype(bf16), wo_ref[...],
                    preferred_element_type=f32) + bo_ref[...]
        attn = attn_sum * (1.0 / n_head) if need_weights else None
        return y.reshape(bt, lq, d), attn

    x_img = image_ref[...].astype(f32)                 # (Bt, Limg, D)
    x_hoi = hoi_ref[...].astype(f32)                   # (Bt, Lhoi, D)

    # --- 1) hoi = hoi + cross_attn(ln_1(hoi), ln_1(image), ln_1(image)) -----
    y_cross, attn = mha(layer_norm(x_hoi, ln1_g_ref, ln1_b_ref),
                        layer_norm(x_img, ln1_g_ref, ln1_b_ref),
                        c_wq_ref, c_bq_ref, c_wkv_ref, c_bkv_ref,
                        c_wo_ref, c_bo_ref, need_weights=True)
    hoi1 = x_hoi + y_cross

    # --- 2) hoi = hoi + mlp(ln_2(hoi))  (QuickGELU) --------------------------
    xn = layer_norm(hoi1, ln2_g_ref, ln2_b_ref)
    h = jnp.dot(xn.reshape(bt * hoi_len, d).astype(bf16), wfc_ref[...],
                preferred_element_type=f32) + bfc_ref[...]
    h = h * jax.nn.sigmoid(1.702 * h)
    y_mlp = jnp.dot(h.astype(bf16), wproj_ref[...],
                    preferred_element_type=f32) + bproj_ref[...]
    hoi2 = hoi1 + y_mlp.reshape(bt, hoi_len, d)

    # --- 3) x = cat([hoi, prompt]); x = x + parse_attn(hoi_ln1(x), mask) ----
    # The module only keeps x[:hoi_len], so only hoi query rows are computed;
    # keys/values span the full concatenated sequence written into scratch.
    xcat_ref[:, :hoi_len, :] = hoi2
    if p_len:
        xcat_ref[:, hoi_len:, :] = jnp.broadcast_to(
            prompt_ref[...].astype(f32), (bt, p_len, d))
    xn_cat = layer_norm(xcat_ref[...], hln1_g_ref, hln1_b_ref)
    y_parse, _ = mha(xn_cat[:, :hoi_len, :], xn_cat,
                     p_wq_ref, p_bq_ref, p_wkv_ref, p_bkv_ref,
                     p_wo_ref, p_bo_ref, mask=pmask_ref[...])
    x_out = hoi2 + y_parse

    hoi_out_ref[...] = x_out.astype(hoi_out_ref.dtype)

    # Lane-dense attention-map store: pad the key axis up to the padded output
    # width so the writeback is unmasked full-lane stores.
    pad = attn_out_ref.shape[-1] - img_len
    if pad:
        attn = jnp.concatenate(
            [attn, jnp.zeros((bt, hoi_len, pad), f32)], axis=-1)
    attn_out_ref[...] = attn.astype(attn_out_ref.dtype)


# -----------------------------------------------------------------------------
# Wrapper: one pallas_call for the whole block.
# -----------------------------------------------------------------------------
def hoi_residual_attention_block(image, hoi, prompt_hint, parse_attn_mask,
                                 params, *, n_head, batch_tile=None):
    """image: (Limg, B, D), hoi: (Lhoi, B, D), prompt_hint: (P, D).

    Returns (image, hoi_out (Lhoi, B, D), attn_map (B, Lhoi, Limg)) matching
    HOIResidualAttentionBlock.forward with mask=None and region_prompts=[].
    """
    hoi_len, bs, d = hoi.shape
    img_len = image.shape[0]
    p_len = prompt_hint.shape[0]
    cat_len = hoi_len + p_len

    if batch_tile is None:
        batch_tile = next(c for c in (8, 4, 2, 1) if bs % c == 0)
    assert bs % batch_tile == 0, (bs, batch_tile)

    # Remaining wrapper-side layout ops: seq-major <-> batch-major views, the
    # static mask slice and the attn-map un-padding (tiny, fused under jit).
    image_b = jnp.transpose(image, (1, 0, 2))               # (B, Limg, D)
    hoi_b = jnp.transpose(hoi, (1, 0, 2))                   # (B, Lhoi, D)
    pmask = parse_attn_mask[1:1 + hoi_len, 1:1 + cat_len].astype(jnp.float32)
    img_pad = ((img_len + 127) // 128) * 128

    const_args = (prompt_hint.astype(jnp.float32), pmask,
                  params["ln1_g"], params["ln1_b"],
                  params["ln2_g"], params["ln2_b"],
                  params["hoi_ln1_g"], params["hoi_ln1_b"],
                  params["cross_wq_t"], params["cross_b_q"],
                  params["cross_wkv_t"], params["cross_b_kv"],
                  params["cross_wo_t"], params["cross_b_o"],
                  params["parse_wq_t"], params["parse_b_q"],
                  params["parse_wkv_t"], params["parse_b_kv"],
                  params["parse_wo_t"], params["parse_b_o"],
                  params["w_fc_t"], params["b_fc"],
                  params["w_proj_t"], params["b_proj"])

    def batch_spec(length):
        return pl.BlockSpec((batch_tile, length, d), lambda b: (b, 0, 0))

    def const_spec(a):
        nd = a.ndim
        idx = lambda b: (0,) * nd
        try:
            # Grid-invariant operand: single-buffer it (no double-buffer waste).
            return pl.BlockSpec(a.shape, idx,
                                pipeline_mode=pl.Buffered(buffer_count=1))
        except (TypeError, AttributeError):
            return pl.BlockSpec(a.shape, idx)

    # Explicit VMEM budget: resident constants + double-buffered I/O blocks +
    # scratch + a rough f32 activation working set, with headroom.  Clamped to
    # stay under every generation's physical VMEM (64 MiB on v7x).
    const_bytes = sum(a.size * a.dtype.itemsize for a in const_args)
    io_bytes = 2 * batch_tile * (
        img_len * d * image_b.dtype.itemsize
        + 2 * hoi_len * d * hoi_b.dtype.itemsize
        + hoi_len * img_pad * 4)
    scratch_bytes = 4 * batch_tile * cat_len * d
    act_bytes = 4 * batch_tile * (6 * img_len * d + 10 * cat_len * d
                                  + n_head * hoi_len * img_len
                                  + 8 * hoi_len * d)
    est = const_bytes + io_bytes + scratch_bytes + act_bytes
    vmem_limit = max(32 << 20, min(2 * est, 64 << 20))

    hoi_out_b, attn_pad = pl.pallas_call(
        functools.partial(_hoi_block_kernel, n_head=n_head),
        out_shape=(jax.ShapeDtypeStruct((bs, hoi_len, d), hoi.dtype),
                   jax.ShapeDtypeStruct((bs, hoi_len, img_pad), jnp.float32)),
        grid=(bs // batch_tile,),
        in_specs=[batch_spec(img_len), batch_spec(hoi_len)]
                 + [const_spec(a) for a in const_args],
        out_specs=(pl.BlockSpec((batch_tile, hoi_len, d), lambda b: (b, 0, 0)),
                   pl.BlockSpec((batch_tile, hoi_len, img_pad),
                                lambda b: (b, 0, 0))),
        scratch_shapes=[pltpu.VMEM((batch_tile, cat_len, d), jnp.float32)],
        compiler_params=pltpu.CompilerParams(
            dimension_semantics=("parallel",),
            vmem_limit_bytes=int(vmem_limit)),
    )(image_b, hoi_b, *const_args)

    hoi_out = jnp.transpose(hoi_out_b, (1, 0, 2))            # (Lhoi, B, D)
    attn_map = attn_pad[:, :, :img_len]                      # (B, Lhoi, Limg)
    return image, hoi_out, attn_map


# -----------------------------------------------------------------------------
# One-time parameter conversion: PyTorch layout -> kernel layout.
# Weight matrices are pre-transposed and stored in bf16 (fed to the MXU as-is);
# biases / LayerNorm params stay in f32 (VPU adds).
# -----------------------------------------------------------------------------
def convert_mha_params(w_q, w_k, w_v, b_q, b_k, b_v, w_o, b_o):
    bf16, f32 = jnp.bfloat16, jnp.float32
    return {
        "wq_t": jnp.asarray(w_q.T, bf16),                          # (D, D)
        "b_q": jnp.asarray(b_q, f32).reshape(1, -1),               # (1, D)
        "wkv_t": jnp.concatenate([w_k.T, w_v.T], axis=1).astype(bf16),  # (D, 2D)
        "b_kv": jnp.concatenate([b_k, b_v]).astype(f32).reshape(1, -1),  # (1, 2D)
        "wo_t": jnp.asarray(w_o.T, bf16),                          # (D, D)
        "b_o": jnp.asarray(b_o, f32).reshape(1, -1),               # (1, D)
    }


def convert_params(tp):
    bf16, f32 = jnp.bfloat16, jnp.float32
    c = convert_mha_params(*tp["cross"])
    p = convert_mha_params(*tp["parse"])
    return {
        "ln1_g": tp["ln1_g"].astype(f32).reshape(1, -1),
        "ln1_b": tp["ln1_b"].astype(f32).reshape(1, -1),
        "ln2_g": tp["ln2_g"].astype(f32).reshape(1, -1),
        "ln2_b": tp["ln2_b"].astype(f32).reshape(1, -1),
        "hoi_ln1_g": tp["hoi_ln1_g"].astype(f32).reshape(1, -1),
        "hoi_ln1_b": tp["hoi_ln1_b"].astype(f32).reshape(1, -1),
        "cross_wq_t": c["wq_t"], "cross_b_q": c["b_q"],
        "cross_wkv_t": c["wkv_t"], "cross_b_kv": c["b_kv"],
        "cross_wo_t": c["wo_t"], "cross_b_o": c["b_o"],
        "parse_wq_t": p["wq_t"], "parse_b_q": p["b_q"],
        "parse_wkv_t": p["wkv_t"], "parse_b_kv": p["b_kv"],
        "parse_wo_t": p["wo_t"], "parse_b_o": p["b_o"],
        "w_fc_t": tp["w_fc"].T.astype(bf16),
        "b_fc": tp["b_fc"].astype(f32).reshape(1, -1),
        "w_proj_t": tp["w_proj"].T.astype(bf16),
        "b_proj": tp["b_proj"].astype(f32).reshape(1, -1),
    }


# -----------------------------------------------------------------------------
# Pure-JAX reference (PyTorch eval-mode math, torch-layout weights, f32).
# -----------------------------------------------------------------------------
def _ref_layer_norm(x, g, b, eps=1e-5):
    mu = jnp.mean(x, axis=-1, keepdims=True)
    var = jnp.mean((x - mu) ** 2, axis=-1, keepdims=True)
    return (x - mu) / jnp.sqrt(var + eps) * g + b


def _ref_mha(q_in, k_in, v_in, w_q, w_k, w_v, b_q, b_k, b_v, w_o, b_o,
             *, n_head, mask=None):
    lq, bsz, d = q_in.shape
    lk = k_in.shape[0]
    hd = d // n_head
    q = (jnp.einsum('lbd,ed->lbe', q_in, w_q) + b_q).reshape(lq, bsz, n_head, hd)
    k = (jnp.einsum('lbd,ed->lbe', k_in, w_k) + b_k).reshape(lk, bsz, n_head, hd)
    v = (jnp.einsum('lbd,ed->lbe', v_in, w_v) + b_v).reshape(lk, bsz, n_head, hd)
    s = jnp.einsum('qbhe,kbhe->bhqk', q, k) / math.sqrt(hd)
    if mask is not None:
        s = s + mask
    p = jax.nn.softmax(s, axis=-1)
    ctx = jnp.einsum('bhqk,kbhe->qbhe', p, v).reshape(lq, bsz, d)
    out = jnp.einsum('qbd,ed->qbe', ctx, w_o) + b_o
    return out, jnp.mean(p, axis=1)


def _reference_forward(image, hoi, prompt_hint, parse_attn_mask, tp, *, n_head):
    ln1 = lambda x: _ref_layer_norm(x, tp["ln1_g"], tp["ln1_b"])
    y, attn_map = _ref_mha(ln1(hoi), ln1(image), ln1(image), *tp["cross"],
                           n_head=n_head)
    hoi = hoi + y
    xn = _ref_layer_norm(hoi, tp["ln2_g"], tp["ln2_b"])
    h = xn @ tp["w_fc"].T + tp["b_fc"]
    h = h * jax.nn.sigmoid(1.702 * h)
    hoi = hoi + h @ tp["w_proj"].T + tp["b_proj"]
    bs = hoi.shape[1]
    x = jnp.concatenate([hoi, jnp.tile(prompt_hint[:, None, :], (1, bs, 1))],
                        axis=0)
    xn = _ref_layer_norm(x, tp["hoi_ln1_g"], tp["hoi_ln1_b"])
    yp, _ = _ref_mha(xn, xn, xn, *tp["parse"], n_head=n_head,
                     mask=parse_attn_mask[1:, 1:])
    x = x + yp
    return x[:hoi.shape[0]], attn_map


if __name__ == "__main__":
    d_model, n_head = 32, 4
    hoi_len, img_len, bs, p_len = 4, 16, 2, 2

    root = jax.random.PRNGKey(0)
    keys = jax.random.split(root, 15)

    def _bf16_round(x):
        # Kernel weights are stored in bf16; round them once so the f32
        # reference uses identical weight values.
        return x.astype(jnp.bfloat16).astype(jnp.float32)

    image = jax.random.normal(keys[0], (img_len, bs, d_model), jnp.float32)
    hoi = jax.random.normal(keys[1], (hoi_len, bs, d_model), jnp.float32)
    prompt_hint = jax.random.normal(keys[2], (p_len, d_model), jnp.float32)

    # parse_attn_mask: (1 + hoi_len + P)^2 additive mask; forward uses [1:, 1:].
    l_full = 1 + hoi_len + p_len
    tri = jnp.tril(jnp.ones((l_full, l_full), jnp.float32))
    parse_attn_mask = jnp.where(tri > 0, 0.0, -1e9).astype(jnp.float32)

    def make_mha_torch_params(key, d):
        ks = jax.random.split(key, 8)
        s = 0.02
        w_q, w_k, w_v, w_o = (_bf16_round(s * jax.random.normal(ks[i], (d, d),
                                                                jnp.float32))
                              for i in range(4))
        b_q, b_k, b_v, b_o = (s * jax.random.normal(ks[4 + i], (d,), jnp.float32)
                              for i in range(4))
        return (w_q, w_k, w_v, b_q, b_k, b_v, w_o, b_o)

    tp = {
        "ln1_g": 1.0 + 0.1 * jax.random.normal(keys[3], (d_model,), jnp.float32),
        "ln1_b": 0.1 * jax.random.normal(keys[4], (d_model,), jnp.float32),
        "ln2_g": 1.0 + 0.1 * jax.random.normal(keys[5], (d_model,), jnp.float32),
        "ln2_b": 0.1 * jax.random.normal(keys[6], (d_model,), jnp.float32),
        "hoi_ln1_g": 1.0 + 0.1 * jax.random.normal(keys[7], (d_model,), jnp.float32),
        "hoi_ln1_b": 0.1 * jax.random.normal(keys[8], (d_model,), jnp.float32),
        "cross": make_mha_torch_params(keys[9], d_model),
        "parse": make_mha_torch_params(keys[10], d_model),
        "w_fc": _bf16_round(0.02 * jax.random.normal(keys[11], (4 * d_model, d_model),
                                                     jnp.float32)),
        "b_fc": 0.02 * jax.random.normal(keys[12], (4 * d_model,), jnp.float32),
        "w_proj": _bf16_round(0.02 * jax.random.normal(keys[13], (d_model, 4 * d_model),
                                                       jnp.float32)),
        "b_proj": 0.02 * jax.random.normal(keys[14], (d_model,), jnp.float32),
    }
    params = convert_params(tp)        # one-time, outside the forward

    forward = jax.jit(functools.partial(hoi_residual_attention_block,
                                        n_head=n_head))
    image_out, hoi_out, attn_map = forward(image, hoi, prompt_hint,
                                           parse_attn_mask, params)
    jax.block_until_ready((image_out, hoi_out, attn_map))

    assert image_out.shape == (img_len, bs, d_model)
    assert hoi_out.shape == (hoi_len, bs, d_model)
    assert attn_map.shape == (bs, hoi_len, img_len)
    assert bool(jnp.all(jnp.isfinite(hoi_out)))
    assert bool(jnp.all(jnp.isfinite(attn_map)))

    ref_hoi, ref_attn = _reference_forward(image, hoi, prompt_hint,
                                           parse_attn_mask, tp, n_head=n_head)
    hoi_err = float(jnp.max(jnp.abs(hoi_out - ref_hoi)))
    attn_err = float(jnp.max(jnp.abs(attn_map - ref_attn)))
    assert hoi_err < 1e-2 and attn_err < 1e-2, (hoi_err, attn_err)

    print("KERNEL_OK")
</pallas_src>

<mosaic_0001>
module attributes {stable_mosaic.version = 11 : i64} {
  func.func @_hoi_block_kernel(%arg0: i32, %arg1: memref<2x16x32xf32, #tpu.memory_space<vmem>>, %arg2: memref<2x4x32xf32, #tpu.memory_space<vmem>>, %arg3: memref<2x32xf32, #tpu.memory_space<vmem>>, %arg4: memref<4x6xf32, #tpu.memory_space<vmem>>, %arg5: memref<1x32xf32, #tpu.memory_space<vmem>>, %arg6: memref<1x32xf32, #tpu.memory_space<vmem>>, %arg7: memref<1x32xf32, #tpu.memory_space<vmem>>, %arg8: memref<1x32xf32, #tpu.memory_space<vmem>>, %arg9: memref<1x32xf32, #tpu.memory_space<vmem>>, %arg10: memref<1x32xf32, #tpu.memory_space<vmem>>, %arg11: memref<32x32xbf16, #tpu.memory_space<vmem>>, %arg12: memref<1x32xf32, #tpu.memory_space<vmem>>, %arg13: memref<32x64xbf16, #tpu.memory_space<vmem>>, %arg14: memref<1x64xf32, #tpu.memory_space<vmem>>, %arg15: memref<32x32xbf16, #tpu.memory_space<vmem>>, %arg16: memref<1x32xf32, #tpu.memory_space<vmem>>, %arg17: memref<32x32xbf16, #tpu.memory_space<vmem>>, %arg18: memref<1x32xf32, #tpu.memory_space<vmem>>, %arg19: memref<32x64xbf16, #tpu.memory_space<vmem>>, %arg20: memref<1x64xf32, #tpu.memory_space<vmem>>, %arg21: memref<32x32xbf16, #tpu.memory_space<vmem>>, %arg22: memref<1x32xf32, #tpu.memory_space<vmem>>, %arg23: memref<32x128xbf16, #tpu.memory_space<vmem>>, %arg24: memref<1x128xf32, #tpu.memory_space<vmem>>, %arg25: memref<128x32xbf16, #tpu.memory_space<vmem>>, %arg26: memref<1x32xf32, #tpu.memory_space<vmem>>, %arg27: memref<2x4x32xf32, #tpu.memory_space<vmem>>, %arg28: memref<2x4x128xf32, #tpu.memory_space<vmem>>, %arg29: memref<2x6x32xf32, #tpu.memory_space<vmem>>) attributes {dimension_semantics = [#tpu.dimension_semantics<parallel>], iteration_bounds = array<i64: 1>, scalar_prefetch = 0 : i64, scratch_operands = 1 : i64, tpu.core_type = #tpu.core_type<tc>, window_params = [{transform_indices = @transform_0, window_bounds = array<i64: 2, 16, 32>}, {transform_indices = @transform_1, window_bounds = array<i64: 2, 4, 32>}, {pipeline_mode = #tpu.pipeline_mode<synchronous>, transform_indices = @transform_2, window_bounds = array<i64: 2, 32>}, {pipeline_mode = #tpu.pipeline_mode<synchronous>, transform_indices = @transform_3, window_bounds = array<i64: 4, 6>}, {pipeline_mode = #tpu.pipeline_mode<synchronous>, transform_indices = @transform_4, window_bounds = array<i64: 1, 32>}, {pipeline_mode = #tpu.pipeline_mode<synchronous>, transform_indices = @transform_5, window_bounds = array<i64: 1, 32>}, {pipeline_mode = #tpu.pipeline_mode<synchronous>, transform_indices = @transform_6, window_bounds = array<i64: 1, 32>}, {pipeline_mode = #tpu.pipeline_mode<synchronous>, transform_indices = @transform_7, window_bounds = array<i64: 1, 32>}, {pipeline_mode = #tpu.pipeline_mode<synchronous>, transform_indices = @transform_8, window_bounds = array<i64: 1, 32>}, {pipeline_mode = #tpu.pipeline_mode<synchronous>, transform_indices = @transform_9, window_bounds = array<i64: 1, 32>}, {pipeline_mode = #tpu.pipeline_mode<synchronous>, transform_indices = @transform_10, window_bounds = array<i64: 32, 32>}, {pipeline_mode = #tpu.pipeline_mode<synchronous>, transform_indices = @transform_11, window_bounds = array<i64: 1, 32>}, {pipeline_mode = #tpu.pipeline_mode<synchronous>, transform_indices = @transform_12, window_bounds = array<i64: 32, 64>}, {pipeline_mode = #tpu.pipeline_mode<synchronous>, transform_indices = @transform_13, window_bounds = array<i64: 1, 64>}, {pipeline_mode = #tpu.pipeline_mode<synchronous>, transform_indices = @transform_14, window_bounds = array<i64: 32, 32>}, {pipeline_mode = #tpu.pipeline_mode<synchronous>, transform_indices = @transform_15, window_bounds = array<i64: 1, 32>}, {pipeline_mode = #tpu.pipeline_mode<synchronous>, transform_indices = @transform_16, window_bounds = array<i64: 32, 32>}, {pipeline_mode = #tpu.pipeline_mode<synchronous>, transform_indices = @transform_17, window_bounds = array<i64: 1, 32>}, {pipeline_mode = #tpu.pipeline_mode<synchronous>, transform_indices = @transform_18, window_bounds = array<i64: 32, 64>}, {pipeline_mode = #tpu.pipeline_mode<synchronous>, transform_indices = @transform_19, window_bounds = array<i64: 1, 64>}, {pipeline_mode = #tpu.pipeline_mode<synchronous>, transform_indices = @transform_20, window_bounds = array<i64: 32, 32>}, {pipeline_mode = #tpu.pipeline_mode<synchronous>, transform_indices = @transform_21, window_bounds = array<i64: 1, 32>}, {pipeline_mode = #tpu.pipeline_mode<synchronous>, transform_indices = @transform_22, window_bounds = array<i64: 32, 128>}, {pipeline_mode = #tpu.pipeline_mode<synchronous>, transform_indices = @transform_23, window_bounds = array<i64: 1, 128>}, {pipeline_mode = #tpu.pipeline_mode<synchronous>, transform_indices = @transform_24, window_bounds = array<i64: 128, 32>}, {pipeline_mode = #tpu.pipeline_mode<synchronous>, transform_indices = @transform_25, window_bounds = array<i64: 1, 32>}, {transform_indices = @transform_26, window_bounds = array<i64: 2, 4, 32>}, {transform_indices = @transform_27, window_bounds = array<i64: 2, 4, 128>}]} {
    %c0 = arith.constant 0 : index
    %c0_0 = arith.constant 0 : index
    %c0_1 = arith.constant 0 : index
    %0 = vector.load %arg1[%c0, %c0_0, %c0_1] : memref<2x16x32xf32, #tpu.memory_space<vmem>>, vector<2x16x32xf32>
    %c0_2 = arith.constant 0 : index
    %c0_3 = arith.constant 0 : index
    %c0_4 = arith.constant 0 : index
    %1 = vector.load %arg2[%c0_2, %c0_3, %c0_4] : memref<2x4x32xf32, #tpu.memory_space<vmem>>, vector<2x4x32xf32>
    %cst = arith.constant dense<0.000000e+00> : vector<2x4xf32>
    %2 = vector.multi_reduction <add>, %1, %cst [2] : vector<2x4x32xf32> to vector<2x4xf32>
    %3 = vector.shape_cast %2 : vector<2x4xf32> to vector<2x4x1xf32>
    %cst_5 = arith.constant 3.200000e+01 : f32
    %4 = vector.broadcast %cst_5 : f32 to vector<2x4x1xf32>
    %5 = arith.divf %3, %4 : vector<2x4x1xf32>
    %6 = vector.broadcast %5 : vector<2x4x1xf32> to vector<2x4x32xf32>
    %7 = arith.subf %1, %6 : vector<2x4x32xf32>
    %8 = arith.mulf %7, %7 : vector<2x4x32xf32>
    %cst_6 = arith.constant dense<0.000000e+00> : vector<2x4xf32>
    %9 = vector.multi_reduction <add>, %8, %cst_6 [2] : vector<2x4x32xf32> to vector<2x4xf32>
    %10 = vector.shape_cast %9 : vector<2x4xf32> to vector<2x4x1xf32>
    %cst_7 = arith.constant 3.200000e+01 : f32
    %11 = vector.broadcast %cst_7 : f32 to vector<2x4x1xf32>
    %12 = arith.divf %10, %11 : vector<2x4x1xf32>
    %13 = vector.broadcast %5 : vector<2x4x1xf32> to vector<2x4x32xf32>
    %14 = arith.subf %1, %13 : vector<2x4x32xf32>
    %cst_8 = arith.constant 9.99999974E-6 : f32
    %15 = vector.broadcast %cst_8 : f32 to vector<2x4x1xf32>
    %16 = arith.addf %12, %15 : vector<2x4x1xf32>
    %17 = math.rsqrt %16 : vector<2x4x1xf32>
    %18 = vector.broadcast %17 : vector<2x4x1xf32> to vector<2x4x32xf32>
    %19 = arith.mulf %14, %18 : vector<2x4x32xf32>
    %c0_9 = arith.constant 0 : index
    %c0_10 = arith.constant 0 : index
    %20 = vector.load %arg5[%c0_9, %c0_10] : memref<1x32xf32, #tpu.memory_space<vmem>>, vector<1x32xf32>
    %21 = vector.shape_cast %20 : vector<1x32xf32> to vector<1x1x32xf32>
    %22 = vector.broadcast %21 : vector<1x1x32xf32> to vector<2x4x32xf32>
    %23 = arith.mulf %19, %22 : vector<2x4x32xf32>
    %c0_11 = arith.constant 0 : index
    %c0_12 = arith.constant 0 : index
    %24 = vector.load %arg6[%c0_11, %c0_12] : memref<1x32xf32, #tpu.memory_space<vmem>>, vector<1x32xf32>
    %25 = vector.shape_cast %24 : vector<1x32xf32> to vector<1x1x32xf32>
    %26 = vector.broadcast %25 : vector<1x1x32xf32> to vector<2x4x32xf32>
    %27 = arith.addf %23, %26 : vector<2x4x32xf32>
    %cst_13 = arith.constant dense<0.000000e+00> : vector<2x16xf32>
    %28 = vector.multi_reduction <add>, %0, %cst_13 [2] : vector<2x16x32xf32> to vector<2x16xf32>
    %29 = vector.shape_cast %28 : vector<2x16xf32> to vector<2x16x1xf32>
    %cst_14 = arith.constant 3.200000e+01 : f32
    %30 = vector.broadcast %cst_14 : f32 to vector<2x16x1xf32>
    %31 = arith.divf %29, %30 : vector<2x16x1xf32>
    %32 = vector.broadcast %31 : vector<2x16x1xf32> to vector<2x16x32xf32>
    %33 = arith.subf %0, %32 : vector<2x16x32xf32>
    %34 = arith.mulf %33, %33 : vector<2x16x32xf32>
    %cst_15 = arith.constant dense<0.000000e+00> : vector<2x16xf32>
    %35 = vector.multi_reduction <add>, %34, %cst_15 [2] : vector<2x16x32xf32> to vector<2x16xf32>
    %36 = vector.shape_cast %35 : vector<2x16xf32> to vector<2x16x1xf32>
    %cst_16 = arith.constant 3.200000e+01 : f32
    %37 = vector.broadcast %cst_16 : f32 to vector<2x16x1xf32>
    %38 = arith.divf %36, %37 : vector<2x16x1xf32>
    %39 = vector.broadcast %31 : vector<2x16x1xf32> to vector<2x16x32xf32>
    %40 = arith.subf %0, %39 : vector<2x16x32xf32>
    %cst_17 = arith.constant 9.99999974E-6 : f32
    %41 = vector.broadcast %cst_17 : f32 to vector<2x16x1xf32>
    %42 = arith.addf %38, %41 : vector<2x16x1xf32>
    %43 = math.rsqrt %42 : vector<2x16x1xf32>
    %44 = vector.broadcast %43 : vector<2x16x1xf32> to vector<2x16x32xf32>
    %45 = arith.mulf %40, %44 : vector<2x16x32xf32>
    %c0_18 = arith.constant 0 : index
    %c0_19 = arith.constant 0 : index
    %46 = vector.load %arg5[%c0_18, %c0_19] : memref<1x32xf32, #tpu.memory_space<vmem>>, vector<1x32xf32>
    %47 = vector.shape_cast %46 : vector<1x32xf32> to vector<1x1x32xf32>
    %48 = vector.broadcast %47 : vector<1x1x32xf32> to vector<2x16x32xf32>
    %49 = arith.mulf %45, %48 : vector<2x16x32xf32>
    %c0_20 = arith.constant 0 : index
    %c0_21 = arith.constant 0 : index
    %50 = vector.load %arg6[%c0_20, %c0_21] : memref<1x32xf32, #tpu.memory_space<vmem>>, vector<1x32xf32>
    %51 = vector.shape_cast %50 : vector<1x32xf32> to vector<1x1x32xf32>
    %52 = vector.broadcast %51 : vector<1x1x32xf32> to vector<2x16x32xf32>
    %53 = arith.addf %49, %52 : vector<2x16x32xf32>
    %54 = vector.shape_cast %27 : vector<2x4x32xf32> to vector<8x32xf32>
    %55 = arith.truncf %54 : vector<8x32xf32> to vector<8x32xbf16>
    %c0_22 = arith.constant 0 : index
    %c0_23 = arith.constant 0 : index
    %56 = vector.load %arg11[%c0_22, %c0_23] : memref<32x32xbf16, #tpu.memory_space<vmem>>, vector<32x32xbf16>
    %cst_24 = arith.constant dense<0.000000e+00> : vector<8x32xf32>
    %57 = tpu.matmul %55, %56, %cst_24 {dimension_numbers = #tpu.dot_dimension_numbers<[1], [0], [0], [1], [0, 0, 1, 1], [], []>} : vector<8x32xbf16>, vector<32x32xbf16>, vector<8x32xf32> -> vector<8x32xf32>
    %c0_25 = arith.constant 0 : index
    %c0_26 = arith.constant 0 : index
    %58 = vector.load %arg12[%c0_25, %c0_26] : memref<1x32xf32, #tpu.memory_space<vmem>>, vector<1x32xf32>
    %59 = vector.broadcast %58 : vector<1x32xf32> to vector<8x32xf32>
    %60 = arith.addf %57, %59 : vector<8x32xf32>
    %61 = vector.shape_cast %53 : vector<2x16x32xf32> to vector<32x32xf32>
    %62 = arith.truncf %61 : vector<32x32xf32> to vector<32x32xbf16>
    %c0_27 = arith.constant 0 : index
    %c0_28 = arith.constant 0 : index
    %63 = vector.load %arg13[%c0_27, %c0_28] : memref<32x64xbf16, #tpu.memory_space<vmem>>, vector<32x64xbf16>
    %cst_29 = arith.constant dense<0.000000e+00> : vector<32x64xf32>
    %64 = tpu.matmul %62, %63, %cst_29 {dimension_numbers = #tpu.dot_dimension_numbers<[1], [0], [0], [1], [0, 0, 1, 1], [], []>} : vector<32x32xbf16>, vector<32x64xbf16>, vector<32x64xf32> -> vector<32x64xf32>
    %c0_30 = arith.constant 0 : index
    %c0_31 = arith.constant 0 : index
    %65 = vector.load %arg14[%c0_30, %c0_31] : memref<1x64xf32, #tpu.memory_space<vmem>>, vector<1x64xf32>
    %66 = vector.broadcast %65 : vector<1x64xf32> to vector<32x64xf32>
    %67 = arith.addf %64, %66 : vector<32x64xf32>
    %68 = vector.shape_cast %60 : vector<8x32xf32> to vector<2x4x32xf32>
    %69 = vector.extract_strided_slice %67 {offsets = [0, 0], sizes = [32, 32], strides = [1, 1]} : vector<32x64xf32> to vector<32x32xf32>
    %70 = vector.shape_cast %69 : vector<32x32xf32> to vector<2x16x32xf32>
    %71 = vector.extract_strided_slice %67 {offsets = [0, 32], sizes = [32, 32], strides = [1, 1]} : vector<32x64xf32> to vector<32x32xf32>
    %72 = vector.shape_cast %71 : vector<32x32xf32> to vector<2x16x32xf32>
    %73 = vector.extract_strided_slice %68 {offsets = [0, 0, 0], sizes = [2, 4, 8], strides = [1, 1, 1]} : vector<2x4x32xf32> to vector<2x4x8xf32>
    %74 = arith.truncf %73 : vector<2x4x8xf32> to vector<2x4x8xbf16>
    %75 = vector.extract_strided_slice %70 {offsets = [0, 0, 0], sizes = [2, 16, 8], strides = [1, 1, 1]} : vector<2x16x32xf32> to vector<2x16x8xf32>
    %76 = arith.truncf %75 : vector<2x16x8xf32> to vector<2x16x8xbf16>
    %77 = vector.extract_strided_slice %72 {offsets = [0, 0, 0], sizes = [2, 16, 8], strides = [1, 1, 1]} : vector<2x16x32xf32> to vector<2x16x8xf32>
    %78 = arith.truncf %77 : vector<2x16x8xf32> to vector<2x16x8xbf16>
    "tpu.trace_start"() <{level = 10 : i32, message = "bqe,bke->bqk"}> : () -> ()
    %cst_32 = arith.constant dense<0.000000e+00> : vector<2x4x16xf32>
    %79 = tpu.matmul %74, %76, %cst_32 {dimension_numbers = #tpu.dot_dimension_numbers<[2], [2], [1], [1], [0, 0, 0, 1, 1, 1], [0], [0]>} : vector<2x4x8xbf16>, vector<2x16x8xbf16>, vector<2x4x16xf32> -> vector<2x4x16xf32>
    "tpu.trace_stop"() : () -> ()
    %cst_33 = arith.constant 0.353553385 : f32
    %80 = vector.broadcast %cst_33 : f32 to vector<2x4x16xf32>
    %81 = arith.mulf %79, %80 : vector<2x4x16xf32>
    %cst_34 = arith.constant dense<0xFF800000> : vector<2x4xf32>
    %82 = vector.multi_reduction <maximumf>, %81, %cst_34 [2] : vector<2x4x16xf32> to vector<2x4xf32>
    %83 = vector.shape_cast %82 : vector<2x4xf32> to vector<2x4x1xf32>
    %84 = vector.broadcast %83 : vector<2x4x1xf32> to vector<2x4x16xf32>
    %85 = arith.subf %81, %84 : vector<2x4x16xf32>
    %86 = math.exp %85 : vector<2x4x16xf32>
    %cst_35 = arith.constant dense<0.000000e+00> : vector<2x4xf32>
    %87 = vector.multi_reduction <add>, %86, %cst_35 [2] : vector<2x4x16xf32> to vector<2x4xf32>
    %88 = vector.shape_cast %87 : vector<2x4xf32> to vector<2x4x1xf32>
    %89 = tpu.reciprocal %88 {approx = true} : vector<2x4x1xf32> -> vector<2x4x1xf32>
    %90 = vector.broadcast %89 : vector<2x4x1xf32> to vector<2x4x16xf32>
    %91 = arith.mulf %86, %90 : vector<2x4x16xf32>
    %92 = arith.truncf %91 : vector<2x4x16xf32> to vector<2x4x16xbf16>
    "tpu.trace_start"() <{level = 10 : i32, message = "bqk,bke->bqe"}> : () -> ()
    %cst_36 = arith.constant dense<0.000000e+00> : vector<2x4x8xf32>
    %93 = tpu.matmul %92, %78, %cst_36 {dimension_numbers = #tpu.dot_dimension_numbers<[2], [1], [1], [2], [0, 0, 0, 1, 1, 2], [0], [0]>} : vector<2x4x16xbf16>, vector<2x16x8xbf16>, vector<2x4x8xf32> -> vector<2x4x8xf32>
    "tpu.trace_stop"() : () -> ()
    %94 = vector.extract_strided_slice %68 {offsets = [0, 0, 8], sizes = [2, 4, 8], strides = [1, 1, 1]} : vector<2x4x32xf32> to vector<2x4x8xf32>
    %95 = arith.truncf %94 : vector<2x4x8xf32> to vector<2x4x8xbf16>
    %96 = vector.extract_strided_slice %70 {offsets = [0, 0, 8], sizes = [2, 16, 8], strides = [1, 1, 1]} : vector<2x16x32xf32> to vector<2x16x8xf32>
    %97 = arith.truncf %96 : vector<2x16x8xf32> to vector<2x16x8xbf16>
    %98 = vector.extract_strided_slice %72 {offsets = [0, 0, 8], sizes = [2, 16, 8], strides = [1, 1, 1]} : vector<2x16x32xf32> to vector<2x16x8xf32>
    %99 = arith.truncf %98 : vector<2x16x8xf32> to vector<2x16x8xbf16>
    "tpu.trace_start"() <{level = 10 : i32, message = "bqe,bke->bqk"}> : () -> ()
    %cst_37 = arith.constant dense<0.000000e+00> : vector<2x4x16xf32>
    %100 = tpu.matmul %95, %97, %cst_37 {dimension_numbers = #tpu.dot_dimension_numbers<[2], [2], [1], [1], [0, 0, 0, 1, 1, 1], [0], [0]>} : vector<2x4x8xbf16>, vector<2x16x8xbf16>, vector<2x4x16xf32> -> vector<2x4x16xf32>
    "tpu.trace_stop"() : () -> ()
    %cst_38 = arith.constant 0.353553385 : f32
    %101 = vector.broadcast %cst_38 : f32 to vector<2x4x16xf32>
    %102 = arith.mulf %100, %101 : vector<2x4x16xf32>
    %cst_39 = arith.constant dense<0xFF800000> : vector<2x4xf32>
    %103 = vector.multi_reduction <maximumf>, %102, %cst_39 [2] : vector<2x4x16xf32> to vector<2x4xf32>
    %104 = vector.shape_cast %103 : vector<2x4xf32> to vector<2x4x1xf32>
    %105 = vector.broadcast %104 : vector<2x4x1xf32> to vector<2x4x16xf32>
    %106 = arith.subf %102, %105 : vector<2x4x16xf32>
    %107 = math.exp %106 : vector<2x4x16xf32>
    %cst_40 = arith.constant dense<0.000000e+00> : vector<2x4xf32>
    %108 = vector.multi_reduction <add>, %107, %cst_40 [2] : vector<2x4x16xf32> to vector<2x4xf32>
    %109 = vector.shape_cast %108 : vector<2x4xf32> to vector<2x4x1xf32>
    %110 = tpu.reciprocal %109 {approx = true} : vector<2x4x1xf32> -> vector<2x4x1xf32>
    %111 = vector.broadcast %110 : vector<2x4x1xf32> to vector<2x4x16xf32>
    %112 = arith.mulf %107, %111 : vector<2x4x16xf32>
    %113 = arith.truncf %112 : vector<2x4x16xf32> to vector<2x4x16xbf16>
    "tpu.trace_start"() <{level = 10 : i32, message = "bqk,bke->bqe"}> : () -> ()
    %cst_41 = arith.constant dense<0.000000e+00> : vector<2x4x8xf32>
    %114 = tpu.matmul %113, %99, %cst_41 {dimension_numbers = #tpu.dot_dimension_numbers<[2], [1], [1], [2], [0, 0, 0, 1, 1, 2], [0], [0]>} : vector<2x4x16xbf16>, vector<2x16x8xbf16>, vector<2x4x8xf32> -> vector<2x4x8xf32>
    "tpu.trace_stop"() : () -> ()
    %115 = arith.addf %91, %112 : vector<2x4x16xf32>
    %116 = vector.extract_strided_slice %68 {offsets = [0, 0, 16], sizes = [2, 4, 8], strides = [1, 1, 1]} : vector<2x4x32xf32> to vector<2x4x8xf32>
    %117 = arith.truncf %116 : vector<2x4x8xf32> to vector<2x4x8xbf16>
    %118 = vector.extract_strided_slice %70 {offsets = [0, 0, 16], sizes = [2, 16, 8], strides = [1, 1, 1]} : vector<2x16x32xf32> to vector<2x16x8xf32>
    %119 = arith.truncf %118 : vector<2x16x8xf32> to vector<2x16x8xbf16>
    %120 = vector.extract_strided_slice %72 {offsets = [0, 0, 16], sizes = [2, 16, 8], strides = [1, 1, 1]} : vector<2x16x32xf32> to vector<2x16x8xf32>
    %121 = arith.truncf %120 : vector<2x16x8xf32> to vector<2x16x8xbf16>
    "tpu.trace_start"() <{level = 10 : i32, message = "bqe,bke->bqk"}> : () -> ()
    %cst_42 = arith.constant dense<0.000000e+00> : vector<2x4x16xf32>
    %122 = tpu.matmul %117, %119, %cst_42 {dimension_numbers = #tpu.dot_dimension_numbers<[2], [2], [1], [1], [0, 0, 0, 1, 1, 1], [0], [0]>} : vector<2x4x8xbf16>, vector<2x16x8xbf16>, vector<2x4x16xf32> -> vector<2x4x16xf32>
    "tpu.trace_stop"() : () -> ()
    %cst_43 = arith.constant 0.353553385 : f32
    %123 = vector.broadcast %cst_43 : f32 to vector<2x4x16xf32>
    %124 = arith.mulf %122, %123 : vector<2x4x16xf32>
    %cst_44 = arith.constant dense<0xFF800000> : vector<2x4xf32>
    %125 = vector.multi_reduction <maximumf>, %124, %cst_44 [2] : vector<2x4x16xf32> to vector<2x4xf32>
    %126 = vector.shape_cast %125 : vector<2x4xf32> to vector<2x4x1xf32>
    %127 = vector.broadcast %126 : vector<2x4x1xf32> to vector<2x4x16xf32>
    %128 = arith.subf %124, %127 : vector<2x4x16xf32>
    %129 = math.exp %128 : vector<2x4x16xf32>
    %cst_45 = arith.constant dense<0.000000e+00> : vector<2x4xf32>
    %130 = vector.multi_reduction <add>, %129, %cst_45 [2] : vector<2x4x16xf32> to vector<2x4xf32>
    %131 = vector.shape_cast %130 : vector<2x4xf32> to vector<2x4x1xf32>
    %132 = tpu.reciprocal %131 {approx = true} : vector<2x4x1xf32> -> vector<2x4x1xf32>
    %133 = vector.broadcast %132 : vector<2x4x1xf32> to vector<2x4x16xf32>
    %134 = arith.mulf %129, %133 : vector<2x4x16xf32>
    %135 = arith.truncf %134 : vector<2x4x16xf32> to vector<2x4x16xbf16>
    "tpu.trace_start"() <{level = 10 : i32, message = "bqk,bke->bqe"}> : () -> ()
    %cst_46 = arith.constant dense<0.000000e+00> : vector<2x4x8xf32>
    %136 = tpu.matmul %135, %121, %cst_46 {dimension_numbers = #tpu.dot_dimension_numbers<[2], [1], [1], [2], [0, 0, 0, 1, 1, 2], [0], [0]>} : vector<2x4x16xbf16>, vector<2x16x8xbf16>, vector<2x4x8xf32> -> vector<2x4x8xf32>
    "tpu.trace_stop"() : () -> ()
    %137 = arith.addf %115, %134 : vector<2x4x16xf32>
    %138 = vector.extract_strided_slice %68 {offsets = [0, 0, 24], sizes = [2, 4, 8], strides = [1, 1, 1]} : vector<2x4x32xf32> to vector<2x4x8xf32>
    %139 = arith.truncf %138 : vector<2x4x8xf32> to vector<2x4x8xbf16>
    %140 = vector.extract_strided_slice %70 {offsets = [0, 0, 24], sizes = [2, 16, 8], strides = [1, 1, 1]} : vector<2x16x32xf32> to vector<2x16x8xf32>
    %141 = arith.truncf %140 : vector<2x16x8xf32> to vector<2x16x8xbf16>
    %142 = vector.extract_strided_slice %72 {offsets = [0, 0, 24], sizes = [2, 16, 8], strides = [1, 1, 1]} : vector<2x16x32xf32> to vector<2x16x8xf32>
    %143 = arith.truncf %142 : vector<2x16x8xf32> to vector<2x16x8xbf16>
    "tpu.trace_start"() <{level = 10 : i32, message = "bqe,bke->bqk"}> : () -> ()
    %cst_47 = arith.constant dense<0.000000e+00> : vector<2x4x16xf32>
    %144 = tpu.matmul %139, %141, %cst_47 {dimension_numbers = #tpu.dot_dimension_numbers<[2], [2], [1], [1], [0, 0, 0, 1, 1, 1], [0], [0]>} : vector<2x4x8xbf16>, vector<2x16x8xbf16>, vector<2x4x16xf32> -> vector<2x4x16xf32>
    "tpu.trace_stop"() : () -> ()
    %cst_48 = arith.constant 0.353553385 : f32
    %145 = vector.broadcast %cst_48 : f32 to vector<2x4x16xf32>
    %146 = arith.mulf %144, %145 : vector<2x4x16xf32>
    %cst_49 = arith.constant dense<0xFF800000> : vector<2x4xf32>
    %147 = vector.multi_reduction <maximumf>, %146, %cst_49 [2] : vector<2x4x16xf32> to vector<2x4xf32>
    %148 = vector.shape_cast %147 : vector<2x4xf32> to vector<2x4x1xf32>
    %149 = vector.broadcast %148 : vector<2x4x1xf32> to vector<2x4x16xf32>
    %150 = arith.subf %146, %149 : vector<2x4x16xf32>
    %151 = math.exp %150 : vector<2x4x16xf32>
    %cst_50 = arith.constant dense<0.000000e+00> : vector<2x4xf32>
    %152 = vector.multi_reduction <add>, %151, %cst_50 [2] : vector<2x4x16xf32> to vector<2x4xf32>
    %153 = vector.shape_cast %152 : vector<2x4xf32> to vector<2x4x1xf32>
    %154 = tpu.reciprocal %153 {approx = true} : vector<2x4x1xf32> -> vector<2x4x1xf32>
    %155 = vector.broadcast %154 : vector<2x4x1xf32> to vector<2x4x16xf32>
    %156 = arith.mulf %151, %155 : vector<2x4x16xf32>
    %157 = arith.truncf %156 : vector<2x4x16xf32> to vector<2x4x16xbf16>
    "tpu.trace_start"() <{level = 10 : i32, message = "bqk,bke->bqe"}> : () -> ()
    %cst_51 = arith.constant dense<0.000000e+00> : vector<2x4x8xf32>
    %158 = tpu.matmul %157, %143, %cst_51 {dimension_numbers = #tpu.dot_dimension_numbers<[2], [1], [1], [2], [0, 0, 0, 1, 1, 2], [0], [0]>} : vector<2x4x16xbf16>, vector<2x16x8xbf16>, vector<2x4x8xf32> -> vector<2x4x8xf32>
    "tpu.trace_stop"() : () -> ()
    %159 = arith.addf %137, %156 : vector<2x4x16xf32>
    %160 = tpu.concatenate %93, %114, %136, %158 in 2 : vector<2x4x8xf32>, vector<2x4x8xf32>, vector<2x4x8xf32>, vector<2x4x8xf32> -> vector<2x4x32xf32>
    %161 = vector.shape_cast %160 : vector<2x4x32xf32> to vector<8x32xf32>
    %162 = arith.truncf %161 : vector<8x32xf32> to vector<8x32xbf16>
    %c0_52 = arith.constant 0 : index
    %c0_53 = arith.constant 0 : index
    %163 = vector.load %arg15[%c0_52, %c0_53] : memref<32x32xbf16, #tpu.memory_space<vmem>>, vector<32x32xbf16>
    %cst_54 = arith.constant dense<0.000000e+00> : vector<8x32xf32>
    %164 = tpu.matmul %162, %163, %cst_54 {dimension_numbers = #tpu.dot_dimension_numbers<[1], [0], [0], [1], [0, 0, 1, 1], [], []>} : vector<8x32xbf16>, vector<32x32xbf16>, vector<8x32xf32> -> vector<8x32xf32>
    %c0_55 = arith.constant 0 : index
    %c0_56 = arith.constant 0 : index
    %165 = vector.load %arg16[%c0_55, %c0_56] : memref<1x32xf32, #tpu.memory_space<vmem>>, vector<1x32xf32>
    %166 = vector.broadcast %165 : vector<1x32xf32> to vector<8x32xf32>
    %167 = arith.addf %164, %166 : vector<8x32xf32>
    %cst_57 = arith.constant 2.500000e-01 : f32
    %168 = vector.broadcast %cst_57 : f32 to vector<2x4x16xf32>
    %169 = arith.mulf %159, %168 : vector<2x4x16xf32>
    %170 = vector.shape_cast %167 : vector<8x32xf32> to vector<2x4x32xf32>
    %171 = arith.addf %1, %170 : vector<2x4x32xf32>
    %cst_58 = arith.constant dense<0.000000e+00> : vector<2x4xf32>
    %172 = vector.multi_reduction <add>, %171, %cst_58 [2] : vector<2x4x32xf32> to vector<2x4xf32>
    %173 = vector.shape_cast %172 : vector<2x4xf32> to vector<2x4x1xf32>
    %cst_59 = arith.constant 3.200000e+01 : f32
    %174 = vector.broadcast %cst_59 : f32 to vector<2x4x1xf32>
    %175 = arith.divf %173, %174 : vector<2x4x1xf32>
    %176 = vector.broadcast %175 : vector<2x4x1xf32> to vector<2x4x32xf32>
    %177 = arith.subf %171, %176 : vector<2x4x32xf32>
    %178 = arith.mulf %177, %177 : vector<2x4x32xf32>
    %cst_60 = arith.constant dense<0.000000e+00> : vector<2x4xf32>
    %179 = vector.multi_reduction <add>, %178, %cst_60 [2] : vector<2x4x32xf32> to vector<2x4xf32>
    %180 = vector.shape_cast %179 : vector<2x4xf32> to vector<2x4x1xf32>
    %cst_61 = arith.constant 3.200000e+01 : f32
    %181 = vector.broadcast %cst_61 : f32 to vector<2x4x1xf32>
    %182 = arith.divf %180, %181 : vector<2x4x1xf32>
    %183 = vector.broadcast %175 : vector<2x4x1xf32> to vector<2x4x32xf32>
    %184 = arith.subf %171, %183 : vector<2x4x32xf32>
    %cst_62 = arith.constant 9.99999974E-6 : f32
    %185 = vector.broadcast %cst_62 : f32 to vector<2x4x1xf32>
    %186 = arith.addf %182, %185 : vector<2x4x1xf32>
    %187 = math.rsqrt %186 : vector<2x4x1xf32>
    %188 = vector.broadcast %187 : vector<2x4x1xf32> to vector<2x4x32xf32>
    %189 = arith.mulf %184, %188 : vector<2x4x32xf32>
    %c0_63 = arith.constant 0 : index
    %c0_64 = arith.constant 0 : index
    %190 = vector.load %arg7[%c0_63, %c0_64] : memref<1x32xf32, #tpu.memory_space<vmem>>, vector<1x32xf32>
    %191 = vector.shape_cast %190 : vector<1x32xf32> to vector<1x1x32xf32>
    %192 = vector.broadcast %191 : vector<1x1x32xf32> to vector<2x4x32xf32>
    %193 = arith.mulf %189, %192 : vector<2x4x32xf32>
    %c0_65 = arith.constant 0 : index
    %c0_66 = arith.constant 0 : index
    %194 = vector.load %arg8[%c0_65, %c0_66] : memref<1x32xf32, #tpu.memory_space<vmem>>, vector<1x32xf32>
    %195 = vector.shape_cast %194 : vector<1x32xf32> to vector<1x1x32xf32>
    %196 = vector.broadcast %195 : vector<1x1x32xf32> to vector<2x4x32xf32>
    %197 = arith.addf %193, %196 : vector<2x4x32xf32>
    %198 = vector.shape_cast %197 : vector<2x4x32xf32> to vector<8x32xf32>
    %199 = arith.truncf %198 : vector<8x32xf32> to vector<8x32xbf16>
    %c0_67 = arith.constant 0 : index
    %c0_68 = arith.constant 0 : index
    %200 = vector.load %arg23[%c0_67, %c0_68] : memref<32x128xbf16, #tpu.memory_space<vmem>>, vector<32x128xbf16>
    %cst_69 = arith.constant dense<0.000000e+00> : vector<8x128xf32>
    %201 = tpu.matmul %199, %200, %cst_69 {dimension_numbers = #tpu.dot_dimension_numbers<[1], [0], [0], [1], [0, 0, 1, 1], [], []>} : vector<8x32xbf16>, vector<32x128xbf16>, vector<8x128xf32> -> vector<8x128xf32>
    %c0_70 = arith.constant 0 : index
    %c0_71 = arith.constant 0 : index
    %202 = vector.load %arg24[%c0_70, %c0_71] : memref<1x128xf32, #tpu.memory_space<vmem>>, vector<1x128xf32>
    %203 = vector.broadcast %202 : vector<1x128xf32> to vector<8x128xf32>
    %204 = arith.addf %201, %203 : vector<8x128xf32>
    %cst_72 = arith.constant 1.702000e+00 : f32
    %205 = vector.broadcast %cst_72 : f32 to vector<8x128xf32>
    %206 = arith.mulf %205, %204 : vector<8x128xf32>
    %207 = arith.negf %206 : vector<8x128xf32>
    %208 = math.exp %207 : vector<8x128xf32>
    %cst_73 = arith.constant 1.000000e+00 : f32
    %209 = vector.broadcast %cst_73 : f32 to vector<8x128xf32>
    %210 = arith.addf %209, %208 : vector<8x128xf32>
    %211 = arith.divf %209, %210 : vector<8x128xf32>
    %212 = arith.mulf %204, %211 : vector<8x128xf32>
    %213 = arith.truncf %212 : vector<8x128xf32> to vector<8x128xbf16>
    %c0_74 = arith.constant 0 : index
    %c0_75 = arith.constant 0 : index
    %214 = vector.load %arg25[%c0_74, %c0_75] : memref<128x32xbf16, #tpu.memory_space<vmem>>, vector<128x32xbf16>
    %cst_76 = arith.constant dense<0.000000e+00> : vector<8x32xf32>
    %215 = tpu.matmul %213, %214, %cst_76 {dimension_numbers = #tpu.dot_dimension_numbers<[1], [0], [0], [1], [0, 0, 1, 1], [], []>} : vector<8x128xbf16>, vector<128x32xbf16>, vector<8x32xf32> -> vector<8x32xf32>
    %c0_77 = arith.constant 0 : index
    %c0_78 = arith.constant 0 : index
    %216 = vector.load %arg26[%c0_77, %c0_78] : memref<1x32xf32, #tpu.memory_space<vmem>>, vector<1x32xf32>
    %217 = vector.broadcast %216 : vector<1x32xf32> to vector<8x32xf32>
    %218 = arith.addf %215, %217 : vector<8x32xf32>
    %219 = vector.shape_cast %218 : vector<8x32xf32> to vector<2x4x32xf32>
    %220 = arith.addf %171, %219 : vector<2x4x32xf32>
    %c0_79 = arith.constant 0 : index
    %c0_80 = arith.constant 0 : index
    %c0_81 = arith.constant 0 : index
    %221 = vector.load %arg29[%c0_79, %c0_80, %c0_81] : memref<2x6x32xf32, #tpu.memory_space<vmem>>, vector<2x4x32xf32>
    tpu.vector_store %arg29[%c0_79, %c0_80, %c0_81], %220 {strides = array<i32>} : memref<2x6x32xf32, #tpu.memory_space<vmem>>, vector<2x4x32xf32>,
    %c0_82 = arith.constant 0 : index
    %c0_83 = arith.constant 0 : index
    %222 = vector.load %arg3[%c0_82, %c0_83] : memref<2x32xf32, #tpu.memory_space<vmem>>, vector<2x32xf32>
    %223 = vector.shape_cast %222 : vector<2x32xf32> to vector<1x2x32xf32>
    %224 = vector.broadcast %223 : vector<1x2x32xf32> to vector<2x2x32xf32>
    %c0_84 = arith.constant 0 : index
    %c4 = arith.constant 4 : index
    %c0_85 = arith.constant 0 : index
    %225 = vector.load %arg29[%c0_84, %c4, %c0_85] : memref<2x6x32xf32, #tpu.memory_space<vmem>>, vector<2x2x32xf32>
    tpu.vector_store %arg29[%c0_84, %c4, %c0_85], %224 {strides = array<i32>} : memref<2x6x32xf32, #tpu.memory_space<vmem>>, vector<2x2x32xf32>,
    %c0_86 = arith.constant 0 : index
    %c0_87 = arith.constant 0 : index
    %c0_88 = arith.constant 0 : index
    %226 = vector.load %arg29[%c0_86, %c0_87, %c0_88] : memref<2x6x32xf32, #tpu.memory_space<vmem>>, vector<2x6x32xf32>
    %cst_89 = arith.constant dense<0.000000e+00> : vector<2x6xf32>
    %227 = vector.multi_reduction <add>, %226, %cst_89 [2] : vector<2x6x32xf32> to vector<2x6xf32>
    %228 = vector.shape_cast %227 : vector<2x6xf32> to vector<2x6x1xf32>
    %cst_90 = arith.constant 3.200000e+01 : f32
    %229 = vector.broadcast %cst_90 : f32 to vector<2x6x1xf32>
    %230 = arith.divf %228, %229 : vector<2x6x1xf32>
    %231 = vector.broadcast %230 : vector<2x6x1xf32> to vector<2x6x32xf32>
    %232 = arith.subf %226, %231 : vector<2x6x32xf32>
    %233 = arith.mulf %232, %232 : vector<2x6x32xf32>
    %cst_91 = arith.constant dense<0.000000e+00> : vector<2x6xf32>
    %234 = vector.multi_reduction <add>, %233, %cst_91 [2] : vector<2x6x32xf32> to vector<2x6xf32>
    %235 = vector.shape_cast %234 : vector<2x6xf32> to vector<2x6x1xf32>
    %cst_92 = arith.constant 3.200000e+01 : f32
    %236 = vector.broadcast %cst_92 : f32 to vector<2x6x1xf32>
    %237 = arith.divf %235, %236 : vector<2x6x1xf32>
    %238 = vector.broadcast %230 : vector<2x6x1xf32> to vector<2x6x32xf32>
    %239 = arith.subf %226, %238 : vector<2x6x32xf32>
    %cst_93 = arith.constant 9.99999974E-6 : f32
    %240 = vector.broadcast %cst_93 : f32 to vector<2x6x1xf32>
    %241 = arith.addf %237, %240 : vector<2x6x1xf32>
    %242 = math.rsqrt %241 : vector<2x6x1xf32>
    %243 = vector.broadcast %242 : vector<2x6x1xf32> to vector<2x6x32xf32>
    %244 = arith.mulf %239, %243 : vector<2x6x32xf32>
    %c0_94 = arith.constant 0 : index
    %c0_95 = arith.constant 0 : index
    %245 = vector.load %arg9[%c0_94, %c0_95] : memref<1x32xf32, #tpu.memory_space<vmem>>, vector<1x32xf32>
    %246 = vector.shape_cast %245 : vector<1x32xf32> to vector<1x1x32xf32>
    %247 = vector.broadcast %246 : vector<1x1x32xf32> to vector<2x6x32xf32>
    %248 = arith.mulf %244, %247 : vector<2x6x32xf32>
    %c0_96 = arith.constant 0 : index
    %c0_97 = arith.constant 0 : index
    %249 = vector.load %arg10[%c0_96, %c0_97] : memref<1x32xf32, #tpu.memory_space<vmem>>, vector<1x32xf32>
    %250 = vector.shape_cast %249 : vector<1x32xf32> to vector<1x1x32xf32>
    %251 = vector.broadcast %250 : vector<1x1x32xf32> to vector<2x6x32xf32>
    %252 = arith.addf %248, %251 : vector<2x6x32xf32>
    %253 = vector.extract_strided_slice %252 {offsets = [0, 0, 0], sizes = [2, 4, 32], strides = [1, 1, 1]} : vector<2x6x32xf32> to vector<2x4x32xf32>
    %c0_98 = arith.constant 0 : index
    %c0_99 = arith.constant 0 : index
    %254 = vector.load %arg4[%c0_98, %c0_99] : memref<4x6xf32, #tpu.memory_space<vmem>>, vector<4x6xf32>
    %255 = vector.shape_cast %253 : vector<2x4x32xf32> to vector<8x32xf32>
    %256 = arith.truncf %255 : vector<8x32xf32> to vector<8x32xbf16>
    %c0_100 = arith.constant 0 : index
    %c0_101 = arith.constant 0 : index
    %257 = vector.load %arg17[%c0_100, %c0_101] : memref<32x32xbf16, #tpu.memory_space<vmem>>, vector<32x32xbf16>
    %cst_102 = arith.constant dense<0.000000e+00> : vector<8x32xf32>
    %258 = tpu.matmul %256, %257, %cst_102 {dimension_numbers = #tpu.dot_dimension_numbers<[1], [0], [0], [1], [0, 0, 1, 1], [], []>} : vector<8x32xbf16>, vector<32x32xbf16>, vector<8x32xf32> -> vector<8x32xf32>
    %c0_103 = arith.constant 0 : index
    %c0_104 = arith.constant 0 : index
    %259 = vector.load %arg18[%c0_103, %c0_104] : memref<1x32xf32, #tpu.memory_space<vmem>>, vector<1x32xf32>
    %260 = vector.broadcast %259 : vector<1x32xf32> to vector<8x32xf32>
    %261 = arith.addf %258, %260 : vector<8x32xf32>
    %262 = vector.shape_cast %252 : vector<2x6x32xf32> to vector<12x32xf32>
    %263 = arith.truncf %262 : vector<12x32xf32> to vector<12x32xbf16>
    %c0_105 = arith.constant 0 : index
    %c0_106 = arith.constant 0 : index
    %264 = vector.load %arg19[%c0_105, %c0_106] : memref<32x64xbf16, #tpu.memory_space<vmem>>, vector<32x64xbf16>
    %cst_107 = arith.constant dense<0.000000e+00> : vector<12x64xf32>
    %265 = tpu.matmul %263, %264, %cst_107 {dimension_numbers = #tpu.dot_dimension_numbers<[1], [0], [0], [1], [0, 0, 1, 1], [], []>} : vector<12x32xbf16>, vector<32x64xbf16>, vector<12x64xf32> -> vector<12x64xf32>
    %c0_108 = arith.constant 0 : index
    %c0_109 = arith.constant 0 : index
    %266 = vector.load %arg20[%c0_108, %c0_109] : memref<1x64xf32, #tpu.memory_space<vmem>>, vector<1x64xf32>
    %267 = vector.broadcast %266 : vector<1x64xf32> to vector<12x64xf32>
    %268 = arith.addf %265, %267 : vector<12x64xf32>
    %269 = vector.shape_cast %261 : vector<8x32xf32> to vector<2x4x32xf32>
    %270 = vector.extract_strided_slice %268 {offsets = [0, 0], sizes = [12, 32], strides = [1, 1]} : vector<12x64xf32> to vector<12x32xf32>
    %271 = vector.shape_cast %270 : vector<12x32xf32> to vector<2x6x32xf32>
    %272 = vector.extract_strided_slice %268 {offsets = [0, 32], sizes = [12, 32], strides = [1, 1]} : vector<12x64xf32> to vector<12x32xf32>
    %273 = vector.shape_cast %272 : vector<12x32xf32> to vector<2x6x32xf32>
    %274 = vector.extract_strided_slice %269 {offsets = [0, 0, 0], sizes = [2, 4, 8], strides = [1, 1, 1]} : vector<2x4x32xf32> to vector<2x4x8xf32>
    %275 = arith.truncf %274 : vector<2x4x8xf32> to vector<2x4x8xbf16>
    %276 = vector.extract_strided_slice %271 {offsets = [0, 0, 0], sizes = [2, 6, 8], strides = [1, 1, 1]} : vector<2x6x32xf32> to vector<2x6x8xf32>
    %277 = arith.truncf %276 : vector<2x6x8xf32> to vector<2x6x8xbf16>
    %278 = vector.extract_strided_slice %273 {offsets = [0, 0, 0], sizes = [2, 6, 8], strides = [1, 1, 1]} : vector<2x6x32xf32> to vector<2x6x8xf32>
    %279 = arith.truncf %278 : vector<2x6x8xf32> to vector<2x6x8xbf16>
    "tpu.trace_start"() <{level = 10 : i32, message = "bqe,bke->bqk"}> : () -> ()
    %cst_110 = arith.constant dense<0.000000e+00> : vector<2x4x6xf32>
    %280 = tpu.matmul %275, %277, %cst_110 {dimension_numbers = #tpu.dot_dimension_numbers<[2], [2], [1], [1], [0, 0, 0, 1, 1, 1], [0], [0]>} : vector<2x4x8xbf16>, vector<2x6x8xbf16>, vector<2x4x6xf32> -> vector<2x4x6xf32>
    "tpu.trace_stop"() : () -> ()
    %cst_111 = arith.constant 0.353553385 : f32
    %281 = vector.broadcast %cst_111 : f32 to vector<2x4x6xf32>
    %282 = arith.mulf %280, %281 : vector<2x4x6xf32>
    %283 = vector.shape_cast %254 : vector<4x6xf32> to vector<1x4x6xf32>
    %284 = vector.broadcast %283 : vector<1x4x6xf32> to vector<2x4x6xf32>
    %285 = arith.addf %282, %284 : vector<2x4x6xf32>
    %cst_112 = arith.constant dense<0xFF800000> : vector<2x4xf32>
    %286 = vector.multi_reduction <maximumf>, %285, %cst_112 [2] : vector<2x4x6xf32> to vector<2x4xf32>
    %287 = vector.shape_cast %286 : vector<2x4xf32> to vector<2x4x1xf32>
    %288 = vector.broadcast %287 : vector<2x4x1xf32> to vector<2x4x6xf32>
    %289 = arith.subf %285, %288 : vector<2x4x6xf32>
    %290 = math.exp %289 : vector<2x4x6xf32>
    %cst_113 = arith.constant dense<0.000000e+00> : vector<2x4xf32>
    %291 = vector.multi_reduction <add>, %290, %cst_113 [2] : vector<2x4x6xf32> to vector<2x4xf32>
    %292 = vector.shape_cast %291 : vector<2x4xf32> to vector<2x4x1xf32>
    %293 = tpu.reciprocal %292 {approx = true} : vector<2x4x1xf32> -> vector<2x4x1xf32>
    %294 = vector.broadcast %293 : vector<2x4x1xf32> to vector<2x4x6xf32>
    %295 = arith.mulf %290, %294 : vector<2x4x6xf32>
    %296 = arith.truncf %295 : vector<2x4x6xf32> to vector<2x4x6xbf16>
    "tpu.trace_start"() <{level = 10 : i32, message = "bqk,bke->bqe"}> : () -> ()
    %cst_114 = arith.constant dense<0.000000e+00> : vector<2x4x8xf32>
    %297 = tpu.matmul %296, %279, %cst_114 {dimension_numbers = #tpu.dot_dimension_numbers<[2], [1], [1], [2], [0, 0, 0, 1, 1, 2], [0], [0]>} : vector<2x4x6xbf16>, vector<2x6x8xbf16>, vector<2x4x8xf32> -> vector<2x4x8xf32>
    "tpu.trace_stop"() : () -> ()
    %298 = vector.extract_strided_slice %269 {offsets = [0, 0, 8], sizes = [2, 4, 8], strides = [1, 1, 1]} : vector<2x4x32xf32> to vector<2x4x8xf32>
    %299 = arith.truncf %298 : vector<2x4x8xf32> to vector<2x4x8xbf16>
    %300 = vector.extract_strided_slice %271 {offsets = [0, 0, 8], sizes = [2, 6, 8], strides = [1, 1, 1]} : vector<2x6x32xf32> to vector<2x6x8xf32>
    %301 = arith.truncf %300 : vector<2x6x8xf32> to vector<2x6x8xbf16>
    %302 = vector.extract_strided_slice %273 {offsets = [0, 0, 8], sizes = [2, 6, 8], strides = [1, 1, 1]} : vector<2x6x32xf32> to vector<2x6x8xf32>
    %303 = arith.truncf %302 : vector<2x6x8xf32> to vector<2x6x8xbf16>
    "tpu.trace_start"() <{level = 10 : i32, message = "bqe,bke->bqk"}> : () -> ()
    %cst_115 = arith.constant dense<0.000000e+00> : vector<2x4x6xf32>
    %304 = tpu.matmul %299, %301, %cst_115 {dimension_numbers = #tpu.dot_dimension_numbers<[2], [2], [1], [1], [0, 0, 0, 1, 1, 1], [0], [0]>} : vector<2x4x8xbf16>, vector<2x6x8xbf16>, vector<2x4x6xf32> -> vector<2x4x6xf32>
    "tpu.trace_stop"() : () -> ()
    %cst_116 = arith.constant 0.353553385 : f32
    %305 = vector.broadcast %cst_116 : f32 to vector<2x4x6xf32>
    %306 = arith.mulf %304, %305 : vector<2x4x6xf32>
    %307 = vector.shape_cast %254 : vector<4x6xf32> to vector<1x4x6xf32>
    %308 = vector.broadcast %307 : vector<1x4x6xf32> to vector<2x4x6xf32>
    %309 = arith.addf %306, %308 : vector<2x4x6xf32>
    %cst_117 = arith.constant dense<0xFF800000> : vector<2x4xf32>
    %310 = vector.multi_reduction <maximumf>, %309, %cst_117 [2] : vector<2x4x6xf32> to vector<2x4xf32>
    %311 = vector.shape_cast %310 : vector<2x4xf32> to vector<2x4x1xf32>
    %312 = vector.broadcast %311 : vector<2x4x1xf32> to vector<2x4x6xf32>
    %313 = arith.subf %309, %312 : vector<2x4x6xf32>
    %314 = math.exp %313 : vector<2x4x6xf32>
    %cst_118 = arith.constant dense<0.000000e+00> : vector<2x4xf32>
    %315 = vector.multi_reduction <add>, %314, %cst_118 [2] : vector<2x4x6xf32> to vector<2x4xf32>
    %316 = vector.shape_cast %315 : vector<2x4xf32> to vector<2x4x1xf32>
    %317 = tpu.reciprocal %316 {approx = true} : vector<2x4x1xf32> -> vector<2x4x1xf32>
    %318 = vector.broadcast %317 : vector<2x4x1xf32> to vector<2x4x6xf32>
    %319 = arith.mulf %314, %318 : vector<2x4x6xf32>
    %320 = arith.truncf %319 : vector<2x4x6xf32> to vector<2x4x6xbf16>
    "tpu.trace_start"() <{level = 10 : i32, message = "bqk,bke->bqe"}> : () -> ()
    %cst_119 = arith.constant dense<0.000000e+00> : vector<2x4x8xf32>
    %321 = tpu.matmul %320, %303, %cst_119 {dimension_numbers = #tpu.dot_dimension_numbers<[2], [1], [1], [2], [0, 0, 0, 1, 1, 2], [0], [0]>} : vector<2x4x6xbf16>, vector<2x6x8xbf16>, vector<2x4x8xf32> -> vector<2x4x8xf32>
    "tpu.trace_stop"() : () -> ()
    %322 = vector.extract_strided_slice %269 {offsets = [0, 0, 16], sizes = [2, 4, 8], strides = [1, 1, 1]} : vector<2x4x32xf32> to vector<2x4x8xf32>
    %323 = arith.truncf %322 : vector<2x4x8xf32> to vector<2x4x8xbf16>
    %324 = vector.extract_strided_slice %271 {offsets = [0, 0, 16], sizes = [2, 6, 8], strides = [1, 1, 1]} : vector<2x6x32xf32> to vector<2x6x8xf32>
    %325 = arith.truncf %324 : vector<2x6x8xf32> to vector<2x6x8xbf16>
    %326 = vector.extract_strided_slice %273 {offsets = [0, 0, 16], sizes = [2, 6, 8], strides = [1, 1, 1]} : vector<2x6x32xf32> to vector<2x6x8xf32>
    %327 = arith.truncf %326 : vector<2x6x8xf32> to vector<2x6x8xbf16>
    "tpu.trace_start"() <{level = 10 : i32, message = "bqe,bke->bqk"}> : () -> ()
    %cst_120 = arith.constant dense<0.000000e+00> : vector<2x4x6xf32>
    %328 = tpu.matmul %323, %325, %cst_120 {dimension_numbers = #tpu.dot_dimension_numbers<[2], [2], [1], [1], [0, 0, 0, 1, 1, 1], [0], [0]>} : vector<2x4x8xbf16>, vector<2x6x8xbf16>, vector<2x4x6xf32> -> vector<2x4x6xf32>
    "tpu.trace_stop"() : () -> ()
    %cst_121 = arith.constant 0.353553385 : f32
    %329 = vector.broadcast %cst_121 : f32 to vector<2x4x6xf32>
    %330 = arith.mulf %328, %329 : vector<2x4x6xf32>
    %331 = vector.shape_cast %254 : vector<4x6xf32> to vector<1x4x6xf32>
    %332 = vector.broadcast %331 : vector<1x4x6xf32> to vector<2x4x6xf32>
    %333 = arith.addf %330, %332 : vector<2x4x6xf32>
    %cst_122 = arith.constant dense<0xFF800000> : vector<2x4xf32>
    %334 = vector.multi_reduction <maximumf>, %333, %cst_122 [2] : vector<2x4x6xf32> to vector<2x4xf32>
    %335 = vector.shape_cast %334 : vector<2x4xf32> to vector<2x4x1xf32>
    %336 = vector.broadcast %335 : vector<2x4x1xf32> to vector<2x4x6xf32>
    %337 = arith.subf %333, %336 : vector<2x4x6xf32>
    %338 = math.exp %337 : vector<2x4x6xf32>
    %cst_123 = arith.constant dense<0.000000e+00> : vector<2x4xf32>
    %339 = vector.multi_reduction <add>, %338, %cst_123 [2] : vector<2x4x6xf32> to vector<2x4xf32>
    %340 = vector.shape_cast %339 : vector<2x4xf32> to vector<2x4x1xf32>
    %341 = tpu.reciprocal %340 {approx = true} : vector<2x4x1xf32> -> vector<2x4x1xf32>
    %342 = vector.broadcast %341 : vector<2x4x1xf32> to vector<2x4x6xf32>
    %343 = arith.mulf %338, %342 : vector<2x4x6xf32>
    %344 = arith.truncf %343 : vector<2x4x6xf32> to vector<2x4x6xbf16>
    "tpu.trace_start"() <{level = 10 : i32, message = "bqk,bke->bqe"}> : () -> ()
    %cst_124 = arith.constant dense<0.000000e+00> : vector<2x4x8xf32>
    %345 = tpu.matmul %344, %327, %cst_124 {dimension_numbers = #tpu.dot_dimension_numbers<[2], [1], [1], [2], [0, 0, 0, 1, 1, 2], [0], [0]>} : vector<2x4x6xbf16>, vector<2x6x8xbf16>, vector<2x4x8xf32> -> vector<2x4x8xf32>
    "tpu.trace_stop"() : () -> ()
    %346 = vector.extract_strided_slice %269 {offsets = [0, 0, 24], sizes = [2, 4, 8], strides = [1, 1, 1]} : vector<2x4x32xf32> to vector<2x4x8xf32>
    %347 = arith.truncf %346 : vector<2x4x8xf32> to vector<2x4x8xbf16>
    %348 = vector.extract_strided_slice %271 {offsets = [0, 0, 24], sizes = [2, 6, 8], strides = [1, 1, 1]} : vector<2x6x32xf32> to vector<2x6x8xf32>
    %349 = arith.truncf %348 : vector<2x6x8xf32> to vector<2x6x8xbf16>
    %350 = vector.extract_strided_slice %273 {offsets = [0, 0, 24], sizes = [2, 6, 8], strides = [1, 1, 1]} : vector<2x6x32xf32> to vector<2x6x8xf32>
    %351 = arith.truncf %350 : vector<2x6x8xf32> to vector<2x6x8xbf16>
    "tpu.trace_start"() <{level = 10 : i32, message = "bqe,bke->bqk"}> : () -> ()
    %cst_125 = arith.constant dense<0.000000e+00> : vector<2x4x6xf32>
    %352 = tpu.matmul %347, %349, %cst_125 {dimension_numbers = #tpu.dot_dimension_numbers<[2], [2], [1], [1], [0, 0, 0, 1, 1, 1], [0], [0]>} : vector<2x4x8xbf16>, vector<2x6x8xbf16>, vector<2x4x6xf32> -> vector<2x4x6xf32>
    "tpu.trace_stop"() : () -> ()
    %cst_126 = arith.constant 0.353553385 : f32
    %353 = vector.broadcast %cst_126 : f32 to vector<2x4x6xf32>
    %354 = arith.mulf %352, %353 : vector<2x4x6xf32>
    %355 = vector.shape_cast %254 : vector<4x6xf32> to vector<1x4x6xf32>
    %356 = vector.broadcast %355 : vector<1x4x6xf32> to vector<2x4x6xf32>
    %357 = arith.addf %354, %356 : vector<2x4x6xf32>
    %cst_127 = arith.constant dense<0xFF800000> : vector<2x4xf32>
    %358 = vector.multi_reduction <maximumf>, %357, %cst_127 [2] : vector<2x4x6xf32> to vector<2x4xf32>
    %359 = vector.shape_cast %358 : vector<2x4xf32> to vector<2x4x1xf32>
    %360 = vector.broadcast %359 : vector<2x4x1xf32> to vector<2x4x6xf32>
    %361 = arith.subf %357, %360 : vector<2x4x6xf32>
    %362 = math.exp %361 : vector<2x4x6xf32>
    %cst_128 = arith.constant dense<0.000000e+00> : vector<2x4xf32>
    %363 = vector.multi_reduction <add>, %362, %cst_128 [2] : vector<2x4x6xf32> to vector<2x4xf32>
    %364 = vector.shape_cast %363 : vector<2x4xf32> to vector<2x4x1xf32>
    %365 = tpu.reciprocal %364 {approx = true} : vector<2x4x1xf32> -> vector<2x4x1xf32>
    %366 = vector.broadcast %365 : vector<2x4x1xf32> to vector<2x4x6xf32>
    %367 = arith.mulf %362, %366 : vector<2x4x6xf32>
    %368 = arith.truncf %367 : vector<2x4x6xf32> to vector<2x4x6xbf16>
    "tpu.trace_start"() <{level = 10 : i32, message = "bqk,bke->bqe"}> : () -> ()
    %cst_129 = arith.constant dense<0.000000e+00> : vector<2x4x8xf32>
    %369 = tpu.matmul %368, %351, %cst_129 {dimension_numbers = #tpu.dot_dimension_numbers<[2], [1], [1], [2], [0, 0, 0, 1, 1, 2], [0], [0]>} : vector<2x4x6xbf16>, vector<2x6x8xbf16>, vector<2x4x8xf32> -> vector<2x4x8xf32>
    "tpu.trace_stop"() : () -> ()
    %370 = tpu.concatenate %297, %321, %345, %369 in 2 : vector<2x4x8xf32>, vector<2x4x8xf32>, vector<2x4x8xf32>, vector<2x4x8xf32> -> vector<2x4x32xf32>
    %371 = vector.shape_cast %370 : vector<2x4x32xf32> to vector<8x32xf32>
    %372 = arith.truncf %371 : vector<8x32xf32> to vector<8x32xbf16>
    %c0_130 = arith.constant 0 : index
    %c0_131 = arith.constant 0 : index
    %373 = vector.load %arg21[%c0_130, %c0_131] : memref<32x32xbf16, #tpu.memory_space<vmem>>, vector<32x32xbf16>
    %cst_132 = arith.constant dense<0.000000e+00> : vector<8x32xf32>
    %374 = tpu.matmul %372, %373, %cst_132 {dimension_numbers = #tpu.dot_dimension_numbers<[1], [0], [0], [1], [0, 0, 1, 1], [], []>} : vector<8x32xbf16>, vector<32x32xbf16>, vector<8x32xf32> -> vector<8x32xf32>
    %c0_133 = arith.constant 0 : index
    %c0_134 = arith.constant 0 : index
    %375 = vector.load %arg22[%c0_133, %c0_134] : memref<1x32xf32, #tpu.memory_space<vmem>>, vector<1x32xf32>
    %376 = vector.broadcast %375 : vector<1x32xf32> to vector<8x32xf32>
    %377 = arith.addf %374, %376 : vector<8x32xf32>
    %378 = vector.shape_cast %377 : vector<8x32xf32> to vector<2x4x32xf32>
    %379 = arith.addf %220, %378 : vector<2x4x32xf32>
    %c0_135 = arith.constant 0 : index
    %c0_136 = arith.constant 0 : index
    %c0_137 = arith.constant 0 : index
    %380 = vector.load %arg27[%c0_135, %c0_136, %c0_137] : memref<2x4x32xf32, #tpu.memory_space<vmem>>, vector<2x4x32xf32>
    tpu.vector_store %arg27[%c0_135, %c0_136, %c0_137], %379 {strides = array<i32>} : memref<2x4x32xf32, #tpu.memory_space<vmem>>, vector<2x4x32xf32>,
    %cst_138 = arith.constant 0.000000e+00 : f32
    %381 = vector.broadcast %cst_138 : f32 to vector<2x4x112xf32>
    %382 = tpu.concatenate %169, %381 in 2 : vector<2x4x16xf32>, vector<2x4x112xf32> -> vector<2x4x128xf32>
    %c0_139 = arith.constant 0 : index
    %c0_140 = arith.constant 0 : index
    %c0_141 = arith.constant 0 : index
    %383 = vector.load %arg28[%c0_139, %c0_140, %c0_141] : memref<2x4x128xf32, #tpu.memory_space<vmem>>, vector<2x4x128xf32>
    tpu.vector_store %arg28[%c0_139, %c0_140, %c0_141], %382 {strides = array<i32>} : memref<2x4x128xf32, #tpu.memory_space<vmem>>, vector<2x4x128xf32>,
    return
  }
  func.func @transform_0(%arg0: i32) -> (i32, i32, i32) {
    %c0_i32 = arith.constant 0 : i32
    %c0_i32_0 = arith.constant 0 : i32
    %c0_i32_1 = arith.constant 0 : i32
    return %arg0, %c0_i32, %c0_i32_0 : i32, i32, i32
  }
  func.func @transform_1(%arg0: i32) -> (i32, i32, i32) {
    %c0_i32 = arith.constant 0 : i32
    %c0_i32_0 = arith.constant 0 : i32
    %c0_i32_1 = arith.constant 0 : i32
    return %arg0, %c0_i32, %c0_i32_0 : i32, i32, i32
  }
  func.func @transform_2(%arg0: i32) -> (i32, i32) {
    %c0_i32 = arith.constant 0 : i32
    %c0_i32_0 = arith.constant 0 : i32
    %c0_i32_1 = arith.constant 0 : i32
    return %c0_i32, %c0_i32_0 : i32, i32
  }
  func.func @transform_3(%arg0: i32) -> (i32, i32) {
    %c0_i32 = arith.constant 0 : i32
    %c0_i32_0 = arith.constant 0 : i32
    %c0_i32_1 = arith.constant 0 : i32
    return %c0_i32, %c0_i32_0 : i32, i32
  }
  func.func @transform_4(%arg0: i32) -> (i32, i32) {
    %c0_i32 = arith.constant 0 : i32
    %c0_i32_0 = arith.constant 0 : i32
    %c0_i32_1 = arith.constant 0 : i32
    return %c0_i32, %c0_i32_0 : i32, i32
  }
  func.func @transform_5(%arg0: i32) -> (i32, i32) {
    %c0_i32 = arith.constant 0 : i32
    %c0_i32_0 = arith.constant 0 : i32
    %c0_i32_1 = arith.constant 0 : i32
    return %c0_i32, %c0_i32_0 : i32, i32
  }
  func.func @transform_6(%arg0: i32) -> (i32, i32) {
    %c0_i32 = arith.constant 0 : i32
    %c0_i32_0 = arith.constant 0 : i32
    %c0_i32_1 = arith.constant 0 : i32
    return %c0_i32, %c0_i32_0 : i32, i32
  }
  func.func @transform_7(%arg0: i32) -> (i32, i32) {
    %c0_i32 = arith.constant 0 : i32
    %c0_i32_0 = arith.constant 0 : i32
    %c0_i32_1 = arith.constant 0 : i32
    return %c0_i32, %c0_i32_0 : i32, i32
  }
  func.func @transform_8(%arg0: i32) -> (i32, i32) {
    %c0_i32 = arith.constant 0 : i32
    %c0_i32_0 = arith.constant 0 : i32
    %c0_i32_1 = arith.constant 0 : i32
    return %c0_i32, %c0_i32_0 : i32, i32
  }
  func.func @transform_9(%arg0: i32) -> (i32, i32) {
    %c0_i32 = arith.constant 0 : i32
    %c0_i32_0 = arith.constant 0 : i32
    %c0_i32_1 = arith.constant 0 : i32
    return %c0_i32, %c0_i32_0 : i32, i32
  }
  func.func @transform_10(%arg0: i32) -> (i32, i32) {
    %c0_i32 = arith.constant 0 : i32
    %c0_i32_0 = arith.constant 0 : i32
    %c0_i32_1 = arith.constant 0 : i32
    return %c0_i32, %c0_i32_0 : i32, i32
  }
  func.func @transform_11(%arg0: i32) -> (i32, i32) {
    %c0_i32 = arith.constant 0 : i32
    %c0_i32_0 = arith.constant 0 : i32
    %c0_i32_1 = arith.constant 0 : i32
    return %c0_i32, %c0_i32_0 : i32, i32
  }
  func.func @transform_12(%arg0: i32) -> (i32, i32) {
    %c0_i32 = arith.constant 0 : i32
    %c0_i32_0 = arith.constant 0 : i32
    %c0_i32_1 = arith.constant 0 : i32
    return %c0_i32, %c0_i32_0 : i32, i32
  }
  func.func @transform_13(%arg0: i32) -> (i32, i32) {
    %c0_i32 = arith.constant 0 : i32
    %c0_i32_0 = arith.constant 0 : i32
    %c0_i32_1 = arith.constant 0 : i32
    return %c0_i32, %c0_i32_0 : i32, i32
  }
  func.func @transform_14(%arg0: i32) -> (i32, i32) {
    %c0_i32 = arith.constant 0 : i32
    %c0_i32_0 = arith.constant 0 : i32
    %c0_i32_1 = arith.constant 0 : i32
    return %c0_i32, %c0_i32_0 : i32, i32
  }
  func.func @transform_15(%arg0: i32) -> (i32, i32) {
    %c0_i32 = arith.constant 0 : i32
    %c0_i32_0 = arith.constant 0 : i32
    %c0_i32_1 = arith.constant 0 : i32
    return %c0_i32, %c0_i32_0 : i32, i32
  }
  func.func @transform_16(%arg0: i32) -> (i32, i32) {
    %c0_i32 = arith.constant 0 : i32
    %c0_i32_0 = arith.constant 0 : i32
    %c0_i32_1 = arith.constant 0 : i32
    return %c0_i32, %c0_i32_0 : i32, i32
  }
  func.func @transform_17(%arg0: i32) -> (i32, i32) {
    %c0_i32 = arith.constant 0 : i32
    %c0_i32_0 = arith.constant 0 : i32
    %c0_i32_1 = arith.constant 0 : i32
    return %c0_i32, %c0_i32_0 : i32, i32
  }
  func.func @transform_18(%arg0: i32) -> (i32, i32) {
    %c0_i32 = arith.constant 0 : i32
    %c0_i32_0 = arith.constant 0 : i32
    %c0_i32_1 = arith.constant 0 : i32
    return %c0_i32, %c0_i32_0 : i32, i32
  }
  func.func @transform_19(%arg0: i32) -> (i32, i32) {
    %c0_i32 = arith.constant 0 : i32
    %c0_i32_0 = arith.constant 0 : i32
    %c0_i32_1 = arith.constant 0 : i32
    return %c0_i32, %c0_i32_0 : i32, i32
  }
  func.func @transform_20(%arg0: i32) -> (i32, i32) {
    %c0_i32 = arith.constant 0 : i32
    %c0_i32_0 = arith.constant 0 : i32
    %c0_i32_1 = arith.constant 0 : i32
    return %c0_i32, %c0_i32_0 : i32, i32
  }
  func.func @transform_21(%arg0: i32) -> (i32, i32) {
    %c0_i32 = arith.constant 0 : i32
    %c0_i32_0 = arith.constant 0 : i32
    %c0_i32_1 = arith.constant 0 : i32
    return %c0_i32, %c0_i32_0 : i32, i32
  }
  func.func @transform_22(%arg0: i32) -> (i32, i32) {
    %c0_i32 = arith.constant 0 : i32
    %c0_i32_0 = arith.constant 0 : i32
    %c0_i32_1 = arith.constant 0 : i32
    return %c0_i32, %c0_i32_0 : i32, i32
  }
  func.func @transform_23(%arg0: i32) -> (i32, i32) {
    %c0_i32 = arith.constant 0 : i32
    %c0_i32_0 = arith.constant 0 : i32
    %c0_i32_1 = arith.constant 0 : i32
    return %c0_i32, %c0_i32_0 : i32, i32
  }
  func.func @transform_24(%arg0: i32) -> (i32, i32) {
    %c0_i32 = arith.constant 0 : i32
    %c0_i32_0 = arith.constant 0 : i32
    %c0_i32_1 = arith.constant 0 : i32
    return %c0_i32, %c0_i32_0 : i32, i32
  }
  func.func @transform_25(%arg0: i32) -> (i32, i32) {
    %c0_i32 = arith.constant 0 : i32
    %c0_i32_0 = arith.constant 0 : i32
    %c0_i32_1 = arith.constant 0 : i32
    return %c0_i32, %c0_i32_0 : i32, i32
  }
  func.func @transform_26(%arg0: i32) -> (i32, i32, i32) {
    %c0_i32 = arith.constant 0 : i32
    %c0_i32_0 = arith.constant 0 : i32
    %c0_i32_1 = arith.constant 0 : i32
    return %arg0, %c0_i32, %c0_i32_0 : i32, i32, i32
  }
  func.func @transform_27(%arg0: i32) -> (i32, i32, i32) {
    %c0_i32 = arith.constant 0 : i32
    %c0_i32_0 = arith.constant 0 : i32
    %c0_i32_1 = arith.constant 0 : i32
    return %arg0, %c0_i32, %c0_i32_0 : i32, i32, i32
  }
}

</mosaic_0001>

<llo_original>
// kernel: hoi_residual_attention_block.1
$region0: #{hoi_residual_attention_block.1}
  #allocation0 [shape = 'u32[]', space=smem, size = 0x4, offset = 0x4, fixed_abs, tag = 'smem constant byte address 0x4 - core index']
  #allocation1 [shape = 'u32[144,128]{1,0:T(1,128)}', space=vmem, size = 0x12000, scoped, tag = 'internal scratch']
  #allocation2 [shape = 'f32[2,6,32]{2,1,0:T(8,128)}', space=vmem, size = 0x2000, scoped, tag = 'scratch operand']
  %s0 = inlined_call_operand.vmem [shape: f32[2,16,32], index: 0, kind: input, shape index: {}]
  %s1 = inlined_call_operand.vmem [shape: f32[2,4,32], index: 1, kind: input, shape index: {}]
  %s2 = inlined_call_operand.vmem [shape: f32[2,32], index: 2, kind: input, shape index: {}]
  %s3 = inlined_call_operand.vmem [shape: f32[4,6], index: 3, kind: input, shape index: {}]
  %s4 = inlined_call_operand.vmem [shape: f32[1,32], index: 4, kind: input, shape index: {}]
  %s5 = inlined_call_operand.vmem [shape: f32[1,32], index: 5, kind: input, shape index: {}]
  %s6 = inlined_call_operand.vmem [shape: f32[1,32], index: 6, kind: input, shape index: {}]
  %s7 = inlined_call_operand.vmem [shape: f32[1,32], index: 7, kind: input, shape index: {}]
  %s8 = inlined_call_operand.vmem [shape: f32[1,32], index: 8, kind: input, shape index: {}]
  %s9 = inlined_call_operand.vmem [shape: f32[1,32], index: 9, kind: input, shape index: {}]
  %s10 = inlined_call_operand.vmem [shape: bf16[32,32], index: 10, kind: input, shape index: {}]
  %s11 = inlined_call_operand.vmem [shape: f32[1,32], index: 11, kind: input, shape index: {}]
  %s12 = inlined_call_operand.vmem [shape: bf16[32,64], index: 12, kind: input, shape index: {}]
  %s13 = inlined_call_operand.vmem [shape: f32[1,64], index: 13, kind: input, shape index: {}]
  %s14 = inlined_call_operand.vmem [shape: bf16[32,32], index: 14, kind: input, shape index: {}]
  %s15 = inlined_call_operand.vmem [shape: f32[1,32], index: 15, kind: input, shape index: {}]
  %s16 = inlined_call_operand.vmem [shape: bf16[32,32], index: 16, kind: input, shape index: {}]
  %s17 = inlined_call_operand.vmem [shape: f32[1,32], index: 17, kind: input, shape index: {}]
  %s18 = inlined_call_operand.vmem [shape: bf16[32,64], index: 18, kind: input, shape index: {}]
  %s19 = inlined_call_operand.vmem [shape: f32[1,64], index: 19, kind: input, shape index: {}]
  %s20 = inlined_call_operand.vmem [shape: bf16[32,32], index: 20, kind: input, shape index: {}]
  %s21 = inlined_call_operand.vmem [shape: f32[1,32], index: 21, kind: input, shape index: {}]
  %s22 = inlined_call_operand.vmem [shape: bf16[32,128], index: 22, kind: input, shape index: {}]
  %s23 = inlined_call_operand.vmem [shape: f32[1,128], index: 23, kind: input, shape index: {}]
  %s24 = inlined_call_operand.vmem [shape: bf16[128,32], index: 24, kind: input, shape index: {}]
  %s25 = inlined_call_operand.vmem [shape: f32[1,32], index: 25, kind: input, shape index: {}]
  %s26 = inlined_call_operand.vmem [shape: f32[2,4,32], index: 26, kind: output, shape index: {0}]
  %s27 = inlined_call_operand.hbm [shape: f32[2,4,128], index: 27, kind: output, shape index: {1}]
  %28 = xla_tuple %s26, %s27
  %s29 = sld [smem:[#allocation0]]
  $region122: #{hoi_residual_attention_block.1} parent=0
    _
  %s31 = ssub.s32 1, %s29
  %s32 = scalar_select 0, %s31, %s29
  $region1: #{hoi_residual_attention_block.1} parent=0
    #allocation3 [shape = 'u8[4096]{0}', space=vmem, size = 0x1000, scoped, tag = 'output window, operand 1, single buffered']
    #allocation4 [shape = 's32[1]{0}', space=sflag, size = 0x4, scoped, tag = 'scoped memory for hoi_residual_attention_block.1']
    %33 = vsyncpa [#allocation4], 0
    // Predicated region
    $region2: #{hoi_residual_attention_block.1} parent=1 // pred_check
      _
    $region3: #{hoi_residual_attention_block.1} parent=1 // pred_check_branch
      %35 = sbr.rel (0) target = $region5
    $region4: #{hoi_residual_attention_block.1} parent=1 // pred_region
      _
    $region5: #{hoi_residual_attention_block.1} parent=1 // pred_fallthru
      _
    // Predicated region
    $region6: #{hoi_residual_attention_block.1} parent=1 // pred_check
      _
    $region7: #{hoi_residual_attention_block.1} parent=1 // pred_check_branch
      %37 = sbr.rel (0) target = $region9
    $region8: #{hoi_residual_attention_block.1} parent=1 // pred_region
      _
    $region9: #{hoi_residual_attention_block.1} parent=1 // pred_fallthru
      _
    // Predicated region
    $region10: #{hoi_residual_attention_block.1} parent=1 // pred_check
      _
    $region11: #{hoi_residual_attention_block.1} parent=1 // pred_check_branch
      %39 = sbr.rel (0) target = $region13
    $region12: #{hoi_residual_attention_block.1} parent=1 // pred_region
      _
    $region13: #{hoi_residual_attention_block.1} parent=1 // pred_fallthru
      _
    // Predicated region
    $region14: #{hoi_residual_attention_block.1} parent=1 // pred_check
      _
    $region15: #{hoi_residual_attention_block.1} parent=1 // pred_check_branch
      %41 = sbr.rel (0) target = $region17
    $region16: #{hoi_residual_attention_block.1} parent=1 // pred_region
      _
    $region17: #{hoi_residual_attention_block.1} parent=1 // pred_fallthru
      _
    // Predicated region
    $region18: #{hoi_residual_attention_block.1} parent=1 // pred_check
      _
    $region19: #{hoi_residual_attention_block.1} parent=1 // pred_check_branch
      %43 = sbr.rel (0) target = $region21
    $region20: #{hoi_residual_attention_block.1} parent=1 // pred_region
      _
    $region21: #{hoi_residual_attention_block.1} parent=1 // pred_fallthru
      _
    // Predicated region
    $region22: #{hoi_residual_attention_block.1} parent=1 // pred_check
      _
    $region23: #{hoi_residual_attention_block.1} parent=1 // pred_check_branch
      %45 = sbr.rel (0) target = $region25
    $region24: #{hoi_residual_attention_block.1} parent=1 // pred_region
      _
    $region25: #{hoi_residual_attention_block.1} parent=1 // pred_fallthru
      _
    // Predicated region
    $region26: #{hoi_residual_attention_block.1} parent=1 // pred_check
      _
    $region27: #{hoi_residual_attention_block.1} parent=1 // pred_check_branch
      %47 = sbr.rel (0) target = $region29
    $region28: #{hoi_residual_attention_block.1} parent=1 // pred_region
      _
    $region29: #{hoi_residual_attention_block.1} parent=1 // pred_fallthru
      _
    // Predicated region
    $region30: #{hoi_residual_attention_block.1} parent=1 // pred_check
      _
    $region31: #{hoi_residual_attention_block.1} parent=1 // pred_check_branch
      %49 = sbr.rel (0) target = $region33
    $region32: #{hoi_residual_attention_block.1} parent=1 // pred_region
      _
    $region33: #{hoi_residual_attention_block.1} parent=1 // pred_fallthru
      _
    // Predicated region
    $region34: #{hoi_residual_attention_block.1} parent=1 // pred_check
      _
    $region35: #{hoi_residual_attention_block.1} parent=1 // pred_check_branch
      %51 = sbr.rel (0) target = $region37
    $region36: #{hoi_residual_attention_block.1} parent=1 // pred_region
      _
    $region37: #{hoi_residual_attention_block.1} parent=1 // pred_fallthru
      _
    // Predicated region
    $region38: #{hoi_residual_attention_block.1} parent=1 // pred_check
      _
    $region39: #{hoi_residual_attention_block.1} parent=1 // pred_check_branch
      %53 = sbr.rel (0) target = $region41
    $region40: #{hoi_residual_attention_block.1} parent=1 // pred_region
      _
    $region41: #{hoi_residual_attention_block.1} parent=1 // pred_fallthru
      _
    // Predicated region
    $region42: #{hoi_residual_attention_block.1} parent=1 // pred_check
      _
    $region43: #{hoi_residual_attention_block.1} parent=1 // pred_check_branch
      %55 = sbr.rel (0) target = $region45
    $region44: #{hoi_residual_attention_block.1} parent=1 // pred_region
      _
    $region45: #{hoi_residual_attention_block.1} parent=1 // pred_fallthru
      _
    // Predicated region
    $region46: #{hoi_residual_attention_block.1} parent=1 // pred_check
      _
    $region47: #{hoi_residual_attention_block.1} parent=1 // pred_check_branch
      %57 = sbr.rel (0) target = $region49
    $region48: #{hoi_residual_attention_block.1} parent=1 // pred_region
      _
    $region49: #{hoi_residual_attention_block.1} parent=1 // pred_fallthru
      _
    // Predicated region
    $region50: #{hoi_residual_attention_block.1} parent=1 // pred_check
      _
    $region51: #{hoi_residual_attention_block.1} parent=1 // pred_check_branch
      %59 = sbr.rel (0) target = $region53
    $region52: #{hoi_residual_attention_block.1} parent=1 // pred_region
      _
    $region53: #{hoi_residual_attention_block.1} parent=1 // pred_fallthru
      _
    // Predicated region
    $region54: #{hoi_residual_attention_block.1} parent=1 // pred_check
      _
    $region55: #{hoi_residual_attention_block.1} parent=1 // pred_check_branch
      %61 = sbr.rel (0) target = $region57
    $region56: #{hoi_residual_attention_block.1} parent=1 // pred_region
      _
    $region57: #{hoi_residual_attention_block.1} parent=1 // pred_fallthru
      _
    // Predicated region
    $region58: #{hoi_residual_attention_block.1} parent=1 // pred_check
      _
    $region59: #{hoi_residual_attention_block.1} parent=1 // pred_check_branch
      %63 = sbr.rel (0) target = $region61
    $region60: #{hoi_residual_attention_block.1} parent=1 // pred_region
      _
    $region61: #{hoi_residual_attention_block.1} parent=1 // pred_fallthru
      _
    // Predicated region
    $region62: #{hoi_residual_attention_block.1} parent=1 // pred_check
      _
    $region63: #{hoi_residual_attention_block.1} parent=1 // pred_check_branch
      %65 = sbr.rel (0) target = $region65
    $region64: #{hoi_residual_attention_block.1} parent=1 // pred_region
      _
    $region65: #{hoi_residual_attention_block.1} parent=1 // pred_fallthru
      _
    // Predicated region
    $region66: #{hoi_residual_attention_block.1} parent=1 // pred_check
      _
    $region67: #{hoi_residual_attention_block.1} parent=1 // pred_check_branch
      %67 = sbr.rel (0) target = $region69
    $region68: #{hoi_residual_attention_block.1} parent=1 // pred_region
      _
    $region69: #{hoi_residual_attention_block.1} parent=1 // pred_fallthru
      _
    // Predicated region
    $region70: #{hoi_residual_attention_block.1} parent=1 // pred_check
      _
    $region71: #{hoi_residual_attention_block.1} parent=1 // pred_check_branch
      %69 = sbr.rel (0) target = $region73
    $region72: #{hoi_residual_attention_block.1} parent=1 // pred_region
      _
    $region73: #{hoi_residual_attention_block.1} parent=1 // pred_fallthru
      _
    // Predicated region
    $region74: #{hoi_residual_attention_block.1} parent=1 // pred_check
      _
    $region75: #{hoi_residual_attention_block.1} parent=1 // pred_check_branch
      %71 = sbr.rel (0) target = $region77
    $region76: #{hoi_residual_attention_block.1} parent=1 // pred_region
      _
    $region77: #{hoi_residual_attention_block.1} parent=1 // pred_fallthru
      _
    // Predicated region
    $region78: #{hoi_residual_attention_block.1} parent=1 // pred_check
      _
    $region79: #{hoi_residual_attention_block.1} parent=1 // pred_check_branch
      %73 = sbr.rel (0) target = $region81
    $region80: #{hoi_residual_attention_block.1} parent=1 // pred_region
      _
    $region81: #{hoi_residual_attention_block.1} parent=1 // pred_fallthru
      _
    // Predicated region
    $region82: #{hoi_residual_attention_block.1} parent=1 // pred_check
      _
    $region83: #{hoi_residual_attention_block.1} parent=1 // pred_check_branch
      %75 = sbr.rel (0) target = $region85
    $region84: #{hoi_residual_attention_block.1} parent=1 // pred_region
      _
    $region85: #{hoi_residual_attention_block.1} parent=1 // pred_fallthru
      _
    // Predicated region
    $region86: #{hoi_residual_attention_block.1} parent=1 // pred_check
      _
    $region87: #{hoi_residual_attention_block.1} parent=1 // pred_check_branch
      %77 = sbr.rel (0) target = $region89
    $region88: #{hoi_residual_attention_block.1} parent=1 // pred_region
      _
    $region89: #{hoi_residual_attention_block.1} parent=1 // pred_fallthru
      _
    // Predicated region
    $region90: #{hoi_residual_attention_block.1} parent=1 // pred_check
      _
    $region91: #{hoi_residual_attention_block.1} parent=1 // pred_check_branch
      %79 = sbr.rel (0) target = $region93
    $region92: #{hoi_residual_attention_block.1} parent=1 // pred_region
      _
    $region93: #{hoi_residual_attention_block.1} parent=1 // pred_fallthru
      _
    // Predicated region
    $region94: #{hoi_residual_attention_block.1} parent=1 // pred_check
      _
    $region95: #{hoi_residual_attention_block.1} parent=1 // pred_check_branch
      %81 = sbr.rel (0) target = $region97
    $region96: #{hoi_residual_attention_block.1} parent=1 // pred_region
      _
    $region97: #{hoi_residual_attention_block.1} parent=1 // pred_fallthru
      _
    // Predicated region
    $region98: #{hoi_residual_attention_block.1} parent=1 // pred_check
      _
    $region99: #{hoi_residual_attention_block.1} parent=1 // pred_check_branch
      %83 = sbr.rel (0) target = $region101
    $region100: #{hoi_residual_attention_block.1} parent=1 // pred_region
      _
    $region101: #{hoi_residual_attention_block.1} parent=1 // pred_fallthru
      _
    // Predicated region
    $region102: #{hoi_residual_attention_block.1} parent=1 // pred_check
      _
    $region103: #{hoi_residual_attention_block.1} parent=1 // pred_check_branch
      %85 = sbr.rel (0) target = $region105
    $region104: #{hoi_residual_attention_block.1} parent=1 // pred_region
      _
    $region105: #{hoi_residual_attention_block.1} parent=1 // pred_fallthru
      _
    %v87 = vld [vmem:[%s0] sm:$0xff]
    %v88 = vld [vmem:[%s0 + $0x8] sm:$0xff]
    %v89 = vld [vmem:[%s0 + $0x10] sm:$0xff]
    %v90 = vld [vmem:[%s0 + $0x18] sm:$0xff]
    %v91 = vld [vmem:[%s1] sm:$0xf]
    %v92 = vld [vmem:[%s1 + $0x4] sm:$0xf]
    %vm93 = vcmask 257024
    %v94 = vsel %vm93, %v91, 0.0
    %95 = vadd.xlane.f32.xlu0 %v94
    %v96 = vpop.xlane.xlu0 %95
    %v97 = vsel %vm93, %v92, 0.0
    %98 = vadd.xlane.f32.xlu0 %v97
    %v99 = vpop.xlane.xlu0 %98
    %v100 = vrcp.pop 32.0
    %v101 = vmul.f32 %v96, %v100
    %v102 = vmul.f32 %v99, %v100
    %v103 = vsub.f32 %v91, %v101
    %v104 = vsub.f32 %v92, %v102
    %v105 = vmul.f32 %v103, %v103
    %v106 = vmul.f32 %v104, %v104
    %v107 = vsel %vm93, %v105, 0.0
    %108 = vadd.xlane.f32.xlu0 %v107
    %v109 = vpop.xlane.xlu0 %108
    %v110 = vsel %vm93, %v106, 0.0
    %111 = vadd.xlane.f32.xlu0 %v110
    %v112 = vpop.xlane.xlu0 %111
    %v113 = vmul.f32 %v109, %v100
    %v114 = vmul.f32 %v112, %v100
    %v115 = vadd.f32 %v113, 1e-05
    %v116 = vadd.f32 %v114, 1e-05
    %v117 = vrsqrt.pop %v115
    %v118 = vrsqrt.pop %v116
    %v119 = vmul.f32 %v103, %v117
    %v120 = vmul.f32 %v104, %v118
    %v121 = vld [vmem:[%s4] sm:$0x1]
    %v123 = vlaneseq
    %v124 = vshrl.u32 %v123, 7
    %v125 = vsub.s32 0, %v124
    %v126 = vrot.slane %v121, %v125
    %v128 = vmul.f32 %v119, %v126
    %v129 = vmul.f32 %v120, %v126
    %v130 = vld [vmem:[%s5] sm:$0x1]
    %v132 = vlaneseq
    %v133 = vshrl.u32 %v132, 7
    %v134 = vsub.s32 0, %v133
    %v135 = vrot.slane %v130, %v134
    %v137 = vadd.f32 %v128, %v135
    %v138 = vadd.f32 %v129, %v135
    %vm139 = vcmask 261120
    %v140 = vsel %vm139, %v87, 0.0
    %141 = vadd.xlane.f32.xlu0 %v140
    %v142 = vpop.xlane.xlu0 %141
    %v143 = vsel %vm139, %v88, 0.0
    %144 = vadd.xlane.f32.xlu0 %v143
    %v145 = vpop.xlane.xlu0 %144
    %v146 = vsel %vm139, %v89, 0.0
    %147 = vadd.xlane.f32.xlu0 %v146
    %v148 = vpop.xlane.xlu0 %147
    %v149 = vsel %vm139, %v90, 0.0
    %150 = vadd.xlane.f32.xlu0 %v149
    %v151 = vpop.xlane.xlu0 %150
    %v152 = vmul.f32 %v142, %v100
    %v153 = vmul.f32 %v145, %v100
    %v154 = vmul.f32 %v148, %v100
    %v155 = vmul.f32 %v151, %v100
    %v156 = vsub.f32 %v87, %v152
    %v157 = vsub.f32 %v88, %v153
    %v158 = vsub.f32 %v89, %v154
    %v159 = vsub.f32 %v90, %v155
    %v160 = vmul.f32 %v156, %v156
    %v161 = vmul.f32 %v157, %v157
    %v162 = vmul.f32 %v158, %v158
    %v163 = vmul.f32 %v159, %v159
    %v164 = vsel %vm139, %v160, 0.0
    %165 = vadd.xlane.f32.xlu0 %v164
    %v166 = vpop.xlane.xlu0 %165
    %v167 = vsel %vm139, %v161, 0.0
    %168 = vadd.xlane.f32.xlu0 %v167
    %v169 = vpop.xlane.xlu0 %168
    %v170 = vsel %vm139, %v162, 0.0
    %171 = vadd.xlane.f32.xlu0 %v170
    %v172 = vpop.xlane.xlu0 %171
    %v173 = vsel %vm139, %v163, 0.0
    %174 = vadd.xlane.f32.xlu0 %v173
    %v175 = vpop.xlane.xlu0 %174
    %v176 = vmul.f32 %v166, %v100
    %v177 = vmul.f32 %v169, %v100
    %v178 = vmul.f32 %v172, %v100
    %v179 = vmul.f32 %v175, %v100
    %v180 = vadd.f32 %v176, 1e-05
    %v181 = vadd.f32 %v177, 1e-05
    %v182 = vadd.f32 %v178, 1e-05
    %v183 = vadd.f32 %v179, 1e-05
    %v184 = vrsqrt.pop %v180
    %v185 = vrsqrt.pop %v181
    %v186 = vrsqrt.pop %v182
    %v187 = vrsqrt.pop %v183
    %v188 = vmul.f32 %v156, %v184
    %v189 = vmul.f32 %v157, %v185
    %v190 = vmul.f32 %v158, %v186
    %v191 = vmul.f32 %v159, %v187
    %v192 = vmul.f32 %v188, %v126
    %v193 = vmul.f32 %v189, %v126
    %v194 = vmul.f32 %v190, %v126
    %v195 = vmul.f32 %v191, %v126
    %v196 = vadd.f32 %v192, %v135
    %v197 = vadd.f32 %v193, %v135
    %v198 = vadd.f32 %v194, %v135
    %v199 = vadd.f32 %v195, %v135
    %v202 = vcombine.low %v137, %v138
    %v204 = vpack.c.bf16 %v202, %v202
    %v205 = vld [vmem:[%s10] sm:$0xf]
    %v206 = vld [vmem:[%s10 + $0x4] sm:$0xf]
    %v207 = vld [vmem:[%s10 + $0x8] sm:$0xf]
    %v208 = vld [vmem:[%s10 + $0xc] sm:$0xf]
    %v209 = vld [vmem:[%s11] sm:$0x1]
    %v211 = vlaneseq
    %v212 = vshrl.u32 %v211, 7
    %v213 = vsub.s32 0, %v212
    %v214 = vrot.slane %v209, %v213
    %v220 = vunpack.c.l.b16 %v205
    %v221 = vunpack.c.l.b16 %v206
    %v222 = vunpack.c.l.b16 %v207
    %v223 = vunpack.c.l.b16 %v208
    %v224 = vpack.c.b16 %v221, %v220
    %v225 = vpack.c.b16 %v223, %v222
    %v229 = vsel %vm139, %v204, 0
    %231 = vmatprep.subr.bf16.mxu0 0
    %232 = vmatpush1.bf16.msra.mxu0 %v224
    %233 = vmatprep.subr.bf16.mxu0 0
    %234 = vmatpush1.bf16.msra.mxu0 %v225
    %235 = vmatprep.subr.bf16.mxu0 0
    %236 = vmatpush1.bf16.msra.mxu0 0
    %237 = vmatprep.subr.bf16.mxu0 0
    %238 = vmatpush1.bf16.msra.mxu0 0
    %239 = vmatprep.subr.bf16.mxu0 0
    %240 = vmatpush1.bf16.msra.mxu0 0
    %241 = vmatprep.subr.bf16.mxu0 0
    %242 = vmatpush1.bf16.msra.mxu0 0
    %243 = vmatprep.subr.bf16.mxu0 0
    %244 = vmatpush1.bf16.msra.mxu0 0
    %245 = vmatprep.subr.bf16.mxu0 0
    %246 = vmatpush1.bf16.msra.mxu0 0
    %247 = vmatprep.subr.bf16.mxu0 0
    %248 = vmatpush1.bf16.msra.mxu0 0
    %249 = vmatprep.subr.bf16.mxu0 0
    %250 = vmatpush1.bf16.msra.mxu0 0
    %251 = vmatprep.subr.bf16.mxu0 0
    %252 = vmatpush1.bf16.msra.mxu0 0
    %253 = vmatprep.subr.bf16.mxu0 0
    %254 = vmatpush1.bf16.msra.mxu0 0
    %255 = vmatprep.subr.bf16.mxu0 0
    %256 = vmatpush1.bf16.msra.mxu0 0
    %257 = vmatprep.subr.bf16.mxu0 0
    %258 = vmatpush1.bf16.msra.mxu0 0
    %259 = vmatprep.subr.bf16.mxu0 0
    %260 = vmatpush1.bf16.msra.mxu0 0
    %261 = vmatprep.subr.bf16.mxu0 0
    %262 = vmatpush1.bf16.msra.mxu0 0
    %263 = vmatprep.mubr.bf16.mxu0 0
    %264 = vmatmul.mubr.bf16.gmra.mrb[0].mxu0 %v229
    %v265 = vpop.f32.mrb[0].mxu0
    %v266 = vadd.f32 %v214, %v265
    %v267 = vpop.f32.mrb[0].mxu0
    %v268 = vpop.f32.mrb[0].mxu0
    %v269 = vpop.f32.mrb[0].mxu0
    %270 = vdwg.mxu0
    %v271 = vpack.c.bf16 %v197, %v196
    %v272 = vpack.c.bf16 %v199, %v198
    %v273 = vld [vmem:[%s12] sm:$0xf]
    %v274 = vld [vmem:[%s12 + $0x4] sm:$0xf]
    %v275 = vld [vmem:[%s12 + $0x8] sm:$0xf]
    %v276 = vld [vmem:[%s12 + $0xc] sm:$0xf]
    %v277 = vld [vmem:[%s13] sm:$0x1]
    %v279 = vlaneseq
    %v280 = vshrl.u32 %v279, 7
    %v281 = vsub.s32 0, %v280
    %v282 = vrot.slane %v277, %v281
    %v288 = vunpack.c.l.b16 %v273
    %v289 = vunpack.c.l.b16 %v274
    %v290 = vunpack.c.l.b16 %v275
    %v291 = vunpack.c.l.b16 %v276
    %v292 = vpack.c.b16 %v289, %v288
    %v293 = vpack.c.b16 %v291, %v290
    %v297 = vsel %vm139, %v271, 0
    %v300 = vsel %vm139, %v272, 0
    %302 = vmatprep.subr.bf16.mxu0 0
    %303 = vmatpush1.bf16.msra.mxu0 %v292
    %304 = vmatprep.subr.bf16.mxu0 0
    %305 = vmatpush1.bf16.msra.mxu0 %v293
    %306 = vmatprep.subr.bf16.mxu0 0
    %307 = vmatpush1.bf16.msra.mxu0 0
    %308 = vmatprep.subr.bf16.mxu0 0
    %309 = vmatpush1.bf16.msra.mxu0 0
    %310 = vmatprep.subr.bf16.mxu0 0
    %311 = vmatpush1.bf16.msra.mxu0 0
    %312 = vmatprep.subr.bf16.mxu0 0
    %313 = vmatpush1.bf16.msra.mxu0 0
    %314 = vmatprep.subr.bf16.mxu0 0
    %315 = vmatpush1.bf16.msra.mxu0 0
    %316 = vmatprep.subr.bf16.mxu0 0
    %317 = vmatpush1.bf16.msra.mxu0 0
    %318 = vmatprep.subr.bf16.mxu0 0
    %319 = vmatpush1.bf16.msra.mxu0 0
    %320 = vmatprep.subr.bf16.mxu0 0
    %321 = vmatpush1.bf16.msra.mxu0 0
    %322 = vmatprep.subr.bf16.mxu0 0
    %323 = vmatpush1.bf16.msra.mxu0 0
    %324 = vmatprep.subr.bf16.mxu0 0
    %325 = vmatpush1.bf16.msra.mxu0 0
    %326 = vmatprep.subr.bf16.mxu0 0
    %327 = vmatpush1.bf16.msra.mxu0 0
    %328 = vmatprep.subr.bf16.mxu0 0
    %329 = vmatpush1.bf16.msra.mxu0 0
    %330 = vmatprep.subr.bf16.mxu0 0
    %331 = vmatpush1.bf16.msra.mxu0 0
    %332 = vmatprep.subr.bf16.mxu0 0
    %333 = vmatpush1.bf16.msra.mxu0 0
    %334 = vmatprep.mubr.bf16.mxu0 0
    %335 = vmatmul.mubr.bf16.gmra.mrb[0].mxu0 %v297
    %v336 = vpop.f32.mrb[0].mxu0
    %v337 = vadd.f32 %v282, %v336
    %v338 = vpop.f32.mrb[0].mxu0
    %v339 = vpop.f32.mrb[0].mxu0
    %v340 = vadd.f32 %v282, %v339
    %v341 = vpop.f32.mrb[0].mxu0
    %342 = vmatprep.mubr.bf16.mxu0 0
    %343 = vmatmul.mubr.bf16.gmra.mrb[0].mxu0 %v300
    %v344 = vpop.f32.mrb[0].mxu0
    %v345 = vadd.f32 %v282, %v344
    %v346 = vpop.f32.mrb[0].mxu0
    %v347 = vpop.f32.mrb[0].mxu0
    %v348 = vadd.f32 %v282, %v347
    %v349 = vpop.f32.mrb[0].mxu0
    %350 = vdwg.mxu0
    %v352 = vcombine.high %v266, %v266
    %v354 = vpack.c.bf16 %v266, %v266
    %v355 = vpack.c.bf16 %v352, %v352
    %v356 = vpack.c.bf16 %v340, %v337
    %v357 = vpack.c.bf16 %v348, %v345
    %vm358 = vcmask 64512
    %v360 = vsel %vm358, %v354, 0
    %v363 = vsel %vm358, %v356, 0
    %365 = vmatprep.subr.bf16.mxu0 0
    %366 = vmatpush1.bf16.xpose.msra.mxu0 %v363
    %367 = vmatprep.subr.bf16.mxu0 0
    %368 = vmatpush1.bf16.xpose.msra.mxu0 0
    %369 = vmatprep.subr.bf16.mxu0 0
    %370 = vmatpush1.bf16.xpose.msra.mxu0 0
    %371 = vmatprep.subr.bf16.mxu0 0
    %372 = vmatpush1.bf16.xpose.msra.mxu0 0
    %373 = vmatprep.subr.bf16.mxu0 0
    %374 = vmatpush1.bf16.xpose.msra.mxu0 0
    %375 = vmatprep.subr.bf16.mxu0 0
    %376 = vmatpush1.bf16.xpose.msra.mxu0 0
    %377 = vmatprep.subr.bf16.mxu0 0
    %378 = vmatpush1.bf16.xpose.msra.mxu0 0
    %379 = vmatprep.subr.bf16.mxu0 0
    %380 = vmatpush1.bf16.xpose.msra.mxu0 0
    %381 = vmatprep.subr.bf16.mxu0 0
    %382 = vmatpush1.bf16.xpose.msra.mxu0 0
    %383 = vmatprep.subr.bf16.mxu0 0
    %384 = vmatpush1.bf16.xpose.msra.mxu0 0
    %385 = vmatprep.subr.bf16.mxu0 0
    %386 = vmatpush1.bf16.xpose.msra.mxu0 0
    %387 = vmatprep.subr.bf16.mxu0 0
    %388 = vmatpush1.bf16.xpose.msra.mxu0 0
    %389 = vmatprep.subr.bf16.mxu0 0
    %390 = vmatpush1.bf16.xpose.msra.mxu0 0
    %391 = vmatprep.subr.bf16.mxu0 0
    %392 = vmatpush1.bf16.xpose.msra.mxu0 0
    %393 = vmatprep.subr.bf16.mxu0 0
    %394 = vmatpush1.bf16.xpose.msra.mxu0 0
    %395 = vmatprep.subr.bf16.mxu0 0
    %396 = vmatpush1.bf16.xpose.msra.mxu0 0
    %397 = vmatprep.mubr.bf16.mxu0 0
    %398 = vmatmul.mubr.bf16.gmra.mrb[0].mxu0 %v360
    %v399 = vpop.f32.mrb[0].mxu0
    %v400 = vadd.f32 0.0, %v399
    %v401 = vpop.f32.mrb[0].mxu0
    %v402 = vpop.f32.mrb[0].mxu0
    %v403 = vpop.f32.mrb[0].mxu0
    %404 = vdwg.mxu0
    %v406 = vsel %vm358, %v355, 0
    %v409 = vsel %vm358, %v357, 0
    %411 = vmatprep.subr.bf16.mxu0 0
    %412 = vmatpush1.bf16.xpose.msra.mxu0 %v409
    %413 = vmatprep.subr.bf16.mxu0 0
    %414 = vmatpush1.bf16.xpose.msra.mxu0 0
    %415 = vmatprep.subr.bf16.mxu0 0
    %416 = vmatpush1.bf16.xpose.msra.mxu0 0
    %417 = vmatprep.subr.bf16.mxu0 0
    %418 = vmatpush1.bf16.xpose.msra.mxu0 0
    %419 = vmatprep.subr.bf16.mxu0 0
    %420 = vmatpush1.bf16.xpose.msra.mxu0 0
    %421 = vmatprep.subr.bf16.mxu0 0
    %422 = vmatpush1.bf16.xpose.msra.mxu0 0
    %423 = vmatprep.subr.bf16.mxu0 0
    %424 = vmatpush1.bf16.xpose.msra.mxu0 0
    %425 = vmatprep.subr.bf16.mxu0 0
    %426 = vmatpush1.bf16.xpose.msra.mxu0 0
    %427 = vmatprep.subr.bf16.mxu0 0
    %428 = vmatpush1.bf16.xpose.msra.mxu0 0
    %429 = vmatprep.subr.bf16.mxu0 0
    %430 = vmatpush1.bf16.xpose.msra.mxu0 0
    %431 = vmatprep.subr.bf16.mxu0 0
    %432 = vmatpush1.bf16.xpose.msra.mxu0 0
    %433 = vmatprep.subr.bf16.mxu0 0
    %434 = vmatpush1.bf16.xpose.msra.mxu0 0
    %435 = vmatprep.subr.bf16.mxu0 0
    %436 = vmatpush1.bf16.xpose.msra.mxu0 0
    %437 = vmatprep.subr.bf16.mxu0 0
    %438 = vmatpush1.bf16.xpose.msra.mxu0 0
    %439 = vmatprep.subr.bf16.mxu0 0
    %440 = vmatpush1.bf16.xpose.msra.mxu0 0
    %441 = vmatprep.subr.bf16.mxu0 0
    %442 = vmatpush1.bf16.xpose.msra.mxu0 0
    %443 = vmatprep.mubr.bf16.mxu0 0
    %444 = vmatmul.mubr.bf16.gmra.mrb[0].mxu0 %v406
    %v445 = vpop.f32.mrb[0].mxu0
    %v446 = vadd.f32 0.0, %v445
    %v447 = vpop.f32.mrb[0].mxu0
    %v448 = vpop.f32.mrb[0].mxu0
    %v449 = vpop.f32.mrb[0].mxu0
    %450 = vdwg.mxu0
    %v451 = vmul.f32 %v400, 0.35355338
    %v452 = vmul.f32 %v446, 0.35355338
    %vm453 = vcmask 125952
    %v454 = vsel %vm453, %v451, -inf
    %455 = vmax.xlane.f32.xlu0 %v454
    %v456 = vpop.xlane.xlu0 %455
    %v457 = vsel %vm453, %v452, -inf
    %458 = vmax.xlane.f32.xlu0 %v457
    %v459 = vpop.xlane.xlu0 %458
    %v460 = vsub.f32 %v451, %v456
    %v461 = vsub.f32 %v452, %v459
    %v462 = vmul.f32 %v460, 1.442695
    %v463 = vpow.pop %v462
    %v464 = vmul.f32 %v461, 1.442695
    %v465 = vpow.pop %v464
    %v466 = vsel %vm453, %v463, 0.0
    %467 = vadd.xlane.f32.xlu0 %v466
    %v468 = vpop.xlane.xlu0 %467
    %v469 = vsel %vm453, %v465, 0.0
    %470 = vadd.xlane.f32.xlu0 %v469
    %v471 = vpop.xlane.xlu0 %470
    %v472 = vrcp.pop %v468
    %v473 = vrcp.pop %v471
    %v474 = vmul.f32 %v463, %v472
    %v475 = vmul.f32 %v465, %v473
    %v476 = vpack.c.bf16 %v474, %v474
    %v477 = vpack.c.bf16 %v475, %v475
    %479 = vrot.lane.b32.xlu0 %v356, 96
    %v480 = vpop.permute.xlu0 %479
    %vm482 = vcmask 130048
    %v484 = vsel %vm482, %v476, 0
    %486 = vmatprep.subr.bf16.mxu0 0
    %487 = vmatpush1.bf16.msra.mxu0 %v480
    %488 = vmatprep.subr.bf16.mxu0 0
    %489 = vmatpush1.bf16.msra.mxu0 0
    %490 = vmatprep.subr.bf16.mxu0 0
    %491 = vmatpush1.bf16.msra.mxu0 0
    %492 = vmatprep.subr.bf16.mxu0 0
    %493 = vmatpush1.bf16.msra.mxu0 0
    %494 = vmatprep.subr.bf16.mxu0 0
    %495 = vmatpush1.bf16.msra.mxu0 0
    %496 = vmatprep.subr.bf16.mxu0 0
    %497 = vmatpush1.bf16.msra.mxu0 0
    %498 = vmatprep.subr.bf16.mxu0 0
    %499 = vmatpush1.bf16.msra.mxu0 0
    %500 = vmatprep.subr.bf16.mxu0 0
    %501 = vmatpush1.bf16.msra.mxu0 0
    %502 = vmatprep.subr.bf16.mxu0 0
    %503 = vmatpush1.bf16.msra.mxu0 0
    %504 = vmatprep.subr.bf16.mxu0 0
    %505 = vmatpush1.bf16.msra.mxu0 0
    %506 = vmatprep.subr.bf16.mxu0 0
    %507 = vmatpush1.bf16.msra.mxu0 0
    %508 = vmatprep.subr.bf16.mxu0 0
    %509 = vmatpush1.bf16.msra.mxu0 0
    %510 = vmatprep.subr.bf16.mxu0 0
    %511 = vmatpush1.bf16.msra.mxu0 0
    %512 = vmatprep.subr.bf16.mxu0 0
    %513 = vmatpush1.bf16.msra.mxu0 0
    %514 = vmatprep.subr.bf16.mxu0 0
    %515 = vmatpush1.bf16.msra.mxu0 0
    %516 = vmatprep.subr.bf16.mxu0 0
    %517 = vmatpush1.bf16.msra.mxu0 0
    %518 = vmatprep.mubr.bf16.mxu0 0
    %519 = vmatmul.mubr.bf16.gmra.mrb[0].mxu0 %v484
    %v520 = vpop.f32.mrb[0].mxu0
    %v521 = vadd.f32 0.0, %v520
    %v522 = vpop.f32.mrb[0].mxu0
    %v523 = vpop.f32.mrb[0].mxu0
    %v524 = vpop.f32.mrb[0].mxu0
    %525 = vdwg.mxu0
    %527 = vrot.lane.b32.xlu0 %v357, 96
    %v528 = vpop.permute.xlu0 %527
    %v531 = vsel %vm482, %v477, 0
    %533 = vmatprep.subr.bf16.mxu0 0
    %534 = vmatpush1.bf16.msra.mxu0 %v528
    %535 = vmatprep.subr.bf16.mxu0 0
    %536 = vmatpush1.bf16.msra.mxu0 0
    %537 = vmatprep.subr.bf16.mxu0 0
    %538 = vmatpush1.bf16.msra.mxu0 0
    %539 = vmatprep.subr.bf16.mxu0 0
    %540 = vmatpush1.bf16.msra.mxu0 0
    %541 = vmatprep.subr.bf16.mxu0 0
    %542 = vmatpush1.bf16.msra.mxu0 0
    %543 = vmatprep.subr.bf16.mxu0 0
    %544 = vmatpush1.bf16.msra.mxu0 0
    %545 = vmatprep.subr.bf16.mxu0 0
    %546 = vmatpush1.bf16.msra.mxu0 0
    %547 = vmatprep.subr.bf16.mxu0 0
    %548 = vmatpush1.bf16.msra.mxu0 0
    %549 = vmatprep.subr.bf16.mxu0 0
    %550 = vmatpush1.bf16.msra.mxu0 0
    %551 = vmatprep.subr.bf16.mxu0 0
    %552 = vmatpush1.bf16.msra.mxu0 0
    %553 = vmatprep.subr.bf16.mxu0 0
    %554 = vmatpush1.bf16.msra.mxu0 0
    %555 = vmatprep.subr.bf16.mxu0 0
    %556 = vmatpush1.bf16.msra.mxu0 0
    %557 = vmatprep.subr.bf16.mxu0 0
    %558 = vmatpush1.bf16.msra.mxu0 0
    %559 = vmatprep.subr.bf16.mxu0 0
    %560 = vmatpush1.bf16.msra.mxu0 0
    %561 = vmatprep.subr.bf16.mxu0 0
    %562 = vmatpush1.bf16.msra.mxu0 0
    %563 = vmatprep.subr.bf16.mxu0 0
    %564 = vmatpush1.bf16.msra.mxu0 0
    %565 = vmatprep.mubr.bf16.mxu0 0
    %566 = vmatmul.mubr.bf16.gmra.mrb[0].mxu0 %v531
    %v567 = vpop.f32.mrb[0].mxu0
    %v568 = vadd.f32 0.0, %v567
    %v569 = vpop.f32.mrb[0].mxu0
    %v570 = vpop.f32.mrb[0].mxu0
    %v571 = vpop.f32.mrb[0].mxu0
    %572 = vdwg.mxu0
    %574 = vrot.lane.b32.xlu0 %v354, 120
    %v575 = vpop.permute.xlu0 %574
    %576 = vrot.lane.b32.xlu0 %v356, 120
    %v577 = vpop.permute.xlu0 %576
    %v579 = vsel %vm358, %v575, 0
    %v582 = vsel %vm358, %v577, 0
    %584 = vmatprep.subr.bf16.mxu0 0
    %585 = vmatpush1.bf16.xpose.msra.mxu0 %v582
    %586 = vmatprep.subr.bf16.mxu0 0
    %587 = vmatpush1.bf16.xpose.msra.mxu0 0
    %588 = vmatprep.subr.bf16.mxu0 0
    %589 = vmatpush1.bf16.xpose.msra.mxu0 0
    %590 = vmatprep.subr.bf16.mxu0 0
    %591 = vmatpush1.bf16.xpose.msra.mxu0 0
    %592 = vmatprep.subr.bf16.mxu0 0
    %593 = vmatpush1.bf16.xpose.msra.mxu0 0
    %594 = vmatprep.subr.bf16.mxu0 0
    %595 = vmatpush1.bf16.xpose.msra.mxu0 0
    %596 = vmatprep.subr.bf16.mxu0 0
    %597 = vmatpush1.bf16.xpose.msra.mxu0 0
    %598 = vmatprep.subr.bf16.mxu0 0
    %599 = vmatpush1.bf16.xpose.msra.mxu0 0
    %600 = vmatprep.subr.bf16.mxu0 0
    %601 = vmatpush1.bf16.xpose.msra.mxu0 0
    %602 = vmatprep.subr.bf16.mxu0 0
    %603 = vmatpush1.bf16.xpose.msra.mxu0 0
    %604 = vmatprep.subr.bf16.mxu0 0
    %605 = vmatpush1.bf16.xpose.msra.mxu0 0
    %606 = vmatprep.subr.bf16.mxu0 0
    %607 = vmatpush1.bf16.xpose.msra.mxu0 0
    %608 = vmatprep.subr.bf16.mxu0 0
    %609 = vmatpush1.bf16.xpose.msra.mxu0 0
    %610 = vmatprep.subr.bf16.mxu0 0
    %611 = vmatpush1.bf16.xpose.msra.mxu0 0
    %612 = vmatprep.subr.bf16.mxu0 0
    %613 = vmatpush1.bf16.xpose.msra.mxu0 0
    %614 = vmatprep.subr.bf16.mxu0 0
    %615 = vmatpush1.bf16.xpose.msra.mxu0 0
    %616 = vmatprep.mubr.bf16.mxu0 0
    %617 = vmatmul.mubr.bf16.gmra.mrb[0].mxu0 %v579
    %v618 = vpop.f32.mrb[0].mxu0
    %v619 = vadd.f32 0.0, %v618
    %v620 = vpop.f32.mrb[0].mxu0
    %v621 = vpop.f32.mrb[0].mxu0
    %v622 = vpop.f32.mrb[0].mxu0
    %623 = vdwg.mxu0
    %625 = vrot.lane.b32.xlu0 %v355, 120
    %v626 = vpop.permute.xlu0 %625
    %627 = vrot.lane.b32.xlu0 %v357, 120
    %v628 = vpop.permute.xlu0 %627
    %v630 = vsel %vm358, %v626, 0
    %v633 = vsel %vm358, %v628, 0
    %635 = vmatprep.subr.bf16.mxu0 0
    %636 = vmatpush1.bf16.xpose.msra.mxu0 %v633
    %637 = vmatprep.subr.bf16.mxu0 0
    %638 = vmatpush1.bf16.xpose.msra.mxu0 0
    %639 = vmatprep.subr.bf16.mxu0 0
    %640 = vmatpush1.bf16.xpose.msra.mxu0 0
    %641 = vmatprep.subr.bf16.mxu0 0
    %642 = vmatpush1.bf16.xpose.msra.mxu0 0
    %643 = vmatprep.subr.bf16.mxu0 0
    %644 = vmatpush1.bf16.xpose.msra.mxu0 0
    %645 = vmatprep.subr.bf16.mxu0 0
    %646 = vmatpush1.bf16.xpose.msra.mxu0 0
    %647 = vmatprep.subr.bf16.mxu0 0
    %648 = vmatpush1.bf16.xpose.msra.mxu0 0
    %649 = vmatprep.subr.bf16.mxu0 0
    %650 = vmatpush1.bf16.xpose.msra.mxu0 0
    %651 = vmatprep.subr.bf16.mxu0 0
    %652 = vmatpush1.bf16.xpose.msra.mxu0 0
    %653 = vmatprep.subr.bf16.mxu0 0
    %654 = vmatpush1.bf16.xpose.msra.mxu0 0
    %655 = vmatprep.subr.bf16.mxu0 0
    %656 = vmatpush1.bf16.xpose.msra.mxu0 0
    %657 = vmatprep.subr.bf16.mxu0 0
    %658 = vmatpush1.bf16.xpose.msra.mxu0 0
    %659 = vmatprep.subr.bf16.mxu0 0
    %660 = vmatpush1.bf16.xpose.msra.mxu0 0
    %661 = vmatprep.subr.bf16.mxu0 0
    %662 = vmatpush1.bf16.xpose.msra.mxu0 0
    %663 = vmatprep.subr.bf16.mxu0 0
    %664 = vmatpush1.bf16.xpose.msra.mxu0 0
    %665 = vmatprep.subr.bf16.mxu0 0
    %666 = vmatpush1.bf16.xpose.msra.mxu0 0
    %667 = vmatprep.mubr.bf16.mxu0 0
    %668 = vmatmul.mubr.bf16.gmra.mrb[0].mxu0 %v630
    %v669 = vpop.f32.mrb[0].mxu0
    %v670 = vadd.f32 0.0, %v669
    %v671 = vpop.f32.mrb[0].mxu0
    %v672 = vpop.f32.mrb[0].mxu0
    %v673 = vpop.f32.mrb[0].mxu0
    %674 = vdwg.mxu0
    %v675 = vmul.f32 %v619, 0.35355338
    %v676 = vmul.f32 %v670, 0.35355338
    %v677 = vsel %vm453, %v675, -inf
    %678 = vmax.xlane.f32.xlu0 %v677
    %v679 = vpop.xlane.xlu0 %678
    %v680 = vsel %vm453, %v676, -inf
    %681 = vmax.xlane.f32.xlu0 %v680
    %v682 = vpop.xlane.xlu0 %681
    %v683 = vsub.f32 %v675, %v679
    %v684 = vsub.f32 %v676, %v682
    %v685 = vmul.f32 %v683, 1.442695
    %v686 = vpow.pop %v685
    %v687 = vmul.f32 %v684, 1.442695
    %v688 = vpow.pop %v687
    %v689 = vsel %vm453, %v686, 0.0
    %690 = vadd.xlane.f32.xlu0 %v689
    %v691 = vpop.xlane.xlu0 %690
    %v692 = vsel %vm453, %v688, 0.0
    %693 = vadd.xlane.f32.xlu0 %v692
    %v694 = vpop.xlane.xlu0 %693
    %v695 = vrcp.pop %v691
    %v696 = vrcp.pop %v694
    %v697 = vmul.f32 %v686, %v695
    %v698 = vmul.f32 %v688, %v696
    %v699 = vpack.c.bf16 %v697, %v697
    %v700 = vpack.c.bf16 %v698, %v698
    %701 = vrot.lane.b32.xlu0 %v356, 88
    %v702 = vpop.permute.xlu0 %701
    %v705 = vsel %vm482, %v699, 0
    %707 = vmatprep.subr.bf16.mxu0 0
    %708 = vmatpush1.bf16.msra.mxu0 %v702
    %709 = vmatprep.subr.bf16.mxu0 0
    %710 = vmatpush1.bf16.msra.mxu0 0
    %711 = vmatprep.subr.bf16.mxu0 0
    %712 = vmatpush1.bf16.msra.mxu0 0
    %713 = vmatprep.subr.bf16.mxu0 0
    %714 = vmatpush1.bf16.msra.mxu0 0
    %715 = vmatprep.subr.bf16.mxu0 0
    %716 = vmatpush1.bf16.msra.mxu0 0
    %717 = vmatprep.subr.bf16.mxu0 0
    %718 = vmatpush1.bf16.msra.mxu0 0
    %719 = vmatprep.subr.bf16.mxu0 0
    %720 = vmatpush1.bf16.msra.mxu0 0
    %721 = vmatprep.subr.bf16.mxu0 0
    %722 = vmatpush1.bf16.msra.mxu0 0
    %723 = vmatprep.subr.bf16.mxu0 0
    %724 = vmatpush1.bf16.msra.mxu0 0
    %725 = vmatprep.subr.bf16.mxu0 0
    %726 = vmatpush1.bf16.msra.mxu0 0
    %727 = vmatprep.subr.bf16.mxu0 0
    %728 = vmatpush1.bf16.msra.mxu0 0
    %729 = vmatprep.subr.bf16.mxu0 0
    %730 = vmatpush1.bf16.msra.mxu0 0
    %731 = vmatprep.subr.bf16.mxu0 0
    %732 = vmatpush1.bf16.msra.mxu0 0
    %733 = vmatprep.subr.bf16.mxu0 0
    %734 = vmatpush1.bf16.msra.mxu0 0
    %735 = vmatprep.subr.bf16.mxu0 0
    %736 = vmatpush1.bf16.msra.mxu0 0
    %737 = vmatprep.subr.bf16.mxu0 0
    %738 = vmatpush1.bf16.msra.mxu0 0
    %739 = vmatprep.mubr.bf16.mxu0 0
    %740 = vmatmul.mubr.bf16.gmra.mrb[0].mxu0 %v705
    %v741 = vpop.f32.mrb[0].mxu0
    %v742 = vadd.f32 0.0, %v741
    %v743 = vpop.f32.mrb[0].mxu0
    %v744 = vpop.f32.mrb[0].mxu0
    %v745 = vpop.f32.mrb[0].mxu0
    %746 = vdwg.mxu0
    %747 = vrot.lane.b32.xlu0 %v357, 88
    %v748 = vpop.permute.xlu0 %747
    %v751 = vsel %vm482, %v700, 0
    %753 = vmatprep.subr.bf16.mxu0 0
    %754 = vmatpush1.bf16.msra.mxu0 %v748
    %755 = vmatprep.subr.bf16.mxu0 0
    %756 = vmatpush1.bf16.msra.mxu0 0
    %757 = vmatprep.subr.bf16.mxu0 0
    %758 = vmatpush1.bf16.msra.mxu0 0
    %759 = vmatprep.subr.bf16.mxu0 0
    %760 = vmatpush1.bf16.msra.mxu0 0
    %761 = vmatprep.subr.bf16.mxu0 0
    %762 = vmatpush1.bf16.msra.mxu0 0
    %763 = vmatprep.subr.bf16.mxu0 0
    %764 = vmatpush1.bf16.msra.mxu0 0
    %765 = vmatprep.subr.bf16.mxu0 0
    %766 = vmatpush1.bf16.msra.mxu0 0
    %767 = vmatprep.subr.bf16.mxu0 0
    %768 = vmatpush1.bf16.msra.mxu0 0
    %769 = vmatprep.subr.bf16.mxu0 0
    %770 = vmatpush1.bf16.msra.mxu0 0
    %771 = vmatprep.subr.bf16.mxu0 0
    %772 = vmatpush1.bf16.msra.mxu0 0
    %773 = vmatprep.subr.bf16.mxu0 0
    %774 = vmatpush1.bf16.msra.mxu0 0
    %775 = vmatprep.subr.bf16.mxu0 0
    %776 = vmatpush1.bf16.msra.mxu0 0
    %777 = vmatprep.subr.bf16.mxu0 0
    %778 = vmatpush1.bf16.msra.mxu0 0
    %779 = vmatprep.subr.bf16.mxu0 0
    %780 = vmatpush1.bf16.msra.mxu0 0
    %781 = vmatprep.subr.bf16.mxu0 0
    %782 = vmatpush1.bf16.msra.mxu0 0
    %783 = vmatprep.subr.bf16.mxu0 0
    %784 = vmatpush1.bf16.msra.mxu0 0
    %785 = vmatprep.mubr.bf16.mxu0 0
    %786 = vmatmul.mubr.bf16.gmra.mrb[0].mxu0 %v751
    %v787 = vpop.f32.mrb[0].mxu0
    %v788 = vadd.f32 0.0, %v787
    %v789 = vpop.f32.mrb[0].mxu0
    %v790 = vpop.f32.mrb[0].mxu0
    %v791 = vpop.f32.mrb[0].mxu0
    %792 = vdwg.mxu0
    %v793 = vadd.f32 %v474, %v697
    %v794 = vadd.f32 %v475, %v698
    %795 = vrot.lane.b32.xlu0 %v354, 112
    %v796 = vpop.permute.xlu0 %795
    %797 = vrot.lane.b32.xlu0 %v356, 112
    %v798 = vpop.permute.xlu0 %797
    %v800 = vsel %vm358, %v796, 0
    %v803 = vsel %vm358, %v798, 0
    %805 = vmatprep.subr.bf16.mxu0 0
    %806 = vmatpush1.bf16.xpose.msra.mxu0 %v803
    %807 = vmatprep.subr.bf16.mxu0 0
    %808 = vmatpush1.bf16.xpose.msra.mxu0 0
    %809 = vmatprep.subr.bf16.mxu0 0
    %810 = vmatpush1.bf16.xpose.msra.mxu0 0
    %811 = vmatprep.subr.bf16.mxu0 0
    %812 = vmatpush1.bf16.xpose.msra.mxu0 0
    %813 = vmatprep.subr.bf16.mxu0 0
    %814 = vmatpush1.bf16.xpose.msra.mxu0 0
    %815 = vmatprep.subr.bf16.mxu0 0
    %816 = vmatpush1.bf16.xpose.msra.mxu0 0
    %817 = vmatprep.subr.bf16.mxu0 0
    %818 = vmatpush1.bf16.xpose.msra.mxu0 0
    %819 = vmatprep.subr.bf16.mxu0 0
    %820 = vmatpush1.bf16.xpose.msra.mxu0 0
    %821 = vmatprep.subr.bf16.mxu0 0
    %822 = vmatpush1.bf16.xpose.msra.mxu0 0
    %823 = vmatprep.subr.bf16.mxu0 0
    %824 = vmatpush1.bf16.xpose.msra.mxu0 0
    %825 = vmatprep.subr.bf16.mxu0 0
    %826 = vmatpush1.bf16.xpose.msra.mxu0 0
    %827 = vmatprep.subr.bf16.mxu0 0
    %828 = vmatpush1.bf16.xpose.msra.mxu0 0
    %829 = vmatprep.subr.bf16.mxu0 0
    %830 = vmatpush1.bf16.xpose.msra.mxu0 0
    %831 = vmatprep.subr.bf16.mxu0 0
    %832 = vmatpush1.bf16.xpose.msra.mxu0 0
    %833 = vmatprep.subr.bf16.mxu0 0
    %834 = vmatpush1.bf16.xpose.msra.mxu0 0
    %835 = vmatprep.subr.bf16.mxu0 0
    %836 = vmatpush1.bf16.xpose.msra.mxu0 0
    %837 = vmatprep.mubr.bf16.mxu0 0
    %838 = vmatmul.mubr.bf16.gmra.mrb[0].mxu0 %v800
    %v839 = vpop.f32.mrb[0].mxu0
    %v840 = vadd.f32 0.0, %v839
    %v841 = vpop.f32.mrb[0].mxu0
    %v842 = vpop.f32.mrb[0].mxu0
    %v843 = vpop.f32.mrb[0].mxu0
    %844 = vdwg.mxu0
    %845 = vrot.lane.b32.xlu0 %v355, 112
    %v846 = vpop.permute.xlu0 %845
    %847 = vrot.lane.b32.xlu0 %v357, 112
    %v848 = vpop.permute.xlu0 %847
    %v850 = vsel %vm358, %v846, 0
    %v853 = vsel %vm358, %v848, 0
    %855 = vmatprep.subr.bf16.mxu0 0
    %856 = vmatpush1.bf16.xpose.msra.mxu0 %v853
    %857 = vmatprep.subr.bf16.mxu0 0
    %858 = vmatpush1.bf16.xpose.msra.mxu0 0
    %859 = vmatprep.subr.bf16.mxu0 0
    %860 = vmatpush1.bf16.xpose.msra.mxu0 0
    %861 = vmatprep.subr.bf16.mxu0 0
    %862 = vmatpush1.bf16.xpose.msra.mxu0 0
    %863 = vmatprep.subr.bf16.mxu0 0
    %864 = vmatpush1.bf16.xpose.msra.mxu0 0
    %865 = vmatprep.subr.bf16.mxu0 0
    %866 = vmatpush1.bf16.xpose.msra.mxu0 0
    %867 = vmatprep.subr.bf16.mxu0 0
    %868 = vmatpush1.bf16.xpose.msra.mxu0 0
    %869 = vmatprep.subr.bf16.mxu0 0
    %870 = vmatpush1.bf16.xpose.msra.mxu0 0
    %871 = vmatprep.subr.bf16.mxu0 0
    %872 = vmatpush1.bf16.xpose.msra.mxu0 0
    %873 = vmatprep.subr.bf16.mxu0 0
    %874 = vmatpush1.bf16.xpose.msra.mxu0 0
    %875 = vmatprep.subr.bf16.mxu0 0
    %876 = vmatpush1.bf16.xpose.msra.mxu0 0
    %877 = vmatprep.subr.bf16.mxu0 0
    %878 = vmatpush1.bf16.xpose.msra.mxu0 0
    %879 = vmatprep.subr.bf16.mxu0 0
    %880 = vmatpush1.bf16.xpose.msra.mxu0 0
    %881 = vmatprep.subr.bf16.mxu0 0
    %882 = vmatpush1.bf16.xpose.msra.mxu0 0
    %883 = vmatprep.subr.bf16.mxu0 0
    %884 = vmatpush1.bf16.xpose.msra.mxu0 0
    %885 = vmatprep.subr.bf16.mxu0 0
    %886 = vmatpush1.bf16.xpose.msra.mxu0 0
    %887 = vmatprep.mubr.bf16.mxu0 0
    %888 = vmatmul.mubr.bf16.gmra.mrb[0].mxu0 %v850
    %v889 = vpop.f32.mrb[0].mxu0
    %v890 = vadd.f32 0.0, %v889
    %v891 = vpop.f32.mrb[0].mxu0
    %v892 = vpop.f32.mrb[0].mxu0
    %v893 = vpop.f32.mrb[0].mxu0
    %894 = vdwg.mxu0
    %v895 = vmul.f32 %v840, 0.35355338
    %v896 = vmul.f32 %v890, 0.35355338
    %v897 = vsel %vm453, %v895, -inf
    %898 = vmax.xlane.f32.xlu0 %v897
    %v899 = vpop.xlane.xlu0 %898
    %v900 = vsel %vm453, %v896, -inf
    %901 = vmax.xlane.f32.xlu0 %v900
    %v902 = vpop.xlane.xlu0 %901
    %v903 = vsub.f32 %v895, %v899
    %v904 = vsub.f32 %v896, %v902
    %v905 = vmul.f32 %v903, 1.442695
    %v906 = vpow.pop %v905
    %v907 = vmul.f32 %v904, 1.442695
    %v908 = vpow.pop %v907
    %v909 = vsel %vm453, %v906, 0.0
    %910 = vadd.xlane.f32.xlu0 %v909
    %v911 = vpop.xlane.xlu0 %910
    %v912 = vsel %vm453, %v908, 0.0
    %913 = vadd.xlane.f32.xlu0 %v912
    %v914 = vpop.xlane.xlu0 %913
    %v915 = vrcp.pop %v911
    %v916 = vrcp.pop %v914
    %v917 = vmul.f32 %v906, %v915
    %v918 = vmul.f32 %v908, %v916
    %v919 = vpack.c.bf16 %v917, %v917
    %v920 = vpack.c.bf16 %v918, %v918
    %921 = vrot.lane.b32.xlu0 %v356, 80
    %v922 = vpop.permute.xlu0 %921
    %v925 = vsel %vm482, %v919, 0
    %927 = vmatprep.subr.bf16.mxu0 0
    %928 = vmatpush1.bf16.msra.mxu0 %v922
    %929 = vmatprep.subr.bf16.mxu0 0
    %930 = vmatpush1.bf16.msra.mxu0 0
    %931 = vmatprep.subr.bf16.mxu0 0
    %932 = vmatpush1.bf16.msra.mxu0 0
    %933 = vmatprep.subr.bf16.mxu0 0
    %934 = vmatpush1.bf16.msra.mxu0 0
    %935 = vmatprep.subr.bf16.mxu0 0
    %936 = vmatpush1.bf16.msra.mxu0 0
    %937 = vmatprep.subr.bf16.mxu0 0
    %938 = vmatpush1.bf16.msra.mxu0 0
    %939 = vmatprep.subr.bf16.mxu0 0
    %940 = vmatpush1.bf16.msra.mxu0 0
    %941 = vmatprep.subr.bf16.mxu0 0
    %942 = vmatpush1.bf16.msra.mxu0 0
    %943 = vmatprep.subr.bf16.mxu0 0
    %944 = vmatpush1.bf16.msra.mxu0 0
    %945 = vmatprep.subr.bf16.mxu0 0
    %946 = vmatpush1.bf16.msra.mxu0 0
    %947 = vmatprep.subr.bf16.mxu0 0
    %948 = vmatpush1.bf16.msra.mxu0 0
    %949 = vmatprep.subr.bf16.mxu0 0
    %950 = vmatpush1.bf16.msra.mxu0 0
    %951 = vmatprep.subr.bf16.mxu0 0
    %952 = vmatpush1.bf16.msra.mxu0 0
    %953 = vmatprep.subr.bf16.mxu0 0
    %954 = vmatpush1.bf16.msra.mxu0 0
    %955 = vmatprep.subr.bf16.mxu0 0
    %956 = vmatpush1.bf16.msra.mxu0 0
    %957 = vmatprep.subr.bf16.mxu0 0
    %958 = vmatpush1.bf16.msra.mxu0 0
    %959 = vmatprep.mubr.bf16.mxu0 0
    %960 = vmatmul.mubr.bf16.gmra.mrb[0].mxu0 %v925
    %v961 = vpop.f32.mrb[0].mxu0
    %v962 = vadd.f32 0.0, %v961
    %v963 = vpop.f32.mrb[0].mxu0
    %v964 = vpop.f32.mrb[0].mxu0
    %v965 = vpop.f32.mrb[0].mxu0
    %966 = vdwg.mxu0
    %967 = vrot.lane.b32.xlu0 %v357, 80
    %v968 = vpop.permute.xlu0 %967
    %v971 = vsel %vm482, %v920, 0
    %973 = vmatprep.subr.bf16.mxu0 0
    %974 = vmatpush1.bf16.msra.mxu0 %v968
    %975 = vmatprep.subr.bf16.mxu0 0
    %976 = vmatpush1.bf16.msra.mxu0 0
    %977 = vmatprep.subr.bf16.mxu0 0
    %978 = vmatpush1.bf16.msra.mxu0 0
    %979 = vmatprep.subr.bf16.mxu0 0
    %980 = vmatpush1.bf16.msra.mxu0 0
    %981 = vmatprep.subr.bf16.mxu0 0
    %982 = vmatpush1.bf16.msra.mxu0 0
    %983 = vmatprep.subr.bf16.mxu0 0
    %984 = vmatpush1.bf16.msra.mxu0 0
    %985 = vmatprep.subr.bf16.mxu0 0
    %986 = vmatpush1.bf16.msra.mxu0 0
    %987 = vmatprep.subr.bf16.mxu0 0
    %988 = vmatpush1.bf16.msra.mxu0 0
    %989 = vmatprep.subr.bf16.mxu0 0
    %990 = vmatpush1.bf16.msra.mxu0 0
    %991 = vmatprep.subr.bf16.mxu0 0
    %992 = vmatpush1.bf16.msra.mxu0 0
    %993 = vmatprep.subr.bf16.mxu0 0
    %994 = vmatpush1.bf16.msra.mxu0 0
    %995 = vmatprep.subr.bf16.mxu0 0
    %996 = vmatpush1.bf16.msra.mxu0 0
    %997 = vmatprep.subr.bf16.mxu0 0
    %998 = vmatpush1.bf16.msra.mxu0 0
    %999 = vmatprep.subr.bf16.mxu0 0
    %1000 = vmatpush1.bf16.msra.mxu0 0
    %1001 = vmatprep.subr.bf16.mxu0 0
    %1002 = vmatpush1.bf16.msra.mxu0 0
    %1003 = vmatprep.subr.bf16.mxu0 0
    %1004 = vmatpush1.bf16.msra.mxu0 0
    %1005 = vmatprep.mubr.bf16.mxu0 0
    %1006 = vmatmul.mubr.bf16.gmra.mrb[0].mxu0 %v971
    %v1007 = vpop.f32.mrb[0].mxu0
    %v1008 = vadd.f32 0.0, %v1007
    %v1009 = vpop.f32.mrb[0].mxu0
    %v1010 = vpop.f32.mrb[0].mxu0
    %v1011 = vpop.f32.mrb[0].mxu0
    %1012 = vdwg.mxu0
    %v1013 = vadd.f32 %v793, %v917
    %v1014 = vadd.f32 %v794, %v918
    %1015 = vrot.lane.b32.xlu0 %v354, 104
    %v1016 = vpop.permute.xlu0 %1015
    %1017 = vrot.lane.b32.xlu0 %v356, 104
    %v1018 = vpop.permute.xlu0 %1017
    %v1020 = vsel %vm358, %v1016, 0
    %v1023 = vsel %vm358, %v1018, 0
    %1025 = vmatprep.subr.bf16.mxu0 0
    %1026 = vmatpush1.bf16.xpose.msra.mxu0 %v1023
    %1027 = vmatprep.subr.bf16.mxu0 0
    %1028 = vmatpush1.bf16.xpose.msra.mxu0 0
    %1029 = vmatprep.subr.bf16.mxu0 0
    %1030 = vmatpush1.bf16.xpose.msra.mxu0 0
    %1031 = vmatprep.subr.bf16.mxu0 0
    %1032 = vmatpush1.bf16.xpose.msra.mxu0 0
    %1033 = vmatprep.subr.bf16.mxu0 0
    %1034 = vmatpush1.bf16.xpose.msra.mxu0 0
    %1035 = vmatprep.subr.bf16.mxu0 0
    %1036 = vmatpush1.bf16.xpose.msra.mxu0 0
    %1037 = vmatprep.subr.bf16.mxu0 0
    %1038 = vmatpush1.bf16.xpose.msra.mxu0 0
    %1039 = vmatprep.subr.bf16.mxu0 0
    %1040 = vmatpush1.bf16.xpose.msra.mxu0 0
    %1041 = vmatprep.subr.bf16.mxu0 0
    %1042 = vmatpush1.bf16.xpose.msra.mxu0 0
    %1043 = vmatprep.subr.bf16.mxu0 0
    %1044 = vmatpush1.bf16.xpose.msra.mxu0 0
    %1045 = vmatprep.subr.bf16.mxu0 0
    %1046 = vmatpush1.bf16.xpose.msra.mxu0 0
    %1047 = vmatprep.subr.bf16.mxu0 0
    %1048 = vmatpush1.bf16.xpose.msra.mxu0 0
    %1049 = vmatprep.subr.bf16.mxu0 0
    %1050 = vmatpush1.bf16.xpose.msra.mxu0 0
    %1051 = vmatprep.subr.bf16.mxu0 0
    %1052 = vmatpush1.bf16.xpose.msra.mxu0 0
    %1053 = vmatprep.subr.bf16.mxu0 0
    %1054 = vmatpush1.bf16.xpose.msra.mxu0 0
    %1055 = vmatprep.subr.bf16.mxu0 0
    %1056 = vmatpush1.bf16.xpose.msra.mxu0 0
    %1057 = vmatprep.mubr.bf16.mxu0 0
    %1058 = vmatmul.mubr.bf16.gmra.mrb[0].mxu0 %v1020
    %v1059 = vpop.f32.mrb[0].mxu0
    %v1060 = vadd.f32 0.0, %v1059
    %v1061 = vpop.f32.mrb[0].mxu0
    %v1062 = vpop.f32.mrb[0].mxu0
    %v1063 = vpop.f32.mrb[0].mxu0
    %1064 = vdwg.mxu0
    %1065 = vrot.lane.b32.xlu0 %v355, 104
    %v1066 = vpop.permute.xlu0 %1065
    %1067 = vrot.lane.b32.xlu0 %v357, 104
    %v1068 = vpop.permute.xlu0 %1067
    %v1070 = vsel %vm358, %v1066, 0
    %v1073 = vsel %vm358, %v1068, 0
    %1075 = vmatprep.subr.bf16.mxu0 0
    %1076 = vmatpush1.bf16.xpose.msra.mxu0 %v1073
    %1077 = vmatprep.subr.bf16.mxu0 0
    %1078 = vmatpush1.bf16.xpose.msra.mxu0 0
    %1079 = vmatprep.subr.bf16.mxu0 0
    %1080 = vmatpush1.bf16.xpose.msra.mxu0 0
    %1081 = vmatprep.subr.bf16.mxu0 0
    %1082 = vmatpush1.bf16.xpose.msra.mxu0 0
    %1083 = vmatprep.subr.bf16.mxu0 0
    %1084 = vmatpush1.bf16.xpose.msra.mxu0 0
    %1085 = vmatprep.subr.bf16.mxu0 0
    %1086 = vmatpush1.bf16.xpose.msra.mxu0 0
    %1087 = vmatprep.subr.bf16.mxu0 0
    %1088 = vmatpush1.bf16.xpose.msra.mxu0 0
    %1089 = vmatprep.subr.bf16.mxu0 0
    %1090 = vmatpush1.bf16.xpose.msra.mxu0 0
    %1091 = vmatprep.subr.bf16.mxu0 0
    %1092 = vmatpush1.bf16.xpose.msra.mxu0 0
    %1093 = vmatprep.subr.bf16.mxu0 0
    %1094 = vmatpush1.bf16.xpose.msra.mxu0 0
    %1095 = vmatprep.subr.bf16.mxu0 0
    %1096 = vmatpush1.bf16.xpose.msra.mxu0 0
    %1097 = vmatprep.subr.bf16.mxu0 0
    %1098 = vmatpush1.bf16.xpose.msra.mxu0 0
    %1099 = vmatprep.subr.bf16.mxu0 0
    %1100 = vmatpush1.bf16.xpose.msra.mxu0 0
    %1101 = vmatprep.subr.bf16.mxu0 0
    %1102 = vmatpush1.bf16.xpose.msra.mxu0 0
    %1103 = vmatprep.subr.bf16.mxu0 0
    %1104 = vmatpush1.bf16.xpose.msra.mxu0 0
    %1105 = vmatprep.subr.bf16.mxu0 0
    %1106 = vmatpush1.bf16.xpose.msra.mxu0 0
    %1107 = vmatprep.mubr.bf16.mxu0 0
    %1108 = vmatmul.mubr.bf16.gmra.mrb[0].mxu0 %v1070
    %v1109 = vpop.f32.mrb[0].mxu0
    %v1110 = vadd.f32 0.0, %v1109
    %v1111 = vpop.f32.mrb[0].mxu0
    %v1112 = vpop.f32.mrb[0].mxu0
    %v1113 = vpop.f32.mrb[0].mxu0
    %1114 = vdwg.mxu0
    %v1115 = vmul.f32 %v1060, 0.35355338
    %v1116 = vmul.f32 %v1110, 0.35355338
    %v1117 = vsel %vm453, %v1115, -inf
    %1118 = vmax.xlane.f32.xlu0 %v1117
    %v1119 = vpop.xlane.xlu0 %1118
    %v1120 = vsel %vm453, %v1116, -inf
    %1121 = vmax.xlane.f32.xlu0 %v1120
    %v1122 = vpop.xlane.xlu0 %1121
    %v1123 = vsub.f32 %v1115, %v1119
    %v1124 = vsub.f32 %v1116, %v1122
    %v1125 = vmul.f32 %v1123, 1.442695
    %v1126 = vpow.pop %v1125
    %v1127 = vmul.f32 %v1124, 1.442695
    %v1128 = vpow.pop %v1127
    %v1129 = vsel %vm453, %v1126, 0.0
    %1130 = vadd.xlane.f32.xlu0 %v1129
    %v1131 = vpop.xlane.xlu0 %1130
    %v1132 = vsel %vm453, %v1128, 0.0
    %1133 = vadd.xlane.f32.xlu0 %v1132
    %v1134 = vpop.xlane.xlu0 %1133
    %v1135 = vrcp.pop %v1131
    %v1136 = vrcp.pop %v1134
    %v1137 = vmul.f32 %v1126, %v1135
    %v1138 = vmul.f32 %v1128, %v1136
    %v1139 = vpack.c.bf16 %v1137, %v1137
    %v1140 = vpack.c.bf16 %v1138, %v1138
    %1141 = vrot.lane.b32.xlu0 %v356, 72
    %v1142 = vpop.permute.xlu0 %1141
    %v1145 = vsel %vm482, %v1139, 0
    %1147 = vmatprep.subr.bf16.mxu0 0
    %1148 = vmatpush1.bf16.msra.mxu0 %v1142
    %1149 = vmatprep.subr.bf16.mxu0 0
    %1150 = vmatpush1.bf16.msra.mxu0 0
    %1151 = vmatprep.subr.bf16.mxu0 0
    %1152 = vmatpush1.bf16.msra.mxu0 0
    %1153 = vmatprep.subr.bf16.mxu0 0
    %1154 = vmatpush1.bf16.msra.mxu0 0
    %1155 = vmatprep.subr.bf16.mxu0 0
    %1156 = vmatpush1.bf16.msra.mxu0 0
    %1157 = vmatprep.subr.bf16.mxu0 0
    %1158 = vmatpush1.bf16.msra.mxu0 0
    %1159 = vmatprep.subr.bf16.mxu0 0
    %1160 = vmatpush1.bf16.msra.mxu0 0
    %1161 = vmatprep.subr.bf16.mxu0 0
    %1162 = vmatpush1.bf16.msra.mxu0 0
    %1163 = vmatprep.subr.bf16.mxu0 0
    %1164 = vmatpush1.bf16.msra.mxu0 0
    %1165 = vmatprep.subr.bf16.mxu0 0
    %1166 = vmatpush1.bf16.msra.mxu0 0
    %1167 = vmatprep.subr.bf16.mxu0 0
    %1168 = vmatpush1.bf16.msra.mxu0 0
    %1169 = vmatprep.subr.bf16.mxu0 0
    %1170 = vmatpush1.bf16.msra.mxu0 0
    %1171 = vmatprep.subr.bf16.mxu0 0
    %1172 = vmatpush1.bf16.msra.mxu0 0
    %1173 = vmatprep.subr.bf16.mxu0 0
    %1174 = vmatpush1.bf16.msra.mxu0 0
    %1175 = vmatprep.subr.bf16.mxu0 0
    %1176 = vmatpush1.bf16.msra.mxu0 0
    %1177 = vmatprep.subr.bf16.mxu0 0
    %1178 = vmatpush1.bf16.msra.mxu0 0
    %1179 = vmatprep.mubr.bf16.mxu0 0
    %1180 = vmatmul.mubr.bf16.gmra.mrb[0].mxu0 %v1145
    %v1181 = vpop.f32.mrb[0].mxu0
    %v1182 = vadd.f32 0.0, %v1181
    %v1183 = vpop.f32.mrb[0].mxu0
    %v1184 = vpop.f32.mrb[0].mxu0
    %v1185 = vpop.f32.mrb[0].mxu0
    %1186 = vdwg.mxu0
    %1187 = vrot.lane.b32.xlu0 %v357, 72
    %v1188 = vpop.permute.xlu0 %1187
    %v1191 = vsel %vm482, %v1140, 0
    %1193 = vmatprep.subr.bf16.mxu0 0
    %1194 = vmatpush1.bf16.msra.mxu0 %v1188
    %1195 = vmatprep.subr.bf16.mxu0 0
    %1196 = vmatpush1.bf16.msra.mxu0 0
    %1197 = vmatprep.subr.bf16.mxu0 0
    %1198 = vmatpush1.bf16.msra.mxu0 0
    %1199 = vmatprep.subr.bf16.mxu0 0
    %1200 = vmatpush1.bf16.msra.mxu0 0
    %1201 = vmatprep.subr.bf16.mxu0 0
    %1202 = vmatpush1.bf16.msra.mxu0 0
    %1203 = vmatprep.subr.bf16.mxu0 0
    %1204 = vmatpush1.bf16.msra.mxu0 0
    %1205 = vmatprep.subr.bf16.mxu0 0
    %1206 = vmatpush1.bf16.msra.mxu0 0
    %1207 = vmatprep.subr.bf16.mxu0 0
    %1208 = vmatpush1.bf16.msra.mxu0 0
    %1209 = vmatprep.subr.bf16.mxu0 0
    %1210 = vmatpush1.bf16.msra.mxu0 0
    %1211 = vmatprep.subr.bf16.mxu0 0
    %1212 = vmatpush1.bf16.msra.mxu0 0
    %1213 = vmatprep.subr.bf16.mxu0 0
    %1214 = vmatpush1.bf16.msra.mxu0 0
    %1215 = vmatprep.subr.bf16.mxu0 0
    %1216 = vmatpush1.bf16.msra.mxu0 0
    %1217 = vmatprep.subr.bf16.mxu0 0
    %1218 = vmatpush1.bf16.msra.mxu0 0
    %1219 = vmatprep.subr.bf16.mxu0 0
    %1220 = vmatpush1.bf16.msra.mxu0 0
    %1221 = vmatprep.subr.bf16.mxu0 0
    %1222 = vmatpush1.bf16.msra.mxu0 0
    %1223 = vmatprep.subr.bf16.mxu0 0
    %1224 = vmatpush1.bf16.msra.mxu0 0
    %1225 = vmatprep.mubr.bf16.mxu0 0
    %1226 = vmatmul.mubr.bf16.gmra.mrb[0].mxu0 %v1191
    %v1227 = vpop.f32.mrb[0].mxu0
    %v1228 = vadd.f32 0.0, %v1227
    %v1229 = vpop.f32.mrb[0].mxu0
    %v1230 = vpop.f32.mrb[0].mxu0
    %v1231 = vpop.f32.mrb[0].mxu0
    %1232 = vdwg.mxu0
    %v1233 = vadd.f32 %v1013, %v1137
    %v1234 = vadd.f32 %v1014, %v1138
    %1237 = vrot.lane.b32.xlu0 %v742, 8
    %v1238 = vpop.permute.xlu0 %1237
    %1239 = vrot.lane.b32.xlu0 %v788, 8
    %v1240 = vpop.permute.xlu0 %1239
    %1245 = vrot.lane.b32.xlu0 %v962, 16
    %v1246 = vpop.permute.xlu0 %1245
    %1247 = vrot.lane.b32.xlu0 %v1008, 16
    %v1248 = vpop.permute.xlu0 %1247
    %1253 = vrot.lane.b32.xlu0 %v1182, 24
    %v1254 = vpop.permute.xlu0 %1253
    %1255 = vrot.lane.b32.xlu0 %v1228, 24
    %v1256 = vpop.permute.xlu0 %1255
    %v1259 = vsel %vm358, %v521, %v1238
    %v1260 = vsel %vm358, %v568, %v1240
    %v1261 = vsel %vm482, %v1259, %v1246
    %v1262 = vsel %vm482, %v1260, %v1248
    %vm1263 = vcmask 195584
    %v1264 = vsel %vm1263, %v1261, %v1254
    %v1265 = vsel %vm1263, %v1262, %v1256
    %v1268 = vcombine.low %v1264, %v1265
    %v1270 = vpack.c.bf16 %v1268, %v1268
    %v1271 = vld [vmem:[%s14] sm:$0xf]
    %v1272 = vld [vmem:[%s14 + $0x4] sm:$0xf]
    %v1273 = vld [vmem:[%s14 + $0x8] sm:$0xf]
    %v1274 = vld [vmem:[%s14 + $0xc] sm:$0xf]
    %v1275 = vld [vmem:[%s15] sm:$0x1]
    %v1277 = vlaneseq
    %v1278 = vshrl.u32 %v1277, 7
    %v1279 = vsub.s32 0, %v1278
    %v1280 = vrot.slane %v1275, %v1279
    %v1286 = vunpack.c.l.b16 %v1271
    %v1287 = vunpack.c.l.b16 %v1272
    %v1288 = vunpack.c.l.b16 %v1273
    %v1289 = vunpack.c.l.b16 %v1274
    %v1290 = vpack.c.b16 %v1287, %v1286
    %v1291 = vpack.c.b16 %v1289, %v1288
    %v1295 = vsel %vm139, %v1270, 0
    %1297 = vmatprep.subr.bf16.mxu0 0
    %1298 = vmatpush1.bf16.msra.mxu0 %v1290
    %1299 = vmatprep.subr.bf16.mxu0 0
    %1300 = vmatpush1.bf16.msra.mxu0 %v1291
    %1301 = vmatprep.subr.bf16.mxu0 0
    %1302 = vmatpush1.bf16.msra.mxu0 0
    %1303 = vmatprep.subr.bf16.mxu0 0
    %1304 = vmatpush1.bf16.msra.mxu0 0
    %1305 = vmatprep.subr.bf16.mxu0 0
    %1306 = vmatpush1.bf16.msra.mxu0 0
    %1307 = vmatprep.subr.bf16.mxu0 0
    %1308 = vmatpush1.bf16.msra.mxu0 0
    %1309 = vmatprep.subr.bf16.mxu0 0
    %1310 = vmatpush1.bf16.msra.mxu0 0
    %1311 = vmatprep.subr.bf16.mxu0 0
    %1312 = vmatpush1.bf16.msra.mxu0 0
    %1313 = vmatprep.subr.bf16.mxu0 0
    %1314 = vmatpush1.bf16.msra.mxu0 0
    %1315 = vmatprep.subr.bf16.mxu0 0
    %1316 = vmatpush1.bf16.msra.mxu0 0
    %1317 = vmatprep.subr.bf16.mxu0 0
    %1318 = vmatpush1.bf16.msra.mxu0 0
    %1319 = vmatprep.subr.bf16.mxu0 0
    %1320 = vmatpush1.bf16.msra.mxu0 0
    %1321 = vmatprep.subr.bf16.mxu0 0
    %1322 = vmatpush1.bf16.msra.mxu0 0
    %1323 = vmatprep.subr.bf16.mxu0 0
    %1324 = vmatpush1.bf16.msra.mxu0 0
    %1325 = vmatprep.subr.bf16.mxu0 0
    %1326 = vmatpush1.bf16.msra.mxu0 0
    %1327 = vmatprep.subr.bf16.mxu0 0
    %1328 = vmatpush1.bf16.msra.mxu0 0
    %1329 = vmatprep.mubr.bf16.mxu0 0
    %1330 = vmatmul.mubr.bf16.gmra.mrb[0].mxu0 %v1295
    %v1331 = vpop.f32.mrb[0].mxu0
    %v1332 = vadd.f32 %v1280, %v1331
    %v1333 = vpop.f32.mrb[0].mxu0
    %v1334 = vpop.f32.mrb[0].mxu0
    %v1335 = vpop.f32.mrb[0].mxu0
    %1336 = vdwg.mxu0
    %v1337 = vmul.f32 %v1233, 0.25
    %v1338 = vmul.f32 %v1234, 0.25
    %v1340 = vcombine.high %v1332, %v1332
    %v1342 = vadd.f32 %v91, %v1332
    %v1343 = vadd.f32 %v92, %v1340
    %v1344 = vsel %vm93, %v1342, 0.0
    %1345 = vadd.xlane.f32.xlu0 %v1344
    %v1346 = vpop.xlane.xlu0 %1345
    %v1347 = vsel %vm93, %v1343, 0.0
    %1348 = vadd.xlane.f32.xlu0 %v1347
    %v1349 = vpop.xlane.xlu0 %1348
    %v1350 = vmul.f32 %v1346, %v100
    %v1351 = vmul.f32 %v1349, %v100
    %v1352 = vsub.f32 %v1342, %v1350
    %v1353 = vsub.f32 %v1343, %v1351
    %v1354 = vmul.f32 %v1352, %v1352
    %v1355 = vmul.f32 %v1353, %v1353
    %v1356 = vsel %vm93, %v1354, 0.0
    %1357 = vadd.xlane.f32.xlu0 %v1356
    %v1358 = vpop.xlane.xlu0 %1357
    %v1359 = vsel %vm93, %v1355, 0.0
    %1360 = vadd.xlane.f32.xlu0 %v1359
    %v1361 = vpop.xlane.xlu0 %1360
    %v1362 = vmul.f32 %v1358, %v100
    %v1363 = vmul.f32 %v1361, %v100
    %v1364 = vadd.f32 %v1362, 1e-05
    %v1365 = vadd.f32 %v1363, 1e-05
    %v1366 = vrsqrt.pop %v1364
    %v1367 = vrsqrt.pop %v1365
    %v1368 = vmul.f32 %v1352, %v1366
    %v1369 = vmul.f32 %v1353, %v1367
    %v1370 = vld [vmem:[%s6] sm:$0x1]
    %v1372 = vlaneseq
    %v1373 = vshrl.u32 %v1372, 7
    %v1374 = vsub.s32 0, %v1373
    %v1375 = vrot.slane %v1370, %v1374
    %v1377 = vmul.f32 %v1368, %v1375
    %v1378 = vmul.f32 %v1369, %v1375
    %v1379 = vld [vmem:[%s7] sm:$0x1]
    %v1381 = vlaneseq
    %v1382 = vshrl.u32 %v1381, 7
    %v1383 = vsub.s32 0, %v1382
    %v1384 = vrot.slane %v1379, %v1383
    %v1386 = vadd.f32 %v1377, %v1384
    %v1387 = vadd.f32 %v1378, %v1384
    %v1390 = vcombine.low %v1386, %v1387
    %v1392 = vpack.c.bf16 %v1390, %v1390
    %v1393 = vld [vmem:[%s22] sm:$0xf]
    %v1394 = vld [vmem:[%s22 + $0x4] sm:$0xf]
    %v1395 = vld [vmem:[%s22 + $0x8] sm:$0xf]
    %v1396 = vld [vmem:[%s22 + $0xc] sm:$0xf]
    %v1397 = vld [vmem:[%s23] sm:$0x1]
    %v1399 = vlaneseq
    %v1400 = vshrl.u32 %v1399, 7
    %v1401 = vsub.s32 0, %v1400
    %v1402 = vrot.slane %v1397, %v1401
    %v1408 = vunpack.c.l.b16 %v1393
    %v1409 = vunpack.c.l.b16 %v1394
    %v1410 = vunpack.c.l.b16 %v1395
    %v1411 = vunpack.c.l.b16 %v1396
    %v1412 = vpack.c.b16 %v1409, %v1408
    %v1413 = vpack.c.b16 %v1411, %v1410
    %v1417 = vsel %vm139, %v1392, 0
    %1419 = vmatprep.subr.bf16.mxu0 0
    %1420 = vmatpush1.bf16.msra.mxu0 %v1412
    %1421 = vmatprep.subr.bf16.mxu0 0
    %1422 = vmatpush1.bf16.msra.mxu0 %v1413
    %1423 = vmatprep.subr.bf16.mxu0 0
    %1424 = vmatpush1.bf16.msra.mxu0 0
    %1425 = vmatprep.subr.bf16.mxu0 0
    %1426 = vmatpush1.bf16.msra.mxu0 0
    %1427 = vmatprep.subr.bf16.mxu0 0
    %1428 = vmatpush1.bf16.msra.mxu0 0
    %1429 = vmatprep.subr.bf16.mxu0 0
    %1430 = vmatpush1.bf16.msra.mxu0 0
    %1431 = vmatprep.subr.bf16.mxu0 0
    %1432 = vmatpush1.bf16.msra.mxu0 0
    %1433 = vmatprep.subr.bf16.mxu0 0
    %1434 = vmatpush1.bf16.msra.mxu0 0
    %1435 = vmatprep.subr.bf16.mxu0 0
    %1436 = vmatpush1.bf16.msra.mxu0 0
    %1437 = vmatprep.subr.bf16.mxu0 0
    %1438 = vmatpush1.bf16.msra.mxu0 0
    %1439 = vmatprep.subr.bf16.mxu0 0
    %1440 = vmatpush1.bf16.msra.mxu0 0
    %1441 = vmatprep.subr.bf16.mxu0 0
    %1442 = vmatpush1.bf16.msra.mxu0 0
    %1443 = vmatprep.subr.bf16.mxu0 0
    %1444 = vmatpush1.bf16.msra.mxu0 0
    %1445 = vmatprep.subr.bf16.mxu0 0
    %1446 = vmatpush1.bf16.msra.mxu0 0
    %1447 = vmatprep.subr.bf16.mxu0 0
    %1448 = vmatpush1.bf16.msra.mxu0 0
    %1449 = vmatprep.subr.bf16.mxu0 0
    %1450 = vmatpush1.bf16.msra.mxu0 0
    %1451 = vmatprep.mubr.bf16.mxu0 0
    %1452 = vmatmul.mubr.bf16.gmra.mrb[0].mxu0 %v1417
    %v1453 = vpop.f32.mrb[0].mxu0
    %v1454 = vadd.f32 %v1402, %v1453
    %v1455 = vpop.f32.mrb[0].mxu0
    %v1456 = vpop.f32.mrb[0].mxu0
    %v1457 = vpop.f32.mrb[0].mxu0
    %1458 = vdwg.mxu0
    %v1459 = vmul.f32 %v1454, 1.702
    %v1460 = vxor.u32 %v1459, 2147483648
    %v1461 = vmul.f32 %v1460, 1.442695
    %v1462 = vpow.pop %v1461
    %v1463 = vadd.f32 %v1462, 1.0
    %v1464 = vrcp.pop %v1463
    %v1465 = vmul.f32 1.0, %v1464
    %v1466 = vmul.f32 %v1454, %v1465
    %v1467 = vpack.c.bf16 %v1466, %v1466
    %v1468 = vld [vmem:[%s24] sm:$0xf]
    %v1469 = vld [vmem:[%s24 + $0x4] sm:$0xf]
    %v1470 = vld [vmem:[%s24 + $0x8] sm:$0xf]
    %v1471 = vld [vmem:[%s24 + $0xc] sm:$0xf]
    %v1472 = vld [vmem:[%s24 + $0x10] sm:$0xf]
    %v1473 = vld [vmem:[%s24 + $0x14] sm:$0xf]
    %v1474 = vld [vmem:[%s24 + $0x18] sm:$0xf]
    %v1475 = vld [vmem:[%s24 + $0x1c] sm:$0xf]
    %v1476 = vld [vmem:[%s24 + $0x20] sm:$0xf]
    %v1477 = vld [vmem:[%s24 + $0x24] sm:$0xf]
    %v1478 = vld [vmem:[%s24 + $0x28] sm:$0xf]
    %v1479 = vld [vmem:[%s24 + $0x2c] sm:$0xf]
    %v1480 = vld [vmem:[%s24 + $0x30] sm:$0xf]
    %v1481 = vld [vmem:[%s24 + $0x34] sm:$0xf]
    %v1482 = vld [vmem:[%s24 + $0x38] sm:$0xf]
    %v1483 = vld [vmem:[%s24 + $0x3c] sm:$0xf]
    %v1484 = vld [vmem:[%s25] sm:$0x1]
    %v1486 = vlaneseq
    %v1487 = vshrl.u32 %v1486, 7
    %v1488 = vsub.s32 0, %v1487
    %v1489 = vrot.slane %v1484, %v1488
    %v1507 = vunpack.c.l.b16 %v1468
    %v1508 = vunpack.c.l.b16 %v1469
    %v1509 = vunpack.c.l.b16 %v1470
    %v1510 = vunpack.c.l.b16 %v1471
    %v1511 = vunpack.c.l.b16 %v1472
    %v1512 = vunpack.c.l.b16 %v1473
    %v1513 = vunpack.c.l.b16 %v1474
    %v1514 = vunpack.c.l.b16 %v1475
    %v1515 = vunpack.c.l.b16 %v1476
    %v1516 = vunpack.c.l.b16 %v1477
    %v1517 = vunpack.c.l.b16 %v1478
    %v1518 = vunpack.c.l.b16 %v1479
    %v1519 = vunpack.c.l.b16 %v1480
    %v1520 = vunpack.c.l.b16 %v1481
    %v1521 = vunpack.c.l.b16 %v1482
    %v1522 = vunpack.c.l.b16 %v1483
    %v1523 = vpack.c.b16 %v1508, %v1507
    %v1524 = vpack.c.b16 %v1510, %v1509
    %v1525 = vpack.c.b16 %v1512, %v1511
    %v1526 = vpack.c.b16 %v1514, %v1513
    %v1527 = vpack.c.b16 %v1516, %v1515
    %v1528 = vpack.c.b16 %v1518, %v1517
    %v1529 = vpack.c.b16 %v1520, %v1519
    %v1530 = vpack.c.b16 %v1522, %v1521
    %1539 = vmatprep.subr.bf16.mxu0 0
    %1540 = vmatpush1.bf16.msra.mxu0 %v1523
    %1541 = vmatprep.subr.bf16.mxu0 0
    %1542 = vmatpush1.bf16.msra.mxu0 %v1524
    %1543 = vmatprep.subr.bf16.mxu0 0
    %1544 = vmatpush1.bf16.msra.mxu0 %v1525
    %1545 = vmatprep.subr.bf16.mxu0 0
    %1546 = vmatpush1.bf16.msra.mxu0 %v1526
    %1547 = vmatprep.subr.bf16.mxu0 0
    %1548 = vmatpush1.bf16.msra.mxu0 %v1527
    %1549 = vmatprep.subr.bf16.mxu0 0
    %1550 = vmatpush1.bf16.msra.mxu0 %v1528
    %1551 = vmatprep.subr.bf16.mxu0 0
    %1552 = vmatpush1.bf16.msra.mxu0 %v1529
    %1553 = vmatprep.subr.bf16.mxu0 0
    %1554 = vmatpush1.bf16.msra.mxu0 %v1530
    %1555 = vmatprep.subr.bf16.mxu0 0
    %1556 = vmatpush1.bf16.msra.mxu0 0
    %1557 = vmatprep.subr.bf16.mxu0 0
    %1558 = vmatpush1.bf16.msra.mxu0 0
    %1559 = vmatprep.subr.bf16.mxu0 0
    %1560 = vmatpush1.bf16.msra.mxu0 0
    %1561 = vmatprep.subr.bf16.mxu0 0
    %1562 = vmatpush1.bf16.msra.mxu0 0
    %1563 = vmatprep.subr.bf16.mxu0 0
    %1564 = vmatpush1.bf16.msra.mxu0 0
    %1565 = vmatprep.subr.bf16.mxu0 0
    %1566 = vmatpush1.bf16.msra.mxu0 0
    %1567 = vmatprep.subr.bf16.mxu0 0
    %1568 = vmatpush1.bf16.msra.mxu0 0
    %1569 = vmatprep.subr.bf16.mxu0 0
    %1570 = vmatpush1.bf16.msra.mxu0 0
    %1571 = vmatprep.mubr.bf16.mxu0 0
    %1572 = vmatmul.mubr.bf16.gmra.mrb[0].mxu0 %v1467
    %v1573 = vpop.f32.mrb[0].mxu0
    %v1574 = vadd.f32 %v1489, %v1573
    %v1575 = vpop.f32.mrb[0].mxu0
    %v1576 = vpop.f32.mrb[0].mxu0
    %v1577 = vpop.f32.mrb[0].mxu0
    %1578 = vdwg.mxu0
    %v1580 = vcombine.high %v1574, %v1574
    %v1582 = vadd.f32 %v1342, %v1574
    %v1583 = vadd.f32 %v1343, %v1580
    %1584 = vst.msk [vmem:[#allocation2] sm:$0xf] %vm93, %v1582
    %1585 = vst.msk [vmem:[#allocation2 + $0x8] sm:$0xf] %vm93, %v1583
    %v1586 = vld [vmem:[%s2] sm:$0x3]
    %vm1587 = vcmask 254976
    %1588 = vst.msk [vmem:[#allocation2 + $0x4] sm:$0x3] %vm1587, %v1586
    %1589 = vst.msk [vmem:[#allocation2 + $0xc] sm:$0x3] %vm1587, %v1586
    %v1590 = vld [vmem:[#allocation2] sm:$0x3f]
    %v1591 = vld [vmem:[#allocation2 + $0x8] sm:$0x3f]
    %vm1592 = vcmask 259072
    %v1593 = vsel %vm1592, %v1590, 0.0
    %1594 = vadd.xlane.f32.xlu0 %v1593
    %v1595 = vpop.xlane.xlu0 %1594
    %v1596 = vsel %vm1592, %v1591, 0.0
    %1597 = vadd.xlane.f32.xlu0 %v1596
    %v1598 = vpop.xlane.xlu0 %1597
    %v1599 = vmul.f32 %v1595, %v100
    %v1600 = vmul.f32 %v1598, %v100
    %v1601 = vsub.f32 %v1590, %v1599
    %v1602 = vsub.f32 %v1591, %v1600
    %v1603 = vmul.f32 %v1601, %v1601
    %v1604 = vmul.f32 %v1602, %v1602
    %v1605 = vsel %vm1592, %v1603, 0.0
    %1606 = vadd.xlane.f32.xlu0 %v1605
    %v1607 = vpop.xlane.xlu0 %1606
    %v1608 = vsel %vm1592, %v1604, 0.0
    %1609 = vadd.xlane.f32.xlu0 %v1608
    %v1610 = vpop.xlane.xlu0 %1609
    %v1611 = vmul.f32 %v1607, %v100
    %v1612 = vmul.f32 %v1610, %v100
    %v1613 = vadd.f32 %v1611, 1e-05
    %v1614 = vadd.f32 %v1612, 1e-05
    %v1615 = vrsqrt.pop %v1613
    %v1616 = vrsqrt.pop %v1614
    %v1617 = vmul.f32 %v1601, %v1615
    %v1618 = vmul.f32 %v1602, %v1616
    %v1619 = vld [vmem:[%s8] sm:$0x1]
    %v1621 = vlaneseq
    %v1622 = vshrl.u32 %v1621, 7
    %v1623 = vsub.s32 0, %v1622
    %v1624 = vrot.slane %v1619, %v1623
    %v1626 = vmul.f32 %v1617, %v1624
    %v1627 = vmul.f32 %v1618, %v1624
    %v1628 = vld [vmem:[%s9] sm:$0x1]
    %v1630 = vlaneseq
    %v1631 = vshrl.u32 %v1630, 7
    %v1632 = vsub.s32 0, %v1631
    %v1633 = vrot.slane %v1628, %v1632
    %v1635 = vadd.f32 %v1626, %v1633
    %v1636 = vadd.f32 %v1627, %v1633
    %v1637 = vld [vmem:[%s3] sm:$0xf]
    %v1640 = vcombine.low %v1635, %v1636
    %v1642 = vpack.c.bf16 %v1640, %v1640
    %v1643 = vld [vmem:[%s16] sm:$0xf]
    %v1644 = vld [vmem:[%s16 + $0x4] sm:$0xf]
    %v1645 = vld [vmem:[%s16 + $0x8] sm:$0xf]
    %v1646 = vld [vmem:[%s16 + $0xc] sm:$0xf]
    %v1647 = vld [vmem:[%s17] sm:$0x1]
    %v1649 = vlaneseq
    %v1650 = vshrl.u32 %v1649, 7
    %v1651 = vsub.s32 0, %v1650
    %v1652 = vrot.slane %v1647, %v1651
    %v1658 = vunpack.c.l.b16 %v1643
    %v1659 = vunpack.c.l.b16 %v1644
    %v1660 = vunpack.c.l.b16 %v1645
    %v1661 = vunpack.c.l.b16 %v1646
    %v1662 = vpack.c.b16 %v1659, %v1658
    %v1663 = vpack.c.b16 %v1661, %v1660
    %v1667 = vsel %vm139, %v1642, 0
    %1669 = vmatprep.subr.bf16.mxu0 0
    %1670 = vmatpush1.bf16.msra.mxu0 %v1662
    %1671 = vmatprep.subr.bf16.mxu0 0
    %1672 = vmatpush1.bf16.msra.mxu0 %v1663
    %1673 = vmatprep.subr.bf16.mxu0 0
    %1674 = vmatpush1.bf16.msra.mxu0 0
    %1675 = vmatprep.subr.bf16.mxu0 0
    %1676 = vmatpush1.bf16.msra.mxu0 0
    %1677 = vmatprep.subr.bf16.mxu0 0
    %1678 = vmatpush1.bf16.msra.mxu0 0
    %1679 = vmatprep.subr.bf16.mxu0 0
    %1680 = vmatpush1.bf16.msra.mxu0 0
    %1681 = vmatprep.subr.bf16.mxu0 0
    %1682 = vmatpush1.bf16.msra.mxu0 0
    %1683 = vmatprep.subr.bf16.mxu0 0
    %1684 = vmatpush1.bf16.msra.mxu0 0
    %1685 = vmatprep.subr.bf16.mxu0 0
    %1686 = vmatpush1.bf16.msra.mxu0 0
    %1687 = vmatprep.subr.bf16.mxu0 0
    %1688 = vmatpush1.bf16.msra.mxu0 0
    %1689 = vmatprep.subr.bf16.mxu0 0
    %1690 = vmatpush1.bf16.msra.mxu0 0
    %1691 = vmatprep.subr.bf16.mxu0 0
    %1692 = vmatpush1.bf16.msra.mxu0 0
    %1693 = vmatprep.subr.bf16.mxu0 0
    %1694 = vmatpush1.bf16.msra.mxu0 0
    %1695 = vmatprep.subr.bf16.mxu0 0
    %1696 = vmatpush1.bf16.msra.mxu0 0
    %1697 = vmatprep.subr.bf16.mxu0 0
    %1698 = vmatpush1.bf16.msra.mxu0 0
    %1699 = vmatprep.subr.bf16.mxu0 0
    %1700 = vmatpush1.bf16.msra.mxu0 0
    %1701 = vmatprep.mubr.bf16.mxu0 0
    %1702 = vmatmul.mubr.bf16.gmra.mrb[0].mxu0 %v1667
    %v1703 = vpop.f32.mrb[0].mxu0
    %v1704 = vadd.f32 %v1652, %v1703
    %v1705 = vpop.f32.mrb[0].mxu0
    %v1706 = vpop.f32.mrb[0].mxu0
    %v1707 = vpop.f32.mrb[0].mxu0
    %1708 = vdwg.mxu0
    %v1709 = vcombine.high %v1635, %v1635
    %v1711 = vunpack.c.l.s4 1983009808
    %v1712 = vunpack.c.0.s8 %v1711
    %v1713 = vlaneseq
    %v1714 = vshrl.u32 %v1713, 7
    %v1715 = vsub.s32 %v1712, %v1714
    %v1716 = vrot.slane %v1635, %v1715
    %v1718 = vunpack.c.l.s4 1983009808
    %v1719 = vunpack.c.0.s8 %v1718
    %v1720 = vlaneseq
    %v1721 = vshrl.u32 %v1720, 7
    %v1722 = vsub.s32 %v1719, %v1721
    %v1723 = vrot.slane %v1709, %v1722
    %v1724 = vcombine.high %v1716, %v1716
    %v1725 = vcombine.high %v1636, %v1636
    %v1727 = vunpack.c.l.s4 1983009808
    %v1728 = vunpack.c.0.s8 %v1727
    %v1729 = vlaneseq
    %v1730 = vshrl.u32 %v1729, 7
    %v1731 = vsub.s32 %v1728, %v1730
    %v1732 = vrot.slane %v1636, %v1731
    %v1734 = vunpack.c.l.s4 1983009808
    %v1735 = vunpack.c.0.s8 %v1734
    %v1736 = vlaneseq
    %v1737 = vshrl.u32 %v1736, 7
    %v1738 = vsub.s32 %v1735, %v1737
    %v1739 = vrot.slane %v1725, %v1738
    %v1740 = vcombine.high %v1732, %v1732
    %v1741 = vcombine.low %v1716, %v1724
    %v1742 = vcombine.low %v1723, %v1732
    %v1744 = vunpack.c.l.s4 1983009808
    %v1745 = vunpack.c.0.s8 %v1744
    %v1746 = vlaneseq
    %v1747 = vshrl.u32 %v1746, 7
    %v1748 = vsub.s32 %v1745, %v1747
    %v1749 = vrot.slane %v1741, %v1748
    %v1751 = vunpack.c.l.s4 1983009808
    %v1752 = vunpack.c.0.s8 %v1751
    %v1753 = vlaneseq
    %v1754 = vshrl.u32 %v1753, 7
    %v1755 = vsub.s32 %v1752, %v1754
    %v1756 = vrot.slane %v1742, %v1755
    %v1757 = vcombine.low %v1749, %v1756
    %v1758 = vcombine.low %v1740, %v1739
    %v1760 = vunpack.c.l.s4 1983009808
    %v1761 = vunpack.c.0.s8 %v1760
    %v1762 = vlaneseq
    %v1763 = vshrl.u32 %v1762, 7
    %v1764 = vsub.s32 %v1761, %v1763
    %v1765 = vrot.slane %v1758, %v1764
    %v1768 = vpack.c.bf16 %v1765, %v1757
    %v1769 = vld [vmem:[%s18] sm:$0xf]
    %v1770 = vld [vmem:[%s18 + $0x4] sm:$0xf]
    %v1771 = vld [vmem:[%s18 + $0x8] sm:$0xf]
    %v1772 = vld [vmem:[%s18 + $0xc] sm:$0xf]
    %v1773 = vld [vmem:[%s19] sm:$0x1]
    %v1775 = vlaneseq
    %v1776 = vshrl.u32 %v1775, 7
    %v1777 = vsub.s32 0, %v1776
    %v1778 = vrot.slane %v1773, %v1777
    %v1784 = vunpack.c.l.b16 %v1769
    %v1785 = vunpack.c.l.b16 %v1770
    %v1786 = vunpack.c.l.b16 %v1771
    %v1787 = vunpack.c.l.b16 %v1772
    %v1788 = vpack.c.b16 %v1785, %v1784
    %v1789 = vpack.c.b16 %v1787, %v1786
    %v1793 = vsel %vm139, %v1768, 0
    %1795 = vmatprep.subr.bf16.mxu0 0
    %1796 = vmatpush1.bf16.msra.mxu0 %v1788
    %1797 = vmatprep.subr.bf16.mxu0 0
    %1798 = vmatpush1.bf16.msra.mxu0 %v1789
    %1799 = vmatprep.subr.bf16.mxu0 0
    %1800 = vmatpush1.bf16.msra.mxu0 0
    %1801 = vmatprep.subr.bf16.mxu0 0
    %1802 = vmatpush1.bf16.msra.mxu0 0
    %1803 = vmatprep.subr.bf16.mxu0 0
    %1804 = vmatpush1.bf16.msra.mxu0 0
    %1805 = vmatprep.subr.bf16.mxu0 0
    %1806 = vmatpush1.bf16.msra.mxu0 0
    %1807 = vmatprep.subr.bf16.mxu0 0
    %1808 = vmatpush1.bf16.msra.mxu0 0
    %1809 = vmatprep.subr.bf16.mxu0 0
    %1810 = vmatpush1.bf16.msra.mxu0 0
    %1811 = vmatprep.subr.bf16.mxu0 0
    %1812 = vmatpush1.bf16.msra.mxu0 0
    %1813 = vmatprep.subr.bf16.mxu0 0
    %1814 = vmatpush1.bf16.msra.mxu0 0
    %1815 = vmatprep.subr.bf16.mxu0 0
    %1816 = vmatpush1.bf16.msra.mxu0 0
    %1817 = vmatprep.subr.bf16.mxu0 0
    %1818 = vmatpush1.bf16.msra.mxu0 0
    %1819 = vmatprep.subr.bf16.mxu0 0
    %1820 = vmatpush1.bf16.msra.mxu0 0
    %1821 = vmatprep.subr.bf16.mxu0 0
    %1822 = vmatpush1.bf16.msra.mxu0 0
    %1823 = vmatprep.subr.bf16.mxu0 0
    %1824 = vmatpush1.bf16.msra.mxu0 0
    %1825 = vmatprep.subr.bf16.mxu0 0
    %1826 = vmatpush1.bf16.msra.mxu0 0
    %1827 = vmatprep.mubr.bf16.mxu0 0
    %1828 = vmatmul.mubr.bf16.gmra.mrb[0].mxu0 %v1793
    %v1829 = vpop.f32.mrb[0].mxu0
    %v1830 = vadd.f32 %v1778, %v1829
    %v1831 = vpop.f32.mrb[0].mxu0
    %v1832 = vpop.f32.mrb[0].mxu0
    %v1833 = vadd.f32 %v1778, %v1832
    %v1834 = vpop.f32.mrb[0].mxu0
    %1835 = vdwg.mxu0
    %v1837 = vcombine.high %v1704, %v1704
    %v1841 = vcombine.high %v1830, %v1830
    %v1843 = vunpack.c.l.s4 1983009808
    %v1844 = vunpack.c.0.s8 %v1843
    %v1845 = vlaneseq
    %v1846 = vshrl.u32 %v1845, 7
    %v1847 = vsub.s32 %v1844, %v1846
    %v1848 = vrot.slane %v1830, %v1847
    %v1850 = vunpack.c.l.s4 1983009808
    %v1851 = vunpack.c.0.s8 %v1850
    %v1852 = vlaneseq
    %v1853 = vshrl.u32 %v1852, 7
    %v1854 = vsub.s32 %v1851, %v1853
    %v1855 = vrot.slane %v1841, %v1854
    %v1856 = vcombine.high %v1848, %v1848
    %v1857 = vcombine.high %v1855, %v1855
    %v1859 = vunpack.c.l.s4 1983009808
    %v1860 = vunpack.c.0.s8 %v1859
    %v1861 = vlaneseq
    %v1862 = vshrl.u32 %v1861, 7
    %v1863 = vsub.s32 %v1860, %v1862
    %v1864 = vrot.slane %v1833, %v1863
    %v1865 = vcombine.high %v1864, %v1864
    %v1866 = vpack.c.bf16 %v1704, %v1704
    %v1867 = vpack.c.bf16 %v1837, %v1837
    %v1868 = vcombine.low %v1848, %v1856
    %v1870 = vunpack.c.l.s4 1983009808
    %v1871 = vunpack.c.0.s8 %v1870
    %v1872 = vlaneseq
    %v1873 = vshrl.u32 %v1872, 7
    %v1874 = vsub.s32 %v1871, %v1873
    %v1875 = vrot.slane %v1868, %v1874
    %v1877 = vunpack.c.l.s4 1983009808
    %v1878 = vunpack.c.0.s8 %v1877
    %v1879 = vlaneseq
    %v1880 = vshrl.u32 %v1879, 7
    %v1881 = vsub.s32 %v1878, %v1880
    %v1882 = vrot.slane %v1855, %v1881
    %v1883 = vcombine.low %v1875, %v1882
    %v1884 = vcombine.low %v1857, %v1864
    %v1886 = vunpack.c.l.s4 1983009808
    %v1887 = vunpack.c.0.s8 %v1886
    %v1888 = vlaneseq
    %v1889 = vshrl.u32 %v1888, 7
    %v1890 = vsub.s32 %v1887, %v1889
    %v1891 = vrot.slane %v1884, %v1890
    %v1893 = vunpack.c.l.s4 1983009808
    %v1894 = vunpack.c.0.s8 %v1893
    %v1895 = vlaneseq
    %v1896 = vshrl.u32 %v1895, 7
    %v1897 = vsub.s32 %v1894, %v1896
    %v1898 = vrot.slane %v1865, %v1897
    %v1899 = vcombine.low %v1891, %v1898
    %v1902 = vpack.c.bf16 %v1883, %v1883
    %v1903 = vpack.c.bf16 %v1899, %v1899
    %v1905 = vsel %vm358, %v1866, 0
    %v1908 = vsel %vm358, %v1902, 0
    %1910 = vmatprep.subr.bf16.mxu0 0
    %1911 = vmatpush1.bf16.xpose.msra.mxu0 %v1908
    %1912 = vmatprep.subr.bf16.mxu0 0
    %1913 = vmatpush1.bf16.xpose.msra.mxu0 0
    %1914 = vmatprep.subr.bf16.mxu0 0
    %1915 = vmatpush1.bf16.xpose.msra.mxu0 0
    %1916 = vmatprep.subr.bf16.mxu0 0
    %1917 = vmatpush1.bf16.xpose.msra.mxu0 0
    %1918 = vmatprep.subr.bf16.mxu0 0
    %1919 = vmatpush1.bf16.xpose.msra.mxu0 0
    %1920 = vmatprep.subr.bf16.mxu0 0
    %1921 = vmatpush1.bf16.xpose.msra.mxu0 0
    %1922 = vmatprep.subr.bf16.mxu0 0
    %1923 = vmatpush1.bf16.xpose.msra.mxu0 0
    %1924 = vmatprep.subr.bf16.mxu0 0
    %1925 = vmatpush1.bf16.xpose.msra.mxu0 0
    %1926 = vmatprep.subr.bf16.mxu0 0
    %1927 = vmatpush1.bf16.xpose.msra.mxu0 0
    %1928 = vmatprep.subr.bf16.mxu0 0
    %1929 = vmatpush1.bf16.xpose.msra.mxu0 0
    %1930 = vmatprep.subr.bf16.mxu0 0
    %1931 = vmatpush1.bf16.xpose.msra.mxu0 0
    %1932 = vmatprep.subr.bf16.mxu0 0
    %1933 = vmatpush1.bf16.xpose.msra.mxu0 0
    %1934 = vmatprep.subr.bf16.mxu0 0
    %1935 = vmatpush1.bf16.xpose.msra.mxu0 0
    %1936 = vmatprep.subr.bf16.mxu0 0
    %1937 = vmatpush1.bf16.xpose.msra.mxu0 0
    %1938 = vmatprep.subr.bf16.mxu0 0
    %1939 = vmatpush1.bf16.xpose.msra.mxu0 0
    %1940 = vmatprep.subr.bf16.mxu0 0
    %1941 = vmatpush1.bf16.xpose.msra.mxu0 0
    %1942 = vmatprep.mubr.bf16.mxu0 0
    %1943 = vmatmul.mubr.bf16.gmra.mrb[0].mxu0 %v1905
    %v1944 = vpop.f32.mrb[0].mxu0
    %v1945 = vadd.f32 0.0, %v1944
    %v1946 = vpop.f32.mrb[0].mxu0
    %v1947 = vpop.f32.mrb[0].mxu0
    %v1948 = vpop.f32.mrb[0].mxu0
    %1949 = vdwg.mxu0
    %v1951 = vsel %vm358, %v1867, 0
    %v1954 = vsel %vm358, %v1903, 0
    %1956 = vmatprep.subr.bf16.mxu0 0
    %1957 = vmatpush1.bf16.xpose.msra.mxu0 %v1954
    %1958 = vmatprep.subr.bf16.mxu0 0
    %1959 = vmatpush1.bf16.xpose.msra.mxu0 0
    %1960 = vmatprep.subr.bf16.mxu0 0
    %1961 = vmatpush1.bf16.xpose.msra.mxu0 0
    %1962 = vmatprep.subr.bf16.mxu0 0
    %1963 = vmatpush1.bf16.xpose.msra.mxu0 0
    %1964 = vmatprep.subr.bf16.mxu0 0
    %1965 = vmatpush1.bf16.xpose.msra.mxu0 0
    %1966 = vmatprep.subr.bf16.mxu0 0
    %1967 = vmatpush1.bf16.xpose.msra.mxu0 0
    %1968 = vmatprep.subr.bf16.mxu0 0
    %1969 = vmatpush1.bf16.xpose.msra.mxu0 0
    %1970 = vmatprep.subr.bf16.mxu0 0
    %1971 = vmatpush1.bf16.xpose.msra.mxu0 0
    %1972 = vmatprep.subr.bf16.mxu0 0
    %1973 = vmatpush1.bf16.xpose.msra.mxu0 0
    %1974 = vmatprep.subr.bf16.mxu0 0
    %1975 = vmatpush1.bf16.xpose.msra.mxu0 0
    %1976 = vmatprep.subr.bf16.mxu0 0
    %1977 = vmatpush1.bf16.xpose.msra.mxu0 0
    %1978 = vmatprep.subr.bf16.mxu0 0
    %1979 = vmatpush1.bf16.xpose.msra.mxu0 0
    %1980 = vmatprep.subr.bf16.mxu0 0
    %1981 = vmatpush1.bf16.xpose.msra.mxu0 0
    %1982 = vmatprep.subr.bf16.mxu0 0
    %1983 = vmatpush1.bf16.xpose.msra.mxu0 0
    %1984 = vmatprep.subr.bf16.mxu0 0
    %1985 = vmatpush1.bf16.xpose.msra.mxu0 0
    %1986 = vmatprep.subr.bf16.mxu0 0
    %1987 = vmatpush1.bf16.xpose.msra.mxu0 0
    %1988 = vmatprep.mubr.bf16.mxu0 0
    %1989 = vmatmul.mubr.bf16.gmra.mrb[0].mxu0 %v1951
    %v1990 = vpop.f32.mrb[0].mxu0
    %v1991 = vadd.f32 0.0, %v1990
    %v1992 = vpop.f32.mrb[0].mxu0
    %v1993 = vpop.f32.mrb[0].mxu0
    %v1994 = vpop.f32.mrb[0].mxu0
    %1995 = vdwg.mxu0
    %v1996 = vmul.f32 %v1945, 0.35355338
    %v1997 = vmul.f32 %v1991, 0.35355338
    %v1998 = vadd.f32 %v1996, %v1637
    %v1999 = vadd.f32 %v1997, %v1637
    %vm2000 = vcmask 44032
    %v2001 = vsel %vm2000, %v1998, -inf
    %2002 = vmax.xlane.f32.xlu0 %v2001
    %v2003 = vpop.xlane.xlu0 %2002
    %v2004 = vsel %vm2000, %v1999, -inf
    %2005 = vmax.xlane.f32.xlu0 %v2004
    %v2006 = vpop.xlane.xlu0 %2005
    %v2007 = vsub.f32 %v1998, %v2003
    %v2008 = vsub.f32 %v1999, %v2006
    %v2009 = vmul.f32 %v2007, 1.442695
    %v2010 = vpow.pop %v2009
    %v2011 = vmul.f32 %v2008, 1.442695
    %v2012 = vpow.pop %v2011
    %v2013 = vsel %vm2000, %v2010, 0.0
    %2014 = vadd.xlane.f32.xlu0 %v2013
    %v2015 = vpop.xlane.xlu0 %2014
    %v2016 = vsel %vm2000, %v2012, 0.0
    %2017 = vadd.xlane.f32.xlu0 %v2016
    %v2018 = vpop.xlane.xlu0 %2017
    %v2019 = vrcp.pop %v2015
    %v2020 = vrcp.pop %v2018
    %v2021 = vmul.f32 %v2010, %v2019
    %v2022 = vmul.f32 %v2012, %v2020
    %v2023 = vpack.c.bf16 %v2021, %v2021
    %v2024 = vpack.c.bf16 %v2022, %v2022
    %2026 = vrot.lane.b32.xlu0 %v1902, 96
    %v2027 = vpop.permute.xlu0 %2026
    %vm2028 = vcmask 48128
    %v2030 = vsel %vm2028, %v2023, 0
    %vm2032 = vcmask 1042432
    %v2034 = vsel %vm2032, %v2027, 0
    %2036 = vmatprep.subr.bf16.mxu0 0
    %2037 = vmatpush1.bf16.msra.mxu0 %v2034
    %2038 = vmatprep.subr.bf16.mxu0 0
    %2039 = vmatpush1.bf16.msra.mxu0 0
    %2040 = vmatprep.subr.bf16.mxu0 0
    %2041 = vmatpush1.bf16.msra.mxu0 0
    %2042 = vmatprep.subr.bf16.mxu0 0
    %2043 = vmatpush1.bf16.msra.mxu0 0
    %2044 = vmatprep.subr.bf16.mxu0 0
    %2045 = vmatpush1.bf16.msra.mxu0 0
    %2046 = vmatprep.subr.bf16.mxu0 0
    %2047 = vmatpush1.bf16.msra.mxu0 0
    %2048 = vmatprep.subr.bf16.mxu0 0
    %2049 = vmatpush1.bf16.msra.mxu0 0
    %2050 = vmatprep.subr.bf16.mxu0 0
    %2051 = vmatpush1.bf16.msra.mxu0 0
    %2052 = vmatprep.subr.bf16.mxu0 0
    %2053 = vmatpush1.bf16.msra.mxu0 0
    %2054 = vmatprep.subr.bf16.mxu0 0
    %2055 = vmatpush1.bf16.msra.mxu0 0
    %2056 = vmatprep.subr.bf16.mxu0 0
    %2057 = vmatpush1.bf16.msra.mxu0 0
    %2058 = vmatprep.subr.bf16.mxu0 0
    %2059 = vmatpush1.bf16.msra.mxu0 0
    %2060 = vmatprep.subr.bf16.mxu0 0
    %2061 = vmatpush1.bf16.msra.mxu0 0
    %2062 = vmatprep.subr.bf16.mxu0 0
    %2063 = vmatpush1.bf16.msra.mxu0 0
    %2064 = vmatprep.subr.bf16.mxu0 0
    %2065 = vmatpush1.bf16.msra.mxu0 0
    %2066 = vmatprep.subr.bf16.mxu0 0
    %2067 = vmatpush1.bf16.msra.mxu0 0
    %2068 = vmatprep.mubr.bf16.mxu0 0
    %2069 = vmatmul.mubr.bf16.gmra.mrb[0].mxu0 %v2030
    %v2070 = vpop.f32.mrb[0].mxu0
    %v2071 = vadd.f32 0.0, %v2070
    %v2072 = vpop.f32.mrb[0].mxu0
    %v2073 = vpop.f32.mrb[0].mxu0
    %v2074 = vpop.f32.mrb[0].mxu0
    %2075 = vdwg.mxu0
    %2077 = vrot.lane.b32.xlu0 %v1903, 96
    %v2078 = vpop.permute.xlu0 %2077
    %v2080 = vsel %vm2028, %v2024, 0
    %v2083 = vsel %vm2032, %v2078, 0
    %2085 = vmatprep.subr.bf16.mxu0 0
    %2086 = vmatpush1.bf16.msra.mxu0 %v2083
    %2087 = vmatprep.subr.bf16.mxu0 0
    %2088 = vmatpush1.bf16.msra.mxu0 0
    %2089 = vmatprep.subr.bf16.mxu0 0
    %2090 = vmatpush1.bf16.msra.mxu0 0
    %2091 = vmatprep.subr.bf16.mxu0 0
    %2092 = vmatpush1.bf16.msra.mxu0 0
    %2093 = vmatprep.subr.bf16.mxu0 0
    %2094 = vmatpush1.bf16.msra.mxu0 0
    %2095 = vmatprep.subr.bf16.mxu0 0
    %2096 = vmatpush1.bf16.msra.mxu0 0
    %2097 = vmatprep.subr.bf16.mxu0 0
    %2098 = vmatpush1.bf16.msra.mxu0 0
    %2099 = vmatprep.subr.bf16.mxu0 0
    %2100 = vmatpush1.bf16.msra.mxu0 0
    %2101 = vmatprep.subr.bf16.mxu0 0
    %2102 = vmatpush1.bf16.msra.mxu0 0
    %2103 = vmatprep.subr.bf16.mxu0 0
    %2104 = vmatpush1.bf16.msra.mxu0 0
    %2105 = vmatprep.subr.bf16.mxu0 0
    %2106 = vmatpush1.bf16.msra.mxu0 0
    %2107 = vmatprep.subr.bf16.mxu0 0
    %2108 = vmatpush1.bf16.msra.mxu0 0
    %2109 = vmatprep.subr.bf16.mxu0 0
    %2110 = vmatpush1.bf16.msra.mxu0 0
    %2111 = vmatprep.subr.bf16.mxu0 0
    %2112 = vmatpush1.bf16.msra.mxu0 0
    %2113 = vmatprep.subr.bf16.mxu0 0
    %2114 = vmatpush1.bf16.msra.mxu0 0
    %2115 = vmatprep.subr.bf16.mxu0 0
    %2116 = vmatpush1.bf16.msra.mxu0 0
    %2117 = vmatprep.mubr.bf16.mxu0 0
    %2118 = vmatmul.mubr.bf16.gmra.mrb[0].mxu0 %v2080
    %v2119 = vpop.f32.mrb[0].mxu0
    %v2120 = vadd.f32 0.0, %v2119
    %v2121 = vpop.f32.mrb[0].mxu0
    %v2122 = vpop.f32.mrb[0].mxu0
    %v2123 = vpop.f32.mrb[0].mxu0
    %2124 = vdwg.mxu0
    %2126 = vrot.lane.b32.xlu0 %v1866, 120
    %v2127 = vpop.permute.xlu0 %2126
    %2128 = vrot.lane.b32.xlu0 %v1902, 120
    %v2129 = vpop.permute.xlu0 %2128
    %v2131 = vsel %vm358, %v2127, 0
    %v2134 = vsel %vm358, %v2129, 0
    %2136 = vmatprep.subr.bf16.mxu0 0
    %2137 = vmatpush1.bf16.xpose.msra.mxu0 %v2134
    %2138 = vmatprep.subr.bf16.mxu0 0
    %2139 = vmatpush1.bf16.xpose.msra.mxu0 0
    %2140 = vmatprep.subr.bf16.mxu0 0
    %2141 = vmatpush1.bf16.xpose.msra.mxu0 0
    %2142 = vmatprep.subr.bf16.mxu0 0
    %2143 = vmatpush1.bf16.xpose.msra.mxu0 0
    %2144 = vmatprep.subr.bf16.mxu0 0
    %2145 = vmatpush1.bf16.xpose.msra.mxu0 0
    %2146 = vmatprep.subr.bf16.mxu0 0
    %2147 = vmatpush1.bf16.xpose.msra.mxu0 0
    %2148 = vmatprep.subr.bf16.mxu0 0
    %2149 = vmatpush1.bf16.xpose.msra.mxu0 0
    %2150 = vmatprep.subr.bf16.mxu0 0
    %2151 = vmatpush1.bf16.xpose.msra.mxu0 0
    %2152 = vmatprep.subr.bf16.mxu0 0
    %2153 = vmatpush1.bf16.xpose.msra.mxu0 0
    %2154 = vmatprep.subr.bf16.mxu0 0
    %2155 = vmatpush1.bf16.xpose.msra.mxu0 0
    %2156 = vmatprep.subr.bf16.mxu0 0
    %2157 = vmatpush1.bf16.xpose.msra.mxu0 0
    %2158 = vmatprep.subr.bf16.mxu0 0
    %2159 = vmatpush1.bf16.xpose.msra.mxu0 0
    %2160 = vmatprep.subr.bf16.mxu0 0
    %2161 = vmatpush1.bf16.xpose.msra.mxu0 0
    %2162 = vmatprep.subr.bf16.mxu0 0
    %2163 = vmatpush1.bf16.xpose.msra.mxu0 0
    %2164 = vmatprep.subr.bf16.mxu0 0
    %2165 = vmatpush1.bf16.xpose.msra.mxu0 0
    %2166 = vmatprep.subr.bf16.mxu0 0
    %2167 = vmatpush1.bf16.xpose.msra.mxu0 0
    %2168 = vmatprep.mubr.bf16.mxu0 0
    %2169 = vmatmul.mubr.bf16.gmra.mrb[0].mxu0 %v2131
    %v2170 = vpop.f32.mrb[0].mxu0
    %v2171 = vadd.f32 0.0, %v2170
    %v2172 = vpop.f32.mrb[0].mxu0
    %v2173 = vpop.f32.mrb[0].mxu0
    %v2174 = vpop.f32.mrb[0].mxu0
    %2175 = vdwg.mxu0
    %2177 = vrot.lane.b32.xlu0 %v1867, 120
    %v2178 = vpop.permute.xlu0 %2177
    %2179 = vrot.lane.b32.xlu0 %v1903, 120
    %v2180 = vpop.permute.xlu0 %2179
    %v2182 = vsel %vm358, %v2178, 0
    %v2185 = vsel %vm358, %v2180, 0
    %2187 = vmatprep.subr.bf16.mxu0 0
    %2188 = vmatpush1.bf16.xpose.msra.mxu0 %v2185
    %2189 = vmatprep.subr.bf16.mxu0 0
    %2190 = vmatpush1.bf16.xpose.msra.mxu0 0
    %2191 = vmatprep.subr.bf16.mxu0 0
    %2192 = vmatpush1.bf16.xpose.msra.mxu0 0
    %2193 = vmatprep.subr.bf16.mxu0 0
    %2194 = vmatpush1.bf16.xpose.msra.mxu0 0
    %2195 = vmatprep.subr.bf16.mxu0 0
    %2196 = vmatpush1.bf16.xpose.msra.mxu0 0
    %2197 = vmatprep.subr.bf16.mxu0 0
    %2198 = vmatpush1.bf16.xpose.msra.mxu0 0
    %2199 = vmatprep.subr.bf16.mxu0 0
    %2200 = vmatpush1.bf16.xpose.msra.mxu0 0
    %2201 = vmatprep.subr.bf16.mxu0 0
    %2202 = vmatpush1.bf16.xpose.msra.mxu0 0
    %2203 = vmatprep.subr.bf16.mxu0 0
    %2204 = vmatpush1.bf16.xpose.msra.mxu0 0
    %2205 = vmatprep.subr.bf16.mxu0 0
    %2206 = vmatpush1.bf16.xpose.msra.mxu0 0
    %2207 = vmatprep.subr.bf16.mxu0 0
    %2208 = vmatpush1.bf16.xpose.msra.mxu0 0
    %2209 = vmatprep.subr.bf16.mxu0 0
    %2210 = vmatpush1.bf16.xpose.msra.mxu0 0
    %2211 = vmatprep.subr.bf16.mxu0 0
    %2212 = vmatpush1.bf16.xpose.msra.mxu0 0
    %2213 = vmatprep.subr.bf16.mxu0 0
    %2214 = vmatpush1.bf16.xpose.msra.mxu0 0
    %2215 = vmatprep.subr.bf16.mxu0 0
    %2216 = vmatpush1.bf16.xpose.msra.mxu0 0
    %2217 = vmatprep.subr.bf16.mxu0 0
    %2218 = vmatpush1.bf16.xpose.msra.mxu0 0
    %2219 = vmatprep.mubr.bf16.mxu0 0
    %2220 = vmatmul.mubr.bf16.gmra.mrb[0].mxu0 %v2182
    %v2221 = vpop.f32.mrb[0].mxu0
    %v2222 = vadd.f32 0.0, %v2221
    %v2223 = vpop.f32.mrb[0].mxu0
    %v2224 = vpop.f32.mrb[0].mxu0
    %v2225 = vpop.f32.mrb[0].mxu0
    %2226 = vdwg.mxu0
    %v2227 = vmul.f32 %v2171, 0.35355338
    %v2228 = vmul.f32 %v2222, 0.35355338
    %v2229 = vadd.f32 %v2227, %v1637
    %v2230 = vadd.f32 %v2228, %v1637
    %v2231 = vsel %vm2000, %v2229, -inf
    %2232 = vmax.xlane.f32.xlu0 %v2231
    %v2233 = vpop.xlane.xlu0 %2232
    %v2234 = vsel %vm2000, %v2230, -inf
    %2235 = vmax.xlane.f32.xlu0 %v2234
    %v2236 = vpop.xlane.xlu0 %2235
    %v2237 = vsub.f32 %v2229, %v2233
    %v2238 = vsub.f32 %v2230, %v2236
    %v2239 = vmul.f32 %v2237, 1.442695
    %v2240 = vpow.pop %v2239
    %v2241 = vmul.f32 %v2238, 1.442695
    %v2242 = vpow.pop %v2241
    %v2243 = vsel %vm2000, %v2240, 0.0
    %2244 = vadd.xlane.f32.xlu0 %v2243
    %v2245 = vpop.xlane.xlu0 %2244
    %v2246 = vsel %vm2000, %v2242, 0.0
    %2247 = vadd.xlane.f32.xlu0 %v2246
    %v2248 = vpop.xlane.xlu0 %2247
    %v2249 = vrcp.pop %v2245
    %v2250 = vrcp.pop %v2248
    %v2251 = vmul.f32 %v2240, %v2249
    %v2252 = vmul.f32 %v2242, %v2250
    %v2253 = vpack.c.bf16 %v2251, %v2251
    %v2254 = vpack.c.bf16 %v2252, %v2252
    %2255 = vrot.lane.b32.xlu0 %v1902, 88
    %v2256 = vpop.permute.xlu0 %2255
    %v2258 = vsel %vm2028, %v2253, 0
    %v2261 = vsel %vm2032, %v2256, 0
    %2263 = vmatprep.subr.bf16.mxu0 0
    %2264 = vmatpush1.bf16.msra.mxu0 %v2261
    %2265 = vmatprep.subr.bf16.mxu0 0
    %2266 = vmatpush1.bf16.msra.mxu0 0
    %2267 = vmatprep.subr.bf16.mxu0 0
    %2268 = vmatpush1.bf16.msra.mxu0 0
    %2269 = vmatprep.subr.bf16.mxu0 0
    %2270 = vmatpush1.bf16.msra.mxu0 0
    %2271 = vmatprep.subr.bf16.mxu0 0
    %2272 = vmatpush1.bf16.msra.mxu0 0
    %2273 = vmatprep.subr.bf16.mxu0 0
    %2274 = vmatpush1.bf16.msra.mxu0 0
    %2275 = vmatprep.subr.bf16.mxu0 0
    %2276 = vmatpush1.bf16.msra.mxu0 0
    %2277 = vmatprep.subr.bf16.mxu0 0
    %2278 = vmatpush1.bf16.msra.mxu0 0
    %2279 = vmatprep.subr.bf16.mxu0 0
    %2280 = vmatpush1.bf16.msra.mxu0 0
    %2281 = vmatprep.subr.bf16.mxu0 0
    %2282 = vmatpush1.bf16.msra.mxu0 0
    %2283 = vmatprep.subr.bf16.mxu0 0
    %2284 = vmatpush1.bf16.msra.mxu0 0
    %2285 = vmatprep.subr.bf16.mxu0 0
    %2286 = vmatpush1.bf16.msra.mxu0 0
    %2287 = vmatprep.subr.bf16.mxu0 0
    %2288 = vmatpush1.bf16.msra.mxu0 0
    %2289 = vmatprep.subr.bf16.mxu0 0
    %2290 = vmatpush1.bf16.msra.mxu0 0
    %2291 = vmatprep.subr.bf16.mxu0 0
    %2292 = vmatpush1.bf16.msra.mxu0 0
    %2293 = vmatprep.subr.bf16.mxu0 0
    %2294 = vmatpush1.bf16.msra.mxu0 0
    %2295 = vmatprep.mubr.bf16.mxu0 0
    %2296 = vmatmul.mubr.bf16.gmra.mrb[0].mxu0 %v2258
    %v2297 = vpop.f32.mrb[0].mxu0
    %v2298 = vadd.f32 0.0, %v2297
    %v2299 = vpop.f32.mrb[0].mxu0
    %v2300 = vpop.f32.mrb[0].mxu0
    %v2301 = vpop.f32.mrb[0].mxu0
    %2302 = vdwg.mxu0
    %2303 = vrot.lane.b32.xlu0 %v1903, 88
    %v2304 = vpop.permute.xlu0 %2303
    %v2306 = vsel %vm2028, %v2254, 0
    %v2309 = vsel %vm2032, %v2304, 0
    %2311 = vmatprep.subr.bf16.mxu0 0
    %2312 = vmatpush1.bf16.msra.mxu0 %v2309
    %2313 = vmatprep.subr.bf16.mxu0 0
    %2314 = vmatpush1.bf16.msra.mxu0 0
    %2315 = vmatprep.subr.bf16.mxu0 0
    %2316 = vmatpush1.bf16.msra.mxu0 0
    %2317 = vmatprep.subr.bf16.mxu0 0
    %2318 = vmatpush1.bf16.msra.mxu0 0
    %2319 = vmatprep.subr.bf16.mxu0 0
    %2320 = vmatpush1.bf16.msra.mxu0 0
    %2321 = vmatprep.subr.bf16.mxu0 0
    %2322 = vmatpush1.bf16.msra.mxu0 0
    %2323 = vmatprep.subr.bf16.mxu0 0
    %2324 = vmatpush1.bf16.msra.mxu0 0
    %2325 = vmatprep.subr.bf16.mxu0 0
    %2326 = vmatpush1.bf16.msra.mxu0 0
    %2327 = vmatprep.subr.bf16.mxu0 0
    %2328 = vmatpush1.bf16.msra.mxu0 0
    %2329 = vmatprep.subr.bf16.mxu0 0
    %2330 = vmatpush1.bf16.msra.mxu0 0
    %2331 = vmatprep.subr.bf16.mxu0 0
    %2332 = vmatpush1.bf16.msra.mxu0 0
    %2333 = vmatprep.subr.bf16.mxu0 0
    %2334 = vmatpush1.bf16.msra.mxu0 0
    %2335 = vmatprep.subr.bf16.mxu0 0
    %2336 = vmatpush1.bf16.msra.mxu0 0
    %2337 = vmatprep.subr.bf16.mxu0 0
    %2338 = vmatpush1.bf16.msra.mxu0 0
    %2339 = vmatprep.subr.bf16.mxu0 0
    %2340 = vmatpush1.bf16.msra.mxu0 0
    %2341 = vmatprep.subr.bf16.mxu0 0
    %2342 = vmatpush1.bf16.msra.mxu0 0
    %2343 = vmatprep.mubr.bf16.mxu0 0
    %2344 = vmatmul.mubr.bf16.gmra.mrb[0].mxu0 %v2306
    %v2345 = vpop.f32.mrb[0].mxu0
    %v2346 = vadd.f32 0.0, %v2345
    %v2347 = vpop.f32.mrb[0].mxu0
    %v2348 = vpop.f32.mrb[0].mxu0
    %v2349 = vpop.f32.mrb[0].mxu0
    %2350 = vdwg.mxu0
    %2351 = vrot.lane.b32.xlu0 %v1866, 112
    %v2352 = vpop.permute.xlu0 %2351
    %2353 = vrot.lane.b32.xlu0 %v1902, 112
    %v2354 = vpop.permute.xlu0 %2353
    %v2356 = vsel %vm358, %v2352, 0
    %v2359 = vsel %vm358, %v2354, 0
    %2361 = vmatprep.subr.bf16.mxu0 0
    %2362 = vmatpush1.bf16.xpose.msra.mxu0 %v2359
    %2363 = vmatprep.subr.bf16.mxu0 0
    %2364 = vmatpush1.bf16.xpose.msra.mxu0 0
    %2365 = vmatprep.subr.bf16.mxu0 0
    %2366 = vmatpush1.bf16.xpose.msra.mxu0 0
    %2367 = vmatprep.subr.bf16.mxu0 0
    %2368 = vmatpush1.bf16.xpose.msra.mxu0 0
    %2369 = vmatprep.subr.bf16.mxu0 0
    %2370 = vmatpush1.bf16.xpose.msra.mxu0 0
    %2371 = vmatprep.subr.bf16.mxu0 0
    %2372 = vmatpush1.bf16.xpose.msra.mxu0 0
    %2373 = vmatprep.subr.bf16.mxu0 0
    %2374 = vmatpush1.bf16.xpose.msra.mxu0 0
    %2375 = vmatprep.subr.bf16.mxu0 0
    %2376 = vmatpush1.bf16.xpose.msra.mxu0 0
    %2377 = vmatprep.subr.bf16.mxu0 0
    %2378 = vmatpush1.bf16.xpose.msra.mxu0 0
    %2379 = vmatprep.subr.bf16.mxu0 0
    %2380 = vmatpush1.bf16.xpose.msra.mxu0 0
    %2381 = vmatprep.subr.bf16.mxu0 0
    %2382 = vmatpush1.bf16.xpose.msra.mxu0 0
    %2383 = vmatprep.subr.bf16.mxu0 0
    %2384 = vmatpush1.bf16.xpose.msra.mxu0 0
    %2385 = vmatprep.subr.bf16.mxu0 0
    %2386 = vmatpush1.bf16.xpose.msra.mxu0 0
    %2387 = vmatprep.subr.bf16.mxu0 0
    %2388 = vmatpush1.bf16.xpose.msra.mxu0 0
    %2389 = vmatprep.subr.bf16.mxu0 0
    %2390 = vmatpush1.bf16.xpose.msra.mxu0 0
    %2391 = vmatprep.subr.bf16.mxu0 0
    %2392 = vmatpush1.bf16.xpose.msra.mxu0 0
    %2393 = vmatprep.mubr.bf16.mxu0 0
    %2394 = vmatmul.mubr.bf16.gmra.mrb[0].mxu0 %v2356
    %v2395 = vpop.f32.mrb[0].mxu0
    %v2396 = vadd.f32 0.0, %v2395
    %v2397 = vpop.f32.mrb[0].mxu0
    %v2398 = vpop.f32.mrb[0].mxu0
    %v2399 = vpop.f32.mrb[0].mxu0
    %2400 = vdwg.mxu0
    %2401 = vrot.lane.b32.xlu0 %v1867, 112
    %v2402 = vpop.permute.xlu0 %2401
    %2403 = vrot.lane.b32.xlu0 %v1903, 112
    %v2404 = vpop.permute.xlu0 %2403
    %v2406 = vsel %vm358, %v2402, 0
    %v2409 = vsel %vm358, %v2404, 0
    %2411 = vmatprep.subr.bf16.mxu0 0
    %2412 = vmatpush1.bf16.xpose.msra.mxu0 %v2409
    %2413 = vmatprep.subr.bf16.mxu0 0
    %2414 = vmatpush1.bf16.xpose.msra.mxu0 0
    %2415 = vmatprep.subr.bf16.mxu0 0
    %2416 = vmatpush1.bf16.xpose.msra.mxu0 0
    %2417 = vmatprep.subr.bf16.mxu0 0
    %2418 = vmatpush1.bf16.xpose.msra.mxu0 0
    %2419 = vmatprep.subr.bf16.mxu0 0
    %2420 = vmatpush1.bf16.xpose.msra.mxu0 0
    %2421 = vmatprep.subr.bf16.mxu0 0
    %2422 = vmatpush1.bf16.xpose.msra.mxu0 0
    %2423 = vmatprep.subr.bf16.mxu0 0
    %2424 = vmatpush1.bf16.xpose.msra.mxu0 0
    %2425 = vmatprep.subr.bf16.mxu0 0
    %2426 = vmatpush1.bf16.xpose.msra.mxu0 0
    %2427 = vmatprep.subr.bf16.mxu0 0
    %2428 = vmatpush1.bf16.xpose.msra.mxu0 0
    %2429 = vmatprep.subr.bf16.mxu0 0
    %2430 = vmatpush1.bf16.xpose.msra.mxu0 0
    %2431 = vmatprep.subr.bf16.mxu0 0
    %2432 = vmatpush1.bf16.xpose.msra.mxu0 0
    %2433 = vmatprep.subr.bf16.mxu0 0
    %2434 = vmatpush1.bf16.xpose.msra.mxu0 0
    %2435 = vmatprep.subr.bf16.mxu0 0
    %2436 = vmatpush1.bf16.xpose.msra.mxu0 0
    %2437 = vmatprep.subr.bf16.mxu0 0
    %2438 = vmatpush1.bf16.xpose.msra.mxu0 0
    %2439 = vmatprep.subr.bf16.mxu0 0
    %2440 = vmatpush1.bf16.xpose.msra.mxu0 0
    %2441 = vmatprep.subr.bf16.mxu0 0
    %2442 = vmatpush1.bf16.xpose.msra.mxu0 0
    %2443 = vmatprep.mubr.bf16.mxu0 0
    %2444 = vmatmul.mubr.bf16.gmra.mrb[0].mxu0 %v2406
    %v2445 = vpop.f32.mrb[0].mxu0
    %v2446 = vadd.f32 0.0, %v2445
    %v2447 = vpop.f32.mrb[0].mxu0
    %v2448 = vpop.f32.mrb[0].mxu0
    %v2449 = vpop.f32.mrb[0].mxu0
    %2450 = vdwg.mxu0
    %v2451 = vmul.f32 %v2396, 0.35355338
    %v2452 = vmul.f32 %v2446, 0.35355338
    %v2453 = vadd.f32 %v2451, %v1637
    %v2454 = vadd.f32 %v2452, %v1637
    %v2455 = vsel %vm2000, %v2453, -inf
    %2456 = vmax.xlane.f32.xlu0 %v2455
    %v2457 = vpop.xlane.xlu0 %2456
    %v2458 = vsel %vm2000, %v2454, -inf
    %2459 = vmax.xlane.f32.xlu0 %v2458
    %v2460 = vpop.xlane.xlu0 %2459
    %v2461 = vsub.f32 %v2453, %v2457
    %v2462 = vsub.f32 %v2454, %v2460
    %v2463 = vmul.f32 %v2461, 1.442695
    %v2464 = vpow.pop %v2463
    %v2465 = vmul.f32 %v2462, 1.442695
    %v2466 = vpow.pop %v2465
    %v2467 = vsel %vm2000, %v2464, 0.0
    %2468 = vadd.xlane.f32.xlu0 %v2467
    %v2469 = vpop.xlane.xlu0 %2468
    %v2470 = vsel %vm2000, %v2466, 0.0
    %2471 = vadd.xlane.f32.xlu0 %v2470
    %v2472 = vpop.xlane.xlu0 %2471
    %v2473 = vrcp.pop %v2469
    %v2474 = vrcp.pop %v2472
    %v2475 = vmul.f32 %v2464, %v2473
    %v2476 = vmul.f32 %v2466, %v2474
    %v2477 = vpack.c.bf16 %v2475, %v2475
    %v2478 = vpack.c.bf16 %v2476, %v2476
    %2479 = vrot.lane.b32.xlu0 %v1902, 80
    %v2480 = vpop.permute.xlu0 %2479
    %v2482 = vsel %vm2028, %v2477, 0
    %v2485 = vsel %vm2032, %v2480, 0
    %2487 = vmatprep.subr.bf16.mxu0 0
    %2488 = vmatpush1.bf16.msra.mxu0 %v2485
    %2489 = vmatprep.subr.bf16.mxu0 0
    %2490 = vmatpush1.bf16.msra.mxu0 0
    %2491 = vmatprep.subr.bf16.mxu0 0
    %2492 = vmatpush1.bf16.msra.mxu0 0
    %2493 = vmatprep.subr.bf16.mxu0 0
    %2494 = vmatpush1.bf16.msra.mxu0 0
    %2495 = vmatprep.subr.bf16.mxu0 0
    %2496 = vmatpush1.bf16.msra.mxu0 0
    %2497 = vmatprep.subr.bf16.mxu0 0
    %2498 = vmatpush1.bf16.msra.mxu0 0
    %2499 = vmatprep.subr.bf16.mxu0 0
    %2500 = vmatpush1.bf16.msra.mxu0 0
    %2501 = vmatprep.subr.bf16.mxu0 0
    %2502 = vmatpush1.bf16.msra.mxu0 0
    %2503 = vmatprep.subr.bf16.mxu0 0
    %2504 = vmatpush1.bf16.msra.mxu0 0
    %2505 = vmatprep.subr.bf16.mxu0 0
    %2506 = vmatpush1.bf16.msra.mxu0 0
    %2507 = vmatprep.subr.bf16.mxu0 0
    %2508 = vmatpush1.bf16.msra.mxu0 0
    %2509 = vmatprep.subr.bf16.mxu0 0
    %2510 = vmatpush1.bf16.msra.mxu0 0
    %2511 = vmatprep.subr.bf16.mxu0 0
    %2512 = vmatpush1.bf16.msra.mxu0 0
    %2513 = vmatprep.subr.bf16.mxu0 0
    %2514 = vmatpush1.bf16.msra.mxu0 0
    %2515 = vmatprep.subr.bf16.mxu0 0
    %2516 = vmatpush1.bf16.msra.mxu0 0
    %2517 = vmatprep.subr.bf16.mxu0 0
    %2518 = vmatpush1.bf16.msra.mxu0 0
    %2519 = vmatprep.mubr.bf16.mxu0 0
    %2520 = vmatmul.mubr.bf16.gmra.mrb[0].mxu0 %v2482
    %v2521 = vpop.f32.mrb[0].mxu0
    %v2522 = vadd.f32 0.0, %v2521
    %v2523 = vpop.f32.mrb[0].mxu0
    %v2524 = vpop.f32.mrb[0].mxu0
    %v2525 = vpop.f32.mrb[0].mxu0
    %2526 = vdwg.mxu0
    %2527 = vrot.lane.b32.xlu0 %v1903, 80
    %v2528 = vpop.permute.xlu0 %2527
    %v2530 = vsel %vm2028, %v2478, 0
    %v2533 = vsel %vm2032, %v2528, 0
    %2535 = vmatprep.subr.bf16.mxu0 0
    %2536 = vmatpush1.bf16.msra.mxu0 %v2533
    %2537 = vmatprep.subr.bf16.mxu0 0
    %2538 = vmatpush1.bf16.msra.mxu0 0
    %2539 = vmatprep.subr.bf16.mxu0 0
    %2540 = vmatpush1.bf16.msra.mxu0 0
    %2541 = vmatprep.subr.bf16.mxu0 0
    %2542 = vmatpush1.bf16.msra.mxu0 0
    %2543 = vmatprep.subr.bf16.mxu0 0
    %2544 = vmatpush1.bf16.msra.mxu0 0
    %2545 = vmatprep.subr.bf16.mxu0 0
    %2546 = vmatpush1.bf16.msra.mxu0 0
    %2547 = vmatprep.subr.bf16.mxu0 0
    %2548 = vmatpush1.bf16.msra.mxu0 0
    %2549 = vmatprep.subr.bf16.mxu0 0
    %2550 = vmatpush1.bf16.msra.mxu0 0
    %2551 = vmatprep.subr.bf16.mxu0 0
    %2552 = vmatpush1.bf16.msra.mxu0 0
    %2553 = vmatprep.subr.bf16.mxu0 0
    %2554 = vmatpush1.bf16.msra.mxu0 0
    %2555 = vmatprep.subr.bf16.mxu0 0
    %2556 = vmatpush1.bf16.msra.mxu0 0
    %2557 = vmatprep.subr.bf16.mxu0 0
    %2558 = vmatpush1.bf16.msra.mxu0 0
    %2559 = vmatprep.subr.bf16.mxu0 0
    %2560 = vmatpush1.bf16.msra.mxu0 0
    %2561 = vmatprep.subr.bf16.mxu0 0
    %2562 = vmatpush1.bf16.msra.mxu0 0
    %2563 = vmatprep.subr.bf16.mxu0 0
    %2564 = vmatpush1.bf16.msra.mxu0 0
    %2565 = vmatprep.subr.bf16.mxu0 0
    %2566 = vmatpush1.bf16.msra.mxu0 0
    %2567 = vmatprep.mubr.bf16.mxu0 0
    %2568 = vmatmul.mubr.bf16.gmra.mrb[0].mxu0 %v2530
    %v2569 = vpop.f32.mrb[0].mxu0
    %v2570 = vadd.f32 0.0, %v2569
    %v2571 = vpop.f32.mrb[0].mxu0
    %v2572 = vpop.f32.mrb[0].mxu0
    %v2573 = vpop.f32.mrb[0].mxu0
    %2574 = vdwg.mxu0
    %2575 = vrot.lane.b32.xlu0 %v1866, 104
    %v2576 = vpop.permute.xlu0 %2575
    %2577 = vrot.lane.b32.xlu0 %v1902, 104
    %v2578 = vpop.permute.xlu0 %2577
    %v2580 = vsel %vm358, %v2576, 0
    %v2583 = vsel %vm358, %v2578, 0
    %2585 = vmatprep.subr.bf16.mxu0 0
    %2586 = vmatpush1.bf16.xpose.msra.mxu0 %v2583
    %2587 = vmatprep.subr.bf16.mxu0 0
    %2588 = vmatpush1.bf16.xpose.msra.mxu0 0
    %2589 = vmatprep.subr.bf16.mxu0 0
    %2590 = vmatpush1.bf16.xpose.msra.mxu0 0
    %2591 = vmatprep.subr.bf16.mxu0 0
    %2592 = vmatpush1.bf16.xpose.msra.mxu0 0
    %2593 = vmatprep.subr.bf16.mxu0 0
    %2594 = vmatpush1.bf16.xpose.msra.mxu0 0
    %2595 = vmatprep.subr.bf16.mxu0 0
    %2596 = vmatpush1.bf16.xpose.msra.mxu0 0
    %2597 = vmatprep.subr.bf16.mxu0 0
    %2598 = vmatpush1.bf16.xpose.msra.mxu0 0
    %2599 = vmatprep.subr.bf16.mxu0 0
    %2600 = vmatpush1.bf16.xpose.msra.mxu0 0
    %2601 = vmatprep.subr.bf16.mxu0 0
    %2602 = vmatpush1.bf16.xpose.msra.mxu0 0
    %2603 = vmatprep.subr.bf16.mxu0 0
    %2604 = vmatpush1.bf16.xpose.msra.mxu0 0
    %2605 = vmatprep.subr.bf16.mxu0 0
    %2606 = vmatpush1.bf16.xpose.msra.mxu0 0
    %2607 = vmatprep.subr.bf16.mxu0 0
    %2608 = vmatpush1.bf16.xpose.msra.mxu0 0
    %2609 = vmatprep.subr.bf16.mxu0 0
    %2610 = vmatpush1.bf16.xpose.msra.mxu0 0
    %2611 = vmatprep.subr.bf16.mxu0 0
    %2612 = vmatpush1.bf16.xpose.msra.mxu0 0
    %2613 = vmatprep.subr.bf16.mxu0 0
    %2614 = vmatpush1.bf16.xpose.msra.mxu0 0
    %2615 = vmatprep.subr.bf16.mxu0 0
    %2616 = vmatpush1.bf16.xpose.msra.mxu0 0
    %2617 = vmatprep.mubr.bf16.mxu0 0
    %2618 = vmatmul.mubr.bf16.gmra.mrb[0].mxu0 %v2580
    %v2619 = vpop.f32.mrb[0].mxu0
    %v2620 = vadd.f32 0.0, %v2619
    %v2621 = vpop.f32.mrb[0].mxu0
    %v2622 = vpop.f32.mrb[0].mxu0
    %v2623 = vpop.f32.mrb[0].mxu0
    %2624 = vdwg.mxu0
    %2625 = vrot.lane.b32.xlu0 %v1867, 104
    %v2626 = vpop.permute.xlu0 %2625
    %2627 = vrot.lane.b32.xlu0 %v1903, 104
    %v2628 = vpop.permute.xlu0 %2627
    %v2630 = vsel %vm358, %v2626, 0
    %v2633 = vsel %vm358, %v2628, 0
    %2635 = vmatprep.subr.bf16.mxu0 0
    %2636 = vmatpush1.bf16.xpose.msra.mxu0 %v2633
    %2637 = vmatprep.subr.bf16.mxu0 0
    %2638 = vmatpush1.bf16.xpose.msra.mxu0 0
    %2639 = vmatprep.subr.bf16.mxu0 0
    %2640 = vmatpush1.bf16.xpose.msra.mxu0 0
    %2641 = vmatprep.subr.bf16.mxu0 0
    %2642 = vmatpush1.bf16.xpose.msra.mxu0 0
    %2643 = vmatprep.subr.bf16.mxu0 0
    %2644 = vmatpush1.bf16.xpose.msra.mxu0 0
    %2645 = vmatprep.subr.bf16.mxu0 0
    %2646 = vmatpush1.bf16.xpose.msra.mxu0 0
    %2647 = vmatprep.subr.bf16.mxu0 0
    %2648 = vmatpush1.bf16.xpose.msra.mxu0 0
    %2649 = vmatprep.subr.bf16.mxu0 0
    %2650 = vmatpush1.bf16.xpose.msra.mxu0 0
    %2651 = vmatprep.subr.bf16.mxu0 0
    %2652 = vmatpush1.bf16.xpose.msra.mxu0 0
    %2653 = vmatprep.subr.bf16.mxu0 0
    %2654 = vmatpush1.bf16.xpose.msra.mxu0 0
    %2655 = vmatprep.subr.bf16.mxu0 0
    %2656 = vmatpush1.bf16.xpose.msra.mxu0 0
    %2657 = vmatprep.subr.bf16.mxu0 0
    %2658 = vmatpush1.bf16.xpose.msra.mxu0 0
    %2659 = vmatprep.subr.bf16.mxu0 0
    %2660 = vmatpush1.bf16.xpose.msra.mxu0 0
    %2661 = vmatprep.subr.bf16.mxu0 0
    %2662 = vmatpush1.bf16.xpose.msra.mxu0 0
    %2663 = vmatprep.subr.bf16.mxu0 0
    %2664 = vmatpush1.bf16.xpose.msra.mxu0 0
    %2665 = vmatprep.subr.bf16.mxu0 0
    %2666 = vmatpush1.bf16.xpose.msra.mxu0 0
    %2667 = vmatprep.mubr.bf16.mxu0 0
    %2668 = vmatmul.mubr.bf16.gmra.mrb[0].mxu0 %v2630
    %v2669 = vpop.f32.mrb[0].mxu0
    %v2670 = vadd.f32 0.0, %v2669
    %v2671 = vpop.f32.mrb[0].mxu0
    %v2672 = vpop.f32.mrb[0].mxu0
    %v2673 = vpop.f32.mrb[0].mxu0
    %2674 = vdwg.mxu0
    %v2675 = vmul.f32 %v2620, 0.35355338
    %v2676 = vmul.f32 %v2670, 0.35355338
    %v2677 = vadd.f32 %v2675, %v1637
    %v2678 = vadd.f32 %v2676, %v1637
    %v2679 = vsel %vm2000, %v2677, -inf
    %2680 = vmax.xlane.f32.xlu0 %v2679
    %v2681 = vpop.xlane.xlu0 %2680
    %v2682 = vsel %vm2000, %v2678, -inf
    %2683 = vmax.xlane.f32.xlu0 %v2682
    %v2684 = vpop.xlane.xlu0 %2683
    %v2685 = vsub.f32 %v2677, %v2681
    %v2686 = vsub.f32 %v2678, %v2684
    %v2687 = vmul.f32 %v2685, 1.442695
    %v2688 = vpow.pop %v2687
    %v2689 = vmul.f32 %v2686, 1.442695
    %v2690 = vpow.pop %v2689
    %v2691 = vsel %vm2000, %v2688, 0.0
    %2692 = vadd.xlane.f32.xlu0 %v2691
    %v2693 = vpop.xlane.xlu0 %2692
    %v2694 = vsel %vm2000, %v2690, 0.0
    %2695 = vadd.xlane.f32.xlu0 %v2694
    %v2696 = vpop.xlane.xlu0 %2695
    %v2697 = vrcp.pop %v2693
    %v2698 = vrcp.pop %v2696
    %v2699 = vmul.f32 %v2688, %v2697
    %v2700 = vmul.f32 %v2690, %v2698
    %v2701 = vpack.c.bf16 %v2699, %v2699
    %v2702 = vpack.c.bf16 %v2700, %v2700
    %2703 = vrot.lane.b32.xlu0 %v1902, 72
    %v2704 = vpop.permute.xlu0 %2703
    %v2706 = vsel %vm2028, %v2701, 0
    %v2709 = vsel %vm2032, %v2704, 0
    %2711 = vmatprep.subr.bf16.mxu0 0
    %2712 = vmatpush1.bf16.msra.mxu0 %v2709
    %2713 = vmatprep.subr.bf16.mxu0 0
    %2714 = vmatpush1.bf16.msra.mxu0 0
    %2715 = vmatprep.subr.bf16.mxu0 0
    %2716 = vmatpush1.bf16.msra.mxu0 0
    %2717 = vmatprep.subr.bf16.mxu0 0
    %2718 = vmatpush1.bf16.msra.mxu0 0
    %2719 = vmatprep.subr.bf16.mxu0 0
    %2720 = vmatpush1.bf16.msra.mxu0 0
    %2721 = vmatprep.subr.bf16.mxu0 0
    %2722 = vmatpush1.bf16.msra.mxu0 0
    %2723 = vmatprep.subr.bf16.mxu0 0
    %2724 = vmatpush1.bf16.msra.mxu0 0
    %2725 = vmatprep.subr.bf16.mxu0 0
    %2726 = vmatpush1.bf16.msra.mxu0 0
    %2727 = vmatprep.subr.bf16.mxu0 0
    %2728 = vmatpush1.bf16.msra.mxu0 0
    %2729 = vmatprep.subr.bf16.mxu0 0
    %2730 = vmatpush1.bf16.msra.mxu0 0
    %2731 = vmatprep.subr.bf16.mxu0 0
    %2732 = vmatpush1.bf16.msra.mxu0 0
    %2733 = vmatprep.subr.bf16.mxu0 0
    %2734 = vmatpush1.bf16.msra.mxu0 0
    %2735 = vmatprep.subr.bf16.mxu0 0
    %2736 = vmatpush1.bf16.msra.mxu0 0
    %2737 = vmatprep.subr.bf16.mxu0 0
    %2738 = vmatpush1.bf16.msra.mxu0 0
    %2739 = vmatprep.subr.bf16.mxu0 0
    %2740 = vmatpush1.bf16.msra.mxu0 0
    %2741 = vmatprep.subr.bf16.mxu0 0
    %2742 = vmatpush1.bf16.msra.mxu0 0
    %2743 = vmatprep.mubr.bf16.mxu0 0
    %2744 = vmatmul.mubr.bf16.gmra.mrb[0].mxu0 %v2706
    %v2745 = vpop.f32.mrb[0].mxu0
    %v2746 = vadd.f32 0.0, %v2745
    %v2747 = vpop.f32.mrb[0].mxu0
    %v2748 = vpop.f32.mrb[0].mxu0
    %v2749 = vpop.f32.mrb[0].mxu0
    %2750 = vdwg.mxu0
    %2751 = vrot.lane.b32.xlu0 %v1903, 72
    %v2752 = vpop.permute.xlu0 %2751
    %v2754 = vsel %vm2028, %v2702, 0
    %v2757 = vsel %vm2032, %v2752, 0
    %2759 = vmatprep.subr.bf16.mxu0 0
    %2760 = vmatpush1.bf16.msra.mxu0 %v2757
    %2761 = vmatprep.subr.bf16.mxu0 0
    %2762 = vmatpush1.bf16.msra.mxu0 0
    %2763 = vmatprep.subr.bf16.mxu0 0
    %2764 = vmatpush1.bf16.msra.mxu0 0
    %2765 = vmatprep.subr.bf16.mxu0 0
    %2766 = vmatpush1.bf16.msra.mxu0 0
    %2767 = vmatprep.subr.bf16.mxu0 0
    %2768 = vmatpush1.bf16.msra.mxu0 0
    %2769 = vmatprep.subr.bf16.mxu0 0
    %2770 = vmatpush1.bf16.msra.mxu0 0
    %2771 = vmatprep.subr.bf16.mxu0 0
    %2772 = vmatpush1.bf16.msra.mxu0 0
    %2773 = vmatprep.subr.bf16.mxu0 0
    %2774 = vmatpush1.bf16.msra.mxu0 0
    %2775 = vmatprep.subr.bf16.mxu0 0
    %2776 = vmatpush1.bf16.msra.mxu0 0
    %2777 = vmatprep.subr.bf16.mxu0 0
    %2778 = vmatpush1.bf16.msra.mxu0 0
    %2779 = vmatprep.subr.bf16.mxu0 0
    %2780 = vmatpush1.bf16.msra.mxu0 0
    %2781 = vmatprep.subr.bf16.mxu0 0
    %2782 = vmatpush1.bf16.msra.mxu0 0
    %2783 = vmatprep.subr.bf16.mxu0 0
    %2784 = vmatpush1.bf16.msra.mxu0 0
    %2785 = vmatprep.subr.bf16.mxu0 0
    %2786 = vmatpush1.bf16.msra.mxu0 0
    %2787 = vmatprep.subr.bf16.mxu0 0
    %2788 = vmatpush1.bf16.msra.mxu0 0
    %2789 = vmatprep.subr.bf16.mxu0 0
    %2790 = vmatpush1.bf16.msra.mxu0 0
    %2791 = vmatprep.mubr.bf16.mxu0 0
    %2792 = vmatmul.mubr.bf16.gmra.mrb[0].mxu0 %v2754
    %v2793 = vpop.f32.mrb[0].mxu0
    %v2794 = vadd.f32 0.0, %v2793
    %v2795 = vpop.f32.mrb[0].mxu0
    %v2796 = vpop.f32.mrb[0].mxu0
    %v2797 = vpop.f32.mrb[0].mxu0
    %2798 = vdwg.mxu0
    %2801 = vrot.lane.b32.xlu0 %v2298, 8
    %v2802 = vpop.permute.xlu0 %2801
    %2803 = vrot.lane.b32.xlu0 %v2346, 8
    %v2804 = vpop.permute.xlu0 %2803
    %2809 = vrot.lane.b32.xlu0 %v2522, 16
    %v2810 = vpop.permute.xlu0 %2809
    %2811 = vrot.lane.b32.xlu0 %v2570, 16
    %v2812 = vpop.permute.xlu0 %2811
    %2817 = vrot.lane.b32.xlu0 %v2746, 24
    %v2818 = vpop.permute.xlu0 %2817
    %2819 = vrot.lane.b32.xlu0 %v2794, 24
    %v2820 = vpop.permute.xlu0 %2819
    %v2823 = vsel %vm358, %v2071, %v2802
    %v2824 = vsel %vm358, %v2120, %v2804
    %v2825 = vsel %vm482, %v2823, %v2810
    %v2826 = vsel %vm482, %v2824, %v2812
    %v2827 = vsel %vm1263, %v2825, %v2818
    %v2828 = vsel %vm1263, %v2826, %v2820
    %v2831 = vcombine.low %v2827, %v2828
    %v2833 = vpack.c.bf16 %v2831, %v2831
    %v2834 = vld [vmem:[%s20] sm:$0xf]
    %v2835 = vld [vmem:[%s20 + $0x4] sm:$0xf]
    %v2836 = vld [vmem:[%s20 + $0x8] sm:$0xf]
    %v2837 = vld [vmem:[%s20 + $0xc] sm:$0xf]
    %v2838 = vld [vmem:[%s21] sm:$0x1]
    %v2840 = vlaneseq
    %v2841 = vshrl.u32 %v2840, 7
    %v2842 = vsub.s32 0, %v2841
    %v2843 = vrot.slane %v2838, %v2842
    %v2849 = vunpack.c.l.b16 %v2834
    %v2850 = vunpack.c.l.b16 %v2835
    %v2851 = vunpack.c.l.b16 %v2836
    %v2852 = vunpack.c.l.b16 %v2837
    %v2853 = vpack.c.b16 %v2850, %v2849
    %v2854 = vpack.c.b16 %v2852, %v2851
    %v2858 = vsel %vm139, %v2833, 0
    %2860 = vmatprep.subr.bf16.mxu0 0
    %2861 = vmatpush1.bf16.msra.mxu0 %v2853
    %2862 = vmatprep.subr.bf16.mxu0 0
    %2863 = vmatpush1.bf16.msra.mxu0 %v2854
    %2864 = vmatprep.subr.bf16.mxu0 0
    %2865 = vmatpush1.bf16.msra.mxu0 0
    %2866 = vmatprep.subr.bf16.mxu0 0
    %2867 = vmatpush1.bf16.msra.mxu0 0
    %2868 = vmatprep.subr.bf16.mxu0 0
    %2869 = vmatpush1.bf16.msra.mxu0 0
    %2870 = vmatprep.subr.bf16.mxu0 0
    %2871 = vmatpush1.bf16.msra.mxu0 0
    %2872 = vmatprep.subr.bf16.mxu0 0
    %2873 = vmatpush1.bf16.msra.mxu0 0
    %2874 = vmatprep.subr.bf16.mxu0 0
    %2875 = vmatpush1.bf16.msra.mxu0 0
    %2876 = vmatprep.subr.bf16.mxu0 0
    %2877 = vmatpush1.bf16.msra.mxu0 0
    %2878 = vmatprep.subr.bf16.mxu0 0
    %2879 = vmatpush1.bf16.msra.mxu0 0
    %2880 = vmatprep.subr.bf16.mxu0 0
    %2881 = vmatpush1.bf16.msra.mxu0 0
    %2882 = vmatprep.subr.bf16.mxu0 0
    %2883 = vmatpush1.bf16.msra.mxu0 0
    %2884 = vmatprep.subr.bf16.mxu0 0
    %2885 = vmatpush1.bf16.msra.mxu0 0
    %2886 = vmatprep.subr.bf16.mxu0 0
    %2887 = vmatpush1.bf16.msra.mxu0 0
    %2888 = vmatprep.subr.bf16.mxu0 0
    %2889 = vmatpush1.bf16.msra.mxu0 0
    %2890 = vmatprep.subr.bf16.mxu0 0
    %2891 = vmatpush1.bf16.msra.mxu0 0
    %2892 = vmatprep.mubr.bf16.mxu0 0
    %2893 = vmatmul.mubr.bf16.gmra.mrb[0].mxu0 %v2858
    %v2894 = vpop.f32.mrb[0].mxu0
    %v2895 = vadd.f32 %v2843, %v2894
    %v2896 = vpop.f32.mrb[0].mxu0
    %v2897 = vpop.f32.mrb[0].mxu0
    %v2898 = vpop.f32.mrb[0].mxu0
    %2899 = vdwg.mxu0
    %v2901 = vcombine.high %v2895, %v2895
    %v2903 = vadd.f32 %v1582, %v2895
    %v2904 = vadd.f32 %v1583, %v2901
    %2905 = vst.msk [vmem:[%s26] sm:$0xf] %vm93, %v2903
    %2906 = vst.msk [vmem:[%s26 + $0x4] sm:$0xf] %vm93, %v2904
    %v2907 = vsel %vm482, %v1337, 0.0
    %v2908 = vsel %vm482, %v1338, 0.0
    %2909 = vst [vmem:[#allocation3] sm:$0xf] %v2907
    %2910 = vst [vmem:[#allocation3 + $0x4] sm:$0xf] %v2908
    // Predicated region
    $region106: #{hoi_residual_attention_block.1} parent=1 // pred_check
      _
    $region107: #{hoi_residual_attention_block.1} parent=1 // pred_check_branch
      %2912 = sbr.rel (0) target = $region109
    $region108: #{hoi_residual_attention_block.1} parent=1 // pred_region
      _
    $region109: #{hoi_residual_attention_block.1} parent=1 // pred_fallthru
      _
    // Predicated region
    $region110: #{hoi_residual_attention_block.1} parent=1 // pred_check
      _
    $region111: #{hoi_residual_attention_block.1} parent=1 // pred_check_branch
      %2914 = sbr.rel (0) target = $region113
    $region112: #{hoi_residual_attention_block.1} parent=1 // pred_region
      %s2916 = ssub.s32 128, 128
      %2917 = vsyncadd [#allocation4], %s2916
      %s2918 = sshll.u32 [#allocation3], 4
      %s2919 = int_to_ptr.vmem [resolvable:$true] %s2918
      %2924 = dma.vmem_to_hbm [thread:$0]  %s2919, 128, %s27, [#allocation4], 64, 64, 4
    $region113: #{hoi_residual_attention_block.1} parent=1 // pred_fallthru
      _
    // Predicated region
    $region114: #{hoi_residual_attention_block.1} parent=1 // pred_check
      _
    $region115: #{hoi_residual_attention_block.1} parent=1 // pred_check_branch
      %2926 = sbr.rel (0) target = $region117
    $region116: #{hoi_residual_attention_block.1} parent=1 // pred_region
      _
    $region117: #{hoi_residual_attention_block.1} parent=1 // pred_fallthru
      _
    // Predicated region
    $region118: #{hoi_residual_attention_block.1} parent=1 // pred_check
      _
    $region119: #{hoi_residual_attention_block.1} parent=1 // pred_check_branch
      %2928 = sbr.rel (0) target = $region121
    $region120: #{hoi_residual_attention_block.1} parent=1 // pred_region
      %2929 = dma.done [#allocation4], 128
    $region121: #{hoi_residual_attention_block.1} parent=1 // pred_fallthru
      _
    %2930 = vsyncpa [#allocation4], 1

</llo_original>
